<compile_context>
chip_gen: v5e
topology: v5e:2x2
jax: 0.10.0
libtpu: 0.0.40
codegen_flags: <defaults>
</compile_context>

<pallas_src>
import jax
import jax.numpy as jnp
from jax import lax
from jax.experimental import pallas as pl
from jax.experimental.pallas import tpu as pltpu

K = 41        # conv kernel length
PAD = 20      # conv padding ("same" output length); 2*PAD == K - 1
K_PAD = 42    # taps padded to an even count so im2col pair-stores are uniform
              # full (16, L) bf16 tiles; the extra tap's weight columns are 0.


def _resblock_kernel(x_ref, w1_ref, w2_ref, bias_ref, alpha_ref,
                     o_ref, col_ref, xpad_ref):
    """One grid step = B batch samples.

    x_ref     : (B, C, L)        f32   input (also the residual)
    w1_ref    : (C, K_PAD*C)     bf16  conv1 weight, BN1 scale folded;
                                       layout [o, k*C + c] = s1[o] * w1[o, c, k]
    w2_ref    : (C, K_PAD*C)     bf16  conv2 weight, BN2 scale folded
    bias_ref  : (C, 2)           f32   folded BN biases, columns [b1 | b2]
    alpha_ref : (2,)     SMEM    f32   PReLU slopes [a1, a2]
    o_ref     : (B, C, L)              output
    col_ref   : (K_PAD*C, B*L)   bf16  VMEM scratch: im2col slab (both convs)
    xpad_ref  : (C, L + 2*PAD)   bf16  VMEM scratch: padded input/intermediate
    """
    B, C, L = x_ref.shape
    Lp = L + 2 * PAD

    # Zero the two PAD-wide strips once per grid step.  The centre writes
    # below never touch them, so this covers conv1's padded input and conv2's
    # padded intermediate for every sample in the step.  (Not hoisted under
    # program_id(0) == 0: the batch axis is "parallel", each core owns its own
    # scratch, so a one-time init would be unsafe.)
    xpad_ref[:, :PAD] = jnp.zeros((C, PAD), jnp.bfloat16)
    xpad_ref[:, PAD + L:Lp] = jnp.zeros((C, PAD), jnp.bfloat16)

    def im2col(b):
        # Fill col_ref lanes [b*L, (b+1)*L) from the current xpad_ref.
        # Taps unrolled in pairs -> every slab store is a full (2*C, L) =
        # (16, L) packed-bf16 tile (no sublane-masked read-modify-write).
        # Static-offset slices lower to XLU lane rotates + selects; if a
        # Mosaic dump ever shows per-lane gathers, rewrite them as
        # pltpu.roll(xpad, -k, axis=-1)[:, :L].
        xpad = xpad_ref[...]                                   # (C, Lp) bf16
        for p in range(K_PAD // 2):
            k0 = 2 * p
            k1 = min(2 * p + 1, K - 1)   # duplicated tap: its weight cols are 0
            tile = jnp.concatenate(
                [xpad[:, k0:k0 + L], xpad[:, k1:k1 + L]], axis=0)  # (2C, L)
            col_ref[2 * p * C:2 * (p + 1) * C, b * L:(b + 1) * L] = tile

    # ---- conv1: in-kernel pad+cast, im2col, one deep MXU matmul ------------
    for b in range(B):
        xpad_ref[:, PAD:PAD + L] = x_ref[b].astype(jnp.bfloat16)
        im2col(b)
    acc1 = jnp.dot(w1_ref[...], col_ref[...],
                   preferred_element_type=jnp.float32)         # (C, B*L) f32

    # ---- BN1 (scale folded into w1) bias + PReLU1 ---------------------------
    a1 = alpha_ref[0]
    h = acc1 + bias_ref[:, 0:1]
    h = jnp.where(h >= 0, h, a1 * h)

    # ---- conv2: reuse the same xpad / col scratch ---------------------------
    for b in range(B):
        xpad_ref[:, PAD:PAD + L] = h[:, b * L:(b + 1) * L].astype(jnp.bfloat16)
        im2col(b)
    acc2 = jnp.dot(w2_ref[...], col_ref[...],
                   preferred_element_type=jnp.float32)         # (C, B*L) f32

    # ---- BN2 bias + residual (f32) + PReLU2, per-sample full-tile stores ----
    a2 = alpha_ref[1]
    for b in range(B):
        out = acc2[:, b * L:(b + 1) * L] + bias_ref[:, 1:2] + x_ref[b]
        out = jnp.where(out >= 0, out, a2 * out)
        o_ref[b] = out.astype(o_ref.dtype)


def _fold_bn_into_weights(w, gamma, beta, mean, var, eps):
    """Fold inference-mode BatchNorm1d into the (bias-free) conv weight.

    Returns:
      w_flat : (C_out, K_PAD*C_in) f32, [o, k*C_in + c] = s[o] * w[o, c, k],
               zero-padded from K to K_PAD taps.
      bias   : (C_out,) f32, beta - mean * s
    """
    s = gamma / jnp.sqrt(var + eps)                            # (C_out,)
    bias = beta - mean * s
    c_out, c_in, k = w.shape
    w_scaled = w * s[:, None, None]
    w_flat = jnp.transpose(w_scaled, (0, 2, 1)).reshape(c_out, k * c_in)
    w_flat = jnp.pad(w_flat, ((0, 0), (0, (K_PAD - k) * c_in)))
    return w_flat.astype(jnp.float32), bias.astype(jnp.float32)


def _pick_batch_per_step(n, l, max_b=8):
    """Largest B dividing N that keeps grid length >= 2 (feeds both v7x TCs).

    Lane-axis batching (B > 1) is only used when L is lane-tile aligned so the
    per-sample im2col / output stores stay full unmasked tiles.
    """
    if l % 128 != 0:
        return 1
    best = 1
    for b in range(1, min(n, max_b) + 1):
        if n % b == 0 and n // b >= 2:
            best = b
    return best


def resblock_forward(x, w1, w2, g1, be1, m1, v1, g2, be2, m2, v2, a1, a2,
                     eps=1e-5, batch_per_step=None):
    """x: (N, C, L) float32; conv weights w*: (C_out, C_in, K), bias-free."""
    N, C, L = x.shape
    KC = K_PAD * C

    if batch_per_step is None:
        batch_per_step = _pick_batch_per_step(N, L)
    B = batch_per_step
    assert N % B == 0, "batch_per_step must divide the batch size"

    w1_flat, b1 = _fold_bn_into_weights(w1, g1, be1, m1, v1, eps)
    w2_flat, b2 = _fold_bn_into_weights(w2, g2, be2, m2, v2, eps)
    w1_bf = w1_flat.astype(jnp.bfloat16)                       # (C, K_PAD*C)
    w2_bf = w2_flat.astype(jnp.bfloat16)
    bias = jnp.stack([b1, b2], axis=1)                         # (C, 2) f32
    alphas = jnp.stack([jnp.asarray(a1, jnp.float32),
                        jnp.asarray(a2, jnp.float32)])         # (2,) f32, SMEM

    # Advisory cost estimate so XLA schedules / overlaps this small call well.
    flops = int(2 * (2 * C * C * K * L) * N)
    bytes_accessed = int(2 * N * C * L * 4        # x in + out (f32)
                         + 2 * C * KC * 2         # two bf16 folded weights
                         + C * 2 * 4 + 2 * 4)     # biases + PReLU slopes
    cost = pl.CostEstimate(flops=flops, transcendentals=0,
                           bytes_accessed=bytes_accessed)

    grid_spec = pltpu.PrefetchScalarGridSpec(
        num_scalar_prefetch=0,
        grid=(N // B,),
        in_specs=[
            pl.BlockSpec((B, C, L), lambda n: (n, 0, 0)),        # x (f32)
            # Both folded weights stay resident in VMEM (~11 KB at C=8).
            pl.BlockSpec((C, KC), lambda n: (0, 0)),             # w1 (BN folded)
            pl.BlockSpec((C, KC), lambda n: (0, 0)),             # w2 (BN folded)
            pl.BlockSpec((C, 2), lambda n: (0, 0)),              # packed BN biases
            pl.BlockSpec(memory_space=pltpu.MemorySpace.SMEM),   # PReLU alphas
        ],
        out_specs=pl.BlockSpec((B, C, L), lambda n: (n, 0, 0)),
        scratch_shapes=[
            pltpu.VMEM((KC, B * L), jnp.bfloat16),      # im2col slab (both convs)
            pltpu.VMEM((C, L + 2 * PAD), jnp.bfloat16), # padded input/intermediate
        ],
    )

    return pl.pallas_call(
        _resblock_kernel,
        out_shape=jax.ShapeDtypeStruct((N, C, L), x.dtype),
        grid_spec=grid_spec,
        cost_estimate=cost,
        compiler_params=pltpu.CompilerParams(
            dimension_semantics=("parallel",)),
    )(x, w1_bf, w2_bf, bias, alphas)


# ----------------------------- references ---------------------------------

def resblock_reference(x, w1, w2, g1, be1, m1, v1, g2, be2, m2, v2, a1, a2,
                       eps=1e-5):
    """Pure-JAX f32 reference (inference-mode BN) — module semantics."""
    def conv(h, w):
        return lax.conv_general_dilated(
            h, w, window_strides=(1,), padding=[(PAD, PAD)],
            dimension_numbers=('NCH', 'OIH', 'NCH'))

    def bn(h, g, b, m, v):
        return (h - m[None, :, None]) / jnp.sqrt(v[None, :, None] + eps) \
               * g[None, :, None] + b[None, :, None]

    def prelu(h, a):
        return jnp.where(h >= 0, h, a * h)

    h = prelu(bn(conv(x, w1), g1, be1, m1, v1), a1)
    h = bn(conv(h, w2), g2, be2, m2, v2)
    return prelu(h + x, a2)


def resblock_reference_matched(x, w1, w2, g1, be1, m1, v1, g2, be2, m2, v2,
                               a1, a2, eps=1e-5):
    """Reference with the kernel's exact precision choices: bf16 conv operands
    with the BN scale folded into the weights, f32 accumulation, f32
    bias/PReLU/residual math, bf16 intermediate."""
    def conv(h_bf, w_bf):
        return lax.conv_general_dilated(
            h_bf, w_bf, window_strides=(1,), padding=[(PAD, PAD)],
            dimension_numbers=('NCH', 'OIH', 'NCH'),
            preferred_element_type=jnp.float32)

    def prelu(h, a):
        return jnp.where(h >= 0, h, a * h)

    s1 = g1 / jnp.sqrt(v1 + eps); b1 = be1 - m1 * s1
    s2 = g2 / jnp.sqrt(v2 + eps); b2 = be2 - m2 * s2
    w1_bf = (w1 * s1[:, None, None]).astype(jnp.bfloat16)
    w2_bf = (w2 * s2[:, None, None]).astype(jnp.bfloat16)

    h = conv(x.astype(jnp.bfloat16), w1_bf) + b1[None, :, None]
    h = prelu(h, a1)
    out = conv(h.astype(jnp.bfloat16), w2_bf) + b2[None, :, None] + x
    return prelu(out, a2)


if __name__ == "__main__":
    key = jax.random.PRNGKey(0)
    N, C, L = 4, 8, 128   # ResBlock(channel_num=8); B=2 samples/step, grid=(2,)

    ks = jax.random.split(key, 12)
    x = jax.random.normal(ks[0], (N, C, L), jnp.float32)

    # Conv1d weights: (C_out, C_in, K), no bias.
    scale = 1.0 / jnp.sqrt(C * K)
    w1 = jax.random.normal(ks[1], (C, C, K), jnp.float32) * scale
    w2 = jax.random.normal(ks[2], (C, C, K), jnp.float32) * scale

    # BatchNorm1d params (deterministic, non-trivial).
    g1 = 1.0 + 0.1 * jax.random.normal(ks[3], (C,), jnp.float32)
    be1 = 0.1 * jax.random.normal(ks[4], (C,), jnp.float32)
    m1 = 0.1 * jax.random.normal(ks[5], (C,), jnp.float32)
    v1 = jnp.abs(jax.random.normal(ks[6], (C,), jnp.float32)) + 0.5
    g2 = 1.0 + 0.1 * jax.random.normal(ks[7], (C,), jnp.float32)
    be2 = 0.1 * jax.random.normal(ks[8], (C,), jnp.float32)
    m2 = 0.1 * jax.random.normal(ks[9], (C,), jnp.float32)
    v2 = jnp.abs(jax.random.normal(ks[10], (C,), jnp.float32)) + 0.5

    # PReLU default init (single shared slope = 0.25).
    a1 = jnp.float32(0.25)
    a2 = jnp.float32(0.25)

    # Main run: B = 2 samples per step (lane-batched), grid = (2,).
    out = resblock_forward(x, w1, w2, g1, be1, m1, v1, g2, be2, m2, v2, a1, a2)
    out = jax.block_until_ready(out)
    assert out.shape == (N, C, L)

    # Tight check against a reference using the same precision choices
    # (bf16 MXU operands, f32 accumulation and pointwise math).
    ref_m = resblock_reference_matched(
        x, w1, w2, g1, be1, m1, v1, g2, be2, m2, v2, a1, a2)
    ref_m = jax.block_until_ready(ref_m)
    assert jnp.allclose(out, ref_m, rtol=2e-3, atol=2e-3), \
        f"matched-precision max abs diff {jnp.max(jnp.abs(out - ref_m))}"

    # Sanity check against the full-f32 module semantics (looser tolerance:
    # the kernel deliberately uses bf16 MXU operands).
    ref_f = resblock_reference(
        x, w1, w2, g1, be1, m1, v1, g2, be2, m2, v2, a1, a2)
    ref_f = jax.block_until_ready(ref_f)
    assert jnp.allclose(out, ref_f, rtol=5e-2, atol=5e-2), \
        f"f32-reference max abs diff {jnp.max(jnp.abs(out - ref_f))}"

    # Also exercise the B = 1 path (e.g. batch of 2 on v7x keeps grid = (2,)).
    x2 = x[:2]
    out2 = resblock_forward(
        x2, w1, w2, g1, be1, m1, v1, g2, be2, m2, v2, a1, a2)
    out2 = jax.block_until_ready(out2)
    ref2 = jax.block_until_ready(resblock_reference_matched(
        x2, w1, w2, g1, be1, m1, v1, g2, be2, m2, v2, a1, a2))
    assert jnp.allclose(out2, ref2, rtol=2e-3, atol=2e-3), \
        f"B=1 path max abs diff {jnp.max(jnp.abs(out2 - ref2))}"

    print("KERNEL_OK")
</pallas_src>

<mosaic_0001>
module attributes {stable_mosaic.version = 11 : i64} {
  func.func @_resblock_kernel(%arg0: i32, %arg1: memref<2x8x128xf32, #tpu.memory_space<vmem>>, %arg2: memref<8x336xbf16, #tpu.memory_space<vmem>>, %arg3: memref<8x336xbf16, #tpu.memory_space<vmem>>, %arg4: memref<8x2xf32, #tpu.memory_space<vmem>>, %arg5: memref<2xf32, #tpu.memory_space<smem>>, %arg6: memref<2x8x128xf32, #tpu.memory_space<vmem>>, %arg7: memref<336x256xbf16, #tpu.memory_space<vmem>>, %arg8: memref<8x168xbf16, #tpu.memory_space<vmem>>) attributes {dimension_semantics = [#tpu.dimension_semantics<parallel>], iteration_bounds = array<i64: 2>, scalar_prefetch = 0 : i64, scratch_operands = 2 : i64, tpu.core_type = #tpu.core_type<tc>, window_params = [{transform_indices = @transform_0, window_bounds = array<i64: 2, 8, 128>}, {pipeline_mode = #tpu.pipeline_mode<synchronous>, transform_indices = @transform_1, window_bounds = array<i64: 8, 336>}, {pipeline_mode = #tpu.pipeline_mode<synchronous>, transform_indices = @transform_2, window_bounds = array<i64: 8, 336>}, {pipeline_mode = #tpu.pipeline_mode<synchronous>, transform_indices = @transform_3, window_bounds = array<i64: 8, 2>}, {transform_indices = @transform_4, window_bounds = array<i64: 2>}, {transform_indices = @transform_5, window_bounds = array<i64: 2, 8, 128>}]} {
    %cst = arith.constant 0.000000e+00 : bf16
    %0 = vector.broadcast %cst : bf16 to vector<8x20xbf16>
    %c0 = arith.constant 0 : index
    %c0_0 = arith.constant 0 : index
    %1 = vector.load %arg8[%c0, %c0_0] : memref<8x168xbf16, #tpu.memory_space<vmem>>, vector<8x20xbf16>
    tpu.vector_store %arg8[%c0, %c0_0], %0 {strides = array<i32>} : memref<8x168xbf16, #tpu.memory_space<vmem>>, vector<8x20xbf16>,
    %cst_1 = arith.constant 0.000000e+00 : bf16
    %2 = vector.broadcast %cst_1 : bf16 to vector<8x20xbf16>
    %c0_2 = arith.constant 0 : index
    %c148 = arith.constant 148 : index
    %3 = vector.load %arg8[%c0_2, %c148] : memref<8x168xbf16, #tpu.memory_space<vmem>>, vector<8x20xbf16>
    tpu.vector_store %arg8[%c0_2, %c148], %2 {strides = array<i32>} : memref<8x168xbf16, #tpu.memory_space<vmem>>, vector<8x20xbf16>,
    %c0_3 = arith.constant 0 : index
    %c0_4 = arith.constant 0 : index
    %c0_5 = arith.constant 0 : index
    %4 = vector.load %arg1[%c0_3, %c0_4, %c0_5] : memref<2x8x128xf32, #tpu.memory_space<vmem>>, vector<1x8x128xf32>
    %5 = vector.shape_cast %4 : vector<1x8x128xf32> to vector<8x128xf32>
    %6 = arith.truncf %5 : vector<8x128xf32> to vector<8x128xbf16>
    %c0_6 = arith.constant 0 : index
    %c20 = arith.constant 20 : index
    %7 = vector.load %arg8[%c0_6, %c20] : memref<8x168xbf16, #tpu.memory_space<vmem>>, vector<8x128xbf16>
    tpu.vector_store %arg8[%c0_6, %c20], %6 {strides = array<i32>} : memref<8x168xbf16, #tpu.memory_space<vmem>>, vector<8x128xbf16>,
    %c0_7 = arith.constant 0 : index
    %c0_8 = arith.constant 0 : index
    %8 = vector.load %arg8[%c0_7, %c0_8] : memref<8x168xbf16, #tpu.memory_space<vmem>>, vector<8x168xbf16>
    %9 = vector.extract_strided_slice %8 {offsets = [0, 0], sizes = [8, 128], strides = [1, 1]} : vector<8x168xbf16> to vector<8x128xbf16>
    %10 = vector.extract_strided_slice %8 {offsets = [0, 1], sizes = [8, 128], strides = [1, 1]} : vector<8x168xbf16> to vector<8x128xbf16>
    %11 = tpu.concatenate %9, %10 in 0 : vector<8x128xbf16>, vector<8x128xbf16> -> vector<16x128xbf16>
    %c0_9 = arith.constant 0 : index
    %c0_10 = arith.constant 0 : index
    %12 = vector.load %arg7[%c0_9, %c0_10] : memref<336x256xbf16, #tpu.memory_space<vmem>>, vector<16x128xbf16>
    tpu.vector_store %arg7[%c0_9, %c0_10], %11 {strides = array<i32>} : memref<336x256xbf16, #tpu.memory_space<vmem>>, vector<16x128xbf16>,
    %13 = vector.extract_strided_slice %8 {offsets = [0, 2], sizes = [8, 128], strides = [1, 1]} : vector<8x168xbf16> to vector<8x128xbf16>
    %14 = vector.extract_strided_slice %8 {offsets = [0, 3], sizes = [8, 128], strides = [1, 1]} : vector<8x168xbf16> to vector<8x128xbf16>
    %15 = tpu.concatenate %13, %14 in 0 : vector<8x128xbf16>, vector<8x128xbf16> -> vector<16x128xbf16>
    %c16 = arith.constant 16 : index
    %c0_11 = arith.constant 0 : index
    %16 = vector.load %arg7[%c16, %c0_11] : memref<336x256xbf16, #tpu.memory_space<vmem>>, vector<16x128xbf16>
    tpu.vector_store %arg7[%c16, %c0_11], %15 {strides = array<i32>} : memref<336x256xbf16, #tpu.memory_space<vmem>>, vector<16x128xbf16>,
    %17 = vector.extract_strided_slice %8 {offsets = [0, 4], sizes = [8, 128], strides = [1, 1]} : vector<8x168xbf16> to vector<8x128xbf16>
    %18 = vector.extract_strided_slice %8 {offsets = [0, 5], sizes = [8, 128], strides = [1, 1]} : vector<8x168xbf16> to vector<8x128xbf16>
    %19 = tpu.concatenate %17, %18 in 0 : vector<8x128xbf16>, vector<8x128xbf16> -> vector<16x128xbf16>
    %c32 = arith.constant 32 : index
    %c0_12 = arith.constant 0 : index
    %20 = vector.load %arg7[%c32, %c0_12] : memref<336x256xbf16, #tpu.memory_space<vmem>>, vector<16x128xbf16>
    tpu.vector_store %arg7[%c32, %c0_12], %19 {strides = array<i32>} : memref<336x256xbf16, #tpu.memory_space<vmem>>, vector<16x128xbf16>,
    %21 = vector.extract_strided_slice %8 {offsets = [0, 6], sizes = [8, 128], strides = [1, 1]} : vector<8x168xbf16> to vector<8x128xbf16>
    %22 = vector.extract_strided_slice %8 {offsets = [0, 7], sizes = [8, 128], strides = [1, 1]} : vector<8x168xbf16> to vector<8x128xbf16>
    %23 = tpu.concatenate %21, %22 in 0 : vector<8x128xbf16>, vector<8x128xbf16> -> vector<16x128xbf16>
    %c48 = arith.constant 48 : index
    %c0_13 = arith.constant 0 : index
    %24 = vector.load %arg7[%c48, %c0_13] : memref<336x256xbf16, #tpu.memory_space<vmem>>, vector<16x128xbf16>
    tpu.vector_store %arg7[%c48, %c0_13], %23 {strides = array<i32>} : memref<336x256xbf16, #tpu.memory_space<vmem>>, vector<16x128xbf16>,
    %25 = vector.extract_strided_slice %8 {offsets = [0, 8], sizes = [8, 128], strides = [1, 1]} : vector<8x168xbf16> to vector<8x128xbf16>
    %26 = vector.extract_strided_slice %8 {offsets = [0, 9], sizes = [8, 128], strides = [1, 1]} : vector<8x168xbf16> to vector<8x128xbf16>
    %27 = tpu.concatenate %25, %26 in 0 : vector<8x128xbf16>, vector<8x128xbf16> -> vector<16x128xbf16>
    %c64 = arith.constant 64 : index
    %c0_14 = arith.constant 0 : index
    %28 = vector.load %arg7[%c64, %c0_14] : memref<336x256xbf16, #tpu.memory_space<vmem>>, vector<16x128xbf16>
    tpu.vector_store %arg7[%c64, %c0_14], %27 {strides = array<i32>} : memref<336x256xbf16, #tpu.memory_space<vmem>>, vector<16x128xbf16>,
    %29 = vector.extract_strided_slice %8 {offsets = [0, 10], sizes = [8, 128], strides = [1, 1]} : vector<8x168xbf16> to vector<8x128xbf16>
    %30 = vector.extract_strided_slice %8 {offsets = [0, 11], sizes = [8, 128], strides = [1, 1]} : vector<8x168xbf16> to vector<8x128xbf16>
    %31 = tpu.concatenate %29, %30 in 0 : vector<8x128xbf16>, vector<8x128xbf16> -> vector<16x128xbf16>
    %c80 = arith.constant 80 : index
    %c0_15 = arith.constant 0 : index
    %32 = vector.load %arg7[%c80, %c0_15] : memref<336x256xbf16, #tpu.memory_space<vmem>>, vector<16x128xbf16>
    tpu.vector_store %arg7[%c80, %c0_15], %31 {strides = array<i32>} : memref<336x256xbf16, #tpu.memory_space<vmem>>, vector<16x128xbf16>,
    %33 = vector.extract_strided_slice %8 {offsets = [0, 12], sizes = [8, 128], strides = [1, 1]} : vector<8x168xbf16> to vector<8x128xbf16>
    %34 = vector.extract_strided_slice %8 {offsets = [0, 13], sizes = [8, 128], strides = [1, 1]} : vector<8x168xbf16> to vector<8x128xbf16>
    %35 = tpu.concatenate %33, %34 in 0 : vector<8x128xbf16>, vector<8x128xbf16> -> vector<16x128xbf16>
    %c96 = arith.constant 96 : index
    %c0_16 = arith.constant 0 : index
    %36 = vector.load %arg7[%c96, %c0_16] : memref<336x256xbf16, #tpu.memory_space<vmem>>, vector<16x128xbf16>
    tpu.vector_store %arg7[%c96, %c0_16], %35 {strides = array<i32>} : memref<336x256xbf16, #tpu.memory_space<vmem>>, vector<16x128xbf16>,
    %37 = vector.extract_strided_slice %8 {offsets = [0, 14], sizes = [8, 128], strides = [1, 1]} : vector<8x168xbf16> to vector<8x128xbf16>
    %38 = vector.extract_strided_slice %8 {offsets = [0, 15], sizes = [8, 128], strides = [1, 1]} : vector<8x168xbf16> to vector<8x128xbf16>
    %39 = tpu.concatenate %37, %38 in 0 : vector<8x128xbf16>, vector<8x128xbf16> -> vector<16x128xbf16>
    %c112 = arith.constant 112 : index
    %c0_17 = arith.constant 0 : index
    %40 = vector.load %arg7[%c112, %c0_17] : memref<336x256xbf16, #tpu.memory_space<vmem>>, vector<16x128xbf16>
    tpu.vector_store %arg7[%c112, %c0_17], %39 {strides = array<i32>} : memref<336x256xbf16, #tpu.memory_space<vmem>>, vector<16x128xbf16>,
    %41 = vector.extract_strided_slice %8 {offsets = [0, 16], sizes = [8, 128], strides = [1, 1]} : vector<8x168xbf16> to vector<8x128xbf16>
    %42 = vector.extract_strided_slice %8 {offsets = [0, 17], sizes = [8, 128], strides = [1, 1]} : vector<8x168xbf16> to vector<8x128xbf16>
    %43 = tpu.concatenate %41, %42 in 0 : vector<8x128xbf16>, vector<8x128xbf16> -> vector<16x128xbf16>
    %c128 = arith.constant 128 : index
    %c0_18 = arith.constant 0 : index
    %44 = vector.load %arg7[%c128, %c0_18] : memref<336x256xbf16, #tpu.memory_space<vmem>>, vector<16x128xbf16>
    tpu.vector_store %arg7[%c128, %c0_18], %43 {strides = array<i32>} : memref<336x256xbf16, #tpu.memory_space<vmem>>, vector<16x128xbf16>,
    %45 = vector.extract_strided_slice %8 {offsets = [0, 18], sizes = [8, 128], strides = [1, 1]} : vector<8x168xbf16> to vector<8x128xbf16>
    %46 = vector.extract_strided_slice %8 {offsets = [0, 19], sizes = [8, 128], strides = [1, 1]} : vector<8x168xbf16> to vector<8x128xbf16>
    %47 = tpu.concatenate %45, %46 in 0 : vector<8x128xbf16>, vector<8x128xbf16> -> vector<16x128xbf16>
    %c144 = arith.constant 144 : index
    %c0_19 = arith.constant 0 : index
    %48 = vector.load %arg7[%c144, %c0_19] : memref<336x256xbf16, #tpu.memory_space<vmem>>, vector<16x128xbf16>
    tpu.vector_store %arg7[%c144, %c0_19], %47 {strides = array<i32>} : memref<336x256xbf16, #tpu.memory_space<vmem>>, vector<16x128xbf16>,
    %49 = vector.extract_strided_slice %8 {offsets = [0, 20], sizes = [8, 128], strides = [1, 1]} : vector<8x168xbf16> to vector<8x128xbf16>
    %50 = vector.extract_strided_slice %8 {offsets = [0, 21], sizes = [8, 128], strides = [1, 1]} : vector<8x168xbf16> to vector<8x128xbf16>
    %51 = tpu.concatenate %49, %50 in 0 : vector<8x128xbf16>, vector<8x128xbf16> -> vector<16x128xbf16>
    %c160 = arith.constant 160 : index
    %c0_20 = arith.constant 0 : index
    %52 = vector.load %arg7[%c160, %c0_20] : memref<336x256xbf16, #tpu.memory_space<vmem>>, vector<16x128xbf16>
    tpu.vector_store %arg7[%c160, %c0_20], %51 {strides = array<i32>} : memref<336x256xbf16, #tpu.memory_space<vmem>>, vector<16x128xbf16>,
    %53 = vector.extract_strided_slice %8 {offsets = [0, 22], sizes = [8, 128], strides = [1, 1]} : vector<8x168xbf16> to vector<8x128xbf16>
    %54 = vector.extract_strided_slice %8 {offsets = [0, 23], sizes = [8, 128], strides = [1, 1]} : vector<8x168xbf16> to vector<8x128xbf16>
    %55 = tpu.concatenate %53, %54 in 0 : vector<8x128xbf16>, vector<8x128xbf16> -> vector<16x128xbf16>
    %c176 = arith.constant 176 : index
    %c0_21 = arith.constant 0 : index
    %56 = vector.load %arg7[%c176, %c0_21] : memref<336x256xbf16, #tpu.memory_space<vmem>>, vector<16x128xbf16>
    tpu.vector_store %arg7[%c176, %c0_21], %55 {strides = array<i32>} : memref<336x256xbf16, #tpu.memory_space<vmem>>, vector<16x128xbf16>,
    %57 = vector.extract_strided_slice %8 {offsets = [0, 24], sizes = [8, 128], strides = [1, 1]} : vector<8x168xbf16> to vector<8x128xbf16>
    %58 = vector.extract_strided_slice %8 {offsets = [0, 25], sizes = [8, 128], strides = [1, 1]} : vector<8x168xbf16> to vector<8x128xbf16>
    %59 = tpu.concatenate %57, %58 in 0 : vector<8x128xbf16>, vector<8x128xbf16> -> vector<16x128xbf16>
    %c192 = arith.constant 192 : index
    %c0_22 = arith.constant 0 : index
    %60 = vector.load %arg7[%c192, %c0_22] : memref<336x256xbf16, #tpu.memory_space<vmem>>, vector<16x128xbf16>
    tpu.vector_store %arg7[%c192, %c0_22], %59 {strides = array<i32>} : memref<336x256xbf16, #tpu.memory_space<vmem>>, vector<16x128xbf16>,
    %61 = vector.extract_strided_slice %8 {offsets = [0, 26], sizes = [8, 128], strides = [1, 1]} : vector<8x168xbf16> to vector<8x128xbf16>
    %62 = vector.extract_strided_slice %8 {offsets = [0, 27], sizes = [8, 128], strides = [1, 1]} : vector<8x168xbf16> to vector<8x128xbf16>
    %63 = tpu.concatenate %61, %62 in 0 : vector<8x128xbf16>, vector<8x128xbf16> -> vector<16x128xbf16>
    %c208 = arith.constant 208 : index
    %c0_23 = arith.constant 0 : index
    %64 = vector.load %arg7[%c208, %c0_23] : memref<336x256xbf16, #tpu.memory_space<vmem>>, vector<16x128xbf16>
    tpu.vector_store %arg7[%c208, %c0_23], %63 {strides = array<i32>} : memref<336x256xbf16, #tpu.memory_space<vmem>>, vector<16x128xbf16>,
    %65 = vector.extract_strided_slice %8 {offsets = [0, 28], sizes = [8, 128], strides = [1, 1]} : vector<8x168xbf16> to vector<8x128xbf16>
    %66 = vector.extract_strided_slice %8 {offsets = [0, 29], sizes = [8, 128], strides = [1, 1]} : vector<8x168xbf16> to vector<8x128xbf16>
    %67 = tpu.concatenate %65, %66 in 0 : vector<8x128xbf16>, vector<8x128xbf16> -> vector<16x128xbf16>
    %c224 = arith.constant 224 : index
    %c0_24 = arith.constant 0 : index
    %68 = vector.load %arg7[%c224, %c0_24] : memref<336x256xbf16, #tpu.memory_space<vmem>>, vector<16x128xbf16>
    tpu.vector_store %arg7[%c224, %c0_24], %67 {strides = array<i32>} : memref<336x256xbf16, #tpu.memory_space<vmem>>, vector<16x128xbf16>,
    %69 = vector.extract_strided_slice %8 {offsets = [0, 30], sizes = [8, 128], strides = [1, 1]} : vector<8x168xbf16> to vector<8x128xbf16>
    %70 = vector.extract_strided_slice %8 {offsets = [0, 31], sizes = [8, 128], strides = [1, 1]} : vector<8x168xbf16> to vector<8x128xbf16>
    %71 = tpu.concatenate %69, %70 in 0 : vector<8x128xbf16>, vector<8x128xbf16> -> vector<16x128xbf16>
    %c240 = arith.constant 240 : index
    %c0_25 = arith.constant 0 : index
    %72 = vector.load %arg7[%c240, %c0_25] : memref<336x256xbf16, #tpu.memory_space<vmem>>, vector<16x128xbf16>
    tpu.vector_store %arg7[%c240, %c0_25], %71 {strides = array<i32>} : memref<336x256xbf16, #tpu.memory_space<vmem>>, vector<16x128xbf16>,
    %73 = vector.extract_strided_slice %8 {offsets = [0, 32], sizes = [8, 128], strides = [1, 1]} : vector<8x168xbf16> to vector<8x128xbf16>
    %74 = vector.extract_strided_slice %8 {offsets = [0, 33], sizes = [8, 128], strides = [1, 1]} : vector<8x168xbf16> to vector<8x128xbf16>
    %75 = tpu.concatenate %73, %74 in 0 : vector<8x128xbf16>, vector<8x128xbf16> -> vector<16x128xbf16>
    %c256 = arith.constant 256 : index
    %c0_26 = arith.constant 0 : index
    %76 = vector.load %arg7[%c256, %c0_26] : memref<336x256xbf16, #tpu.memory_space<vmem>>, vector<16x128xbf16>
    tpu.vector_store %arg7[%c256, %c0_26], %75 {strides = array<i32>} : memref<336x256xbf16, #tpu.memory_space<vmem>>, vector<16x128xbf16>,
    %77 = vector.extract_strided_slice %8 {offsets = [0, 34], sizes = [8, 128], strides = [1, 1]} : vector<8x168xbf16> to vector<8x128xbf16>
    %78 = vector.extract_strided_slice %8 {offsets = [0, 35], sizes = [8, 128], strides = [1, 1]} : vector<8x168xbf16> to vector<8x128xbf16>
    %79 = tpu.concatenate %77, %78 in 0 : vector<8x128xbf16>, vector<8x128xbf16> -> vector<16x128xbf16>
    %c272 = arith.constant 272 : index
    %c0_27 = arith.constant 0 : index
    %80 = vector.load %arg7[%c272, %c0_27] : memref<336x256xbf16, #tpu.memory_space<vmem>>, vector<16x128xbf16>
    tpu.vector_store %arg7[%c272, %c0_27], %79 {strides = array<i32>} : memref<336x256xbf16, #tpu.memory_space<vmem>>, vector<16x128xbf16>,
    %81 = vector.extract_strided_slice %8 {offsets = [0, 36], sizes = [8, 128], strides = [1, 1]} : vector<8x168xbf16> to vector<8x128xbf16>
    %82 = vector.extract_strided_slice %8 {offsets = [0, 37], sizes = [8, 128], strides = [1, 1]} : vector<8x168xbf16> to vector<8x128xbf16>
    %83 = tpu.concatenate %81, %82 in 0 : vector<8x128xbf16>, vector<8x128xbf16> -> vector<16x128xbf16>
    %c288 = arith.constant 288 : index
    %c0_28 = arith.constant 0 : index
    %84 = vector.load %arg7[%c288, %c0_28] : memref<336x256xbf16, #tpu.memory_space<vmem>>, vector<16x128xbf16>
    tpu.vector_store %arg7[%c288, %c0_28], %83 {strides = array<i32>} : memref<336x256xbf16, #tpu.memory_space<vmem>>, vector<16x128xbf16>,
    %85 = vector.extract_strided_slice %8 {offsets = [0, 38], sizes = [8, 128], strides = [1, 1]} : vector<8x168xbf16> to vector<8x128xbf16>
    %86 = vector.extract_strided_slice %8 {offsets = [0, 39], sizes = [8, 128], strides = [1, 1]} : vector<8x168xbf16> to vector<8x128xbf16>
    %87 = tpu.concatenate %85, %86 in 0 : vector<8x128xbf16>, vector<8x128xbf16> -> vector<16x128xbf16>
    %c304 = arith.constant 304 : index
    %c0_29 = arith.constant 0 : index
    %88 = vector.load %arg7[%c304, %c0_29] : memref<336x256xbf16, #tpu.memory_space<vmem>>, vector<16x128xbf16>
    tpu.vector_store %arg7[%c304, %c0_29], %87 {strides = array<i32>} : memref<336x256xbf16, #tpu.memory_space<vmem>>, vector<16x128xbf16>,
    %89 = vector.extract_strided_slice %8 {offsets = [0, 40], sizes = [8, 128], strides = [1, 1]} : vector<8x168xbf16> to vector<8x128xbf16>
    %90 = vector.extract_strided_slice %8 {offsets = [0, 40], sizes = [8, 128], strides = [1, 1]} : vector<8x168xbf16> to vector<8x128xbf16>
    %91 = tpu.concatenate %89, %90 in 0 : vector<8x128xbf16>, vector<8x128xbf16> -> vector<16x128xbf16>
    %c320 = arith.constant 320 : index
    %c0_30 = arith.constant 0 : index
    %92 = vector.load %arg7[%c320, %c0_30] : memref<336x256xbf16, #tpu.memory_space<vmem>>, vector<16x128xbf16>
    tpu.vector_store %arg7[%c320, %c0_30], %91 {strides = array<i32>} : memref<336x256xbf16, #tpu.memory_space<vmem>>, vector<16x128xbf16>,
    %c1 = arith.constant 1 : index
    %c0_31 = arith.constant 0 : index
    %c0_32 = arith.constant 0 : index
    %93 = vector.load %arg1[%c1, %c0_31, %c0_32] : memref<2x8x128xf32, #tpu.memory_space<vmem>>, vector<1x8x128xf32>
    %94 = vector.shape_cast %93 : vector<1x8x128xf32> to vector<8x128xf32>
    %95 = arith.truncf %94 : vector<8x128xf32> to vector<8x128xbf16>
    %c0_33 = arith.constant 0 : index
    %c20_34 = arith.constant 20 : index
    %96 = vector.load %arg8[%c0_33, %c20_34] : memref<8x168xbf16, #tpu.memory_space<vmem>>, vector<8x128xbf16>
    tpu.vector_store %arg8[%c0_33, %c20_34], %95 {strides = array<i32>} : memref<8x168xbf16, #tpu.memory_space<vmem>>, vector<8x128xbf16>,
    %c0_35 = arith.constant 0 : index
    %c0_36 = arith.constant 0 : index
    %97 = vector.load %arg8[%c0_35, %c0_36] : memref<8x168xbf16, #tpu.memory_space<vmem>>, vector<8x168xbf16>
    %98 = vector.extract_strided_slice %97 {offsets = [0, 0], sizes = [8, 128], strides = [1, 1]} : vector<8x168xbf16> to vector<8x128xbf16>
    %99 = vector.extract_strided_slice %97 {offsets = [0, 1], sizes = [8, 128], strides = [1, 1]} : vector<8x168xbf16> to vector<8x128xbf16>
    %100 = tpu.concatenate %98, %99 in 0 : vector<8x128xbf16>, vector<8x128xbf16> -> vector<16x128xbf16>
    %c0_37 = arith.constant 0 : index
    %c128_38 = arith.constant 128 : index
    %101 = vector.load %arg7[%c0_37, %c128_38] : memref<336x256xbf16, #tpu.memory_space<vmem>>, vector<16x128xbf16>
    tpu.vector_store %arg7[%c0_37, %c128_38], %100 {strides = array<i32>} : memref<336x256xbf16, #tpu.memory_space<vmem>>, vector<16x128xbf16>,
    %102 = vector.extract_strided_slice %97 {offsets = [0, 2], sizes = [8, 128], strides = [1, 1]} : vector<8x168xbf16> to vector<8x128xbf16>
    %103 = vector.extract_strided_slice %97 {offsets = [0, 3], sizes = [8, 128], strides = [1, 1]} : vector<8x168xbf16> to vector<8x128xbf16>
    %104 = tpu.concatenate %102, %103 in 0 : vector<8x128xbf16>, vector<8x128xbf16> -> vector<16x128xbf16>
    %c16_39 = arith.constant 16 : index
    %c128_40 = arith.constant 128 : index
    %105 = vector.load %arg7[%c16_39, %c128_40] : memref<336x256xbf16, #tpu.memory_space<vmem>>, vector<16x128xbf16>
    tpu.vector_store %arg7[%c16_39, %c128_40], %104 {strides = array<i32>} : memref<336x256xbf16, #tpu.memory_space<vmem>>, vector<16x128xbf16>,
    %106 = vector.extract_strided_slice %97 {offsets = [0, 4], sizes = [8, 128], strides = [1, 1]} : vector<8x168xbf16> to vector<8x128xbf16>
    %107 = vector.extract_strided_slice %97 {offsets = [0, 5], sizes = [8, 128], strides = [1, 1]} : vector<8x168xbf16> to vector<8x128xbf16>
    %108 = tpu.concatenate %106, %107 in 0 : vector<8x128xbf16>, vector<8x128xbf16> -> vector<16x128xbf16>
    %c32_41 = arith.constant 32 : index
    %c128_42 = arith.constant 128 : index
    %109 = vector.load %arg7[%c32_41, %c128_42] : memref<336x256xbf16, #tpu.memory_space<vmem>>, vector<16x128xbf16>
    tpu.vector_store %arg7[%c32_41, %c128_42], %108 {strides = array<i32>} : memref<336x256xbf16, #tpu.memory_space<vmem>>, vector<16x128xbf16>,
    %110 = vector.extract_strided_slice %97 {offsets = [0, 6], sizes = [8, 128], strides = [1, 1]} : vector<8x168xbf16> to vector<8x128xbf16>
    %111 = vector.extract_strided_slice %97 {offsets = [0, 7], sizes = [8, 128], strides = [1, 1]} : vector<8x168xbf16> to vector<8x128xbf16>
    %112 = tpu.concatenate %110, %111 in 0 : vector<8x128xbf16>, vector<8x128xbf16> -> vector<16x128xbf16>
    %c48_43 = arith.constant 48 : index
    %c128_44 = arith.constant 128 : index
    %113 = vector.load %arg7[%c48_43, %c128_44] : memref<336x256xbf16, #tpu.memory_space<vmem>>, vector<16x128xbf16>
    tpu.vector_store %arg7[%c48_43, %c128_44], %112 {strides = array<i32>} : memref<336x256xbf16, #tpu.memory_space<vmem>>, vector<16x128xbf16>,
    %114 = vector.extract_strided_slice %97 {offsets = [0, 8], sizes = [8, 128], strides = [1, 1]} : vector<8x168xbf16> to vector<8x128xbf16>
    %115 = vector.extract_strided_slice %97 {offsets = [0, 9], sizes = [8, 128], strides = [1, 1]} : vector<8x168xbf16> to vector<8x128xbf16>
    %116 = tpu.concatenate %114, %115 in 0 : vector<8x128xbf16>, vector<8x128xbf16> -> vector<16x128xbf16>
    %c64_45 = arith.constant 64 : index
    %c128_46 = arith.constant 128 : index
    %117 = vector.load %arg7[%c64_45, %c128_46] : memref<336x256xbf16, #tpu.memory_space<vmem>>, vector<16x128xbf16>
    tpu.vector_store %arg7[%c64_45, %c128_46], %116 {strides = array<i32>} : memref<336x256xbf16, #tpu.memory_space<vmem>>, vector<16x128xbf16>,
    %118 = vector.extract_strided_slice %97 {offsets = [0, 10], sizes = [8, 128], strides = [1, 1]} : vector<8x168xbf16> to vector<8x128xbf16>
    %119 = vector.extract_strided_slice %97 {offsets = [0, 11], sizes = [8, 128], strides = [1, 1]} : vector<8x168xbf16> to vector<8x128xbf16>
    %120 = tpu.concatenate %118, %119 in 0 : vector<8x128xbf16>, vector<8x128xbf16> -> vector<16x128xbf16>
    %c80_47 = arith.constant 80 : index
    %c128_48 = arith.constant 128 : index
    %121 = vector.load %arg7[%c80_47, %c128_48] : memref<336x256xbf16, #tpu.memory_space<vmem>>, vector<16x128xbf16>
    tpu.vector_store %arg7[%c80_47, %c128_48], %120 {strides = array<i32>} : memref<336x256xbf16, #tpu.memory_space<vmem>>, vector<16x128xbf16>,
    %122 = vector.extract_strided_slice %97 {offsets = [0, 12], sizes = [8, 128], strides = [1, 1]} : vector<8x168xbf16> to vector<8x128xbf16>
    %123 = vector.extract_strided_slice %97 {offsets = [0, 13], sizes = [8, 128], strides = [1, 1]} : vector<8x168xbf16> to vector<8x128xbf16>
    %124 = tpu.concatenate %122, %123 in 0 : vector<8x128xbf16>, vector<8x128xbf16> -> vector<16x128xbf16>
    %c96_49 = arith.constant 96 : index
    %c128_50 = arith.constant 128 : index
    %125 = vector.load %arg7[%c96_49, %c128_50] : memref<336x256xbf16, #tpu.memory_space<vmem>>, vector<16x128xbf16>
    tpu.vector_store %arg7[%c96_49, %c128_50], %124 {strides = array<i32>} : memref<336x256xbf16, #tpu.memory_space<vmem>>, vector<16x128xbf16>,
    %126 = vector.extract_strided_slice %97 {offsets = [0, 14], sizes = [8, 128], strides = [1, 1]} : vector<8x168xbf16> to vector<8x128xbf16>
    %127 = vector.extract_strided_slice %97 {offsets = [0, 15], sizes = [8, 128], strides = [1, 1]} : vector<8x168xbf16> to vector<8x128xbf16>
    %128 = tpu.concatenate %126, %127 in 0 : vector<8x128xbf16>, vector<8x128xbf16> -> vector<16x128xbf16>
    %c112_51 = arith.constant 112 : index
    %c128_52 = arith.constant 128 : index
    %129 = vector.load %arg7[%c112_51, %c128_52] : memref<336x256xbf16, #tpu.memory_space<vmem>>, vector<16x128xbf16>
    tpu.vector_store %arg7[%c112_51, %c128_52], %128 {strides = array<i32>} : memref<336x256xbf16, #tpu.memory_space<vmem>>, vector<16x128xbf16>,
    %130 = vector.extract_strided_slice %97 {offsets = [0, 16], sizes = [8, 128], strides = [1, 1]} : vector<8x168xbf16> to vector<8x128xbf16>
    %131 = vector.extract_strided_slice %97 {offsets = [0, 17], sizes = [8, 128], strides = [1, 1]} : vector<8x168xbf16> to vector<8x128xbf16>
    %132 = tpu.concatenate %130, %131 in 0 : vector<8x128xbf16>, vector<8x128xbf16> -> vector<16x128xbf16>
    %c128_53 = arith.constant 128 : index
    %c128_54 = arith.constant 128 : index
    %133 = vector.load %arg7[%c128_53, %c128_54] : memref<336x256xbf16, #tpu.memory_space<vmem>>, vector<16x128xbf16>
    tpu.vector_store %arg7[%c128_53, %c128_54], %132 {strides = array<i32>} : memref<336x256xbf16, #tpu.memory_space<vmem>>, vector<16x128xbf16>,
    %134 = vector.extract_strided_slice %97 {offsets = [0, 18], sizes = [8, 128], strides = [1, 1]} : vector<8x168xbf16> to vector<8x128xbf16>
    %135 = vector.extract_strided_slice %97 {offsets = [0, 19], sizes = [8, 128], strides = [1, 1]} : vector<8x168xbf16> to vector<8x128xbf16>
    %136 = tpu.concatenate %134, %135 in 0 : vector<8x128xbf16>, vector<8x128xbf16> -> vector<16x128xbf16>
    %c144_55 = arith.constant 144 : index
    %c128_56 = arith.constant 128 : index
    %137 = vector.load %arg7[%c144_55, %c128_56] : memref<336x256xbf16, #tpu.memory_space<vmem>>, vector<16x128xbf16>
    tpu.vector_store %arg7[%c144_55, %c128_56], %136 {strides = array<i32>} : memref<336x256xbf16, #tpu.memory_space<vmem>>, vector<16x128xbf16>,
    %138 = vector.extract_strided_slice %97 {offsets = [0, 20], sizes = [8, 128], strides = [1, 1]} : vector<8x168xbf16> to vector<8x128xbf16>
    %139 = vector.extract_strided_slice %97 {offsets = [0, 21], sizes = [8, 128], strides = [1, 1]} : vector<8x168xbf16> to vector<8x128xbf16>
    %140 = tpu.concatenate %138, %139 in 0 : vector<8x128xbf16>, vector<8x128xbf16> -> vector<16x128xbf16>
    %c160_57 = arith.constant 160 : index
    %c128_58 = arith.constant 128 : index
    %141 = vector.load %arg7[%c160_57, %c128_58] : memref<336x256xbf16, #tpu.memory_space<vmem>>, vector<16x128xbf16>
    tpu.vector_store %arg7[%c160_57, %c128_58], %140 {strides = array<i32>} : memref<336x256xbf16, #tpu.memory_space<vmem>>, vector<16x128xbf16>,
    %142 = vector.extract_strided_slice %97 {offsets = [0, 22], sizes = [8, 128], strides = [1, 1]} : vector<8x168xbf16> to vector<8x128xbf16>
    %143 = vector.extract_strided_slice %97 {offsets = [0, 23], sizes = [8, 128], strides = [1, 1]} : vector<8x168xbf16> to vector<8x128xbf16>
    %144 = tpu.concatenate %142, %143 in 0 : vector<8x128xbf16>, vector<8x128xbf16> -> vector<16x128xbf16>
    %c176_59 = arith.constant 176 : index
    %c128_60 = arith.constant 128 : index
    %145 = vector.load %arg7[%c176_59, %c128_60] : memref<336x256xbf16, #tpu.memory_space<vmem>>, vector<16x128xbf16>
    tpu.vector_store %arg7[%c176_59, %c128_60], %144 {strides = array<i32>} : memref<336x256xbf16, #tpu.memory_space<vmem>>, vector<16x128xbf16>,
    %146 = vector.extract_strided_slice %97 {offsets = [0, 24], sizes = [8, 128], strides = [1, 1]} : vector<8x168xbf16> to vector<8x128xbf16>
    %147 = vector.extract_strided_slice %97 {offsets = [0, 25], sizes = [8, 128], strides = [1, 1]} : vector<8x168xbf16> to vector<8x128xbf16>
    %148 = tpu.concatenate %146, %147 in 0 : vector<8x128xbf16>, vector<8x128xbf16> -> vector<16x128xbf16>
    %c192_61 = arith.constant 192 : index
    %c128_62 = arith.constant 128 : index
    %149 = vector.load %arg7[%c192_61, %c128_62] : memref<336x256xbf16, #tpu.memory_space<vmem>>, vector<16x128xbf16>
    tpu.vector_store %arg7[%c192_61, %c128_62], %148 {strides = array<i32>} : memref<336x256xbf16, #tpu.memory_space<vmem>>, vector<16x128xbf16>,
    %150 = vector.extract_strided_slice %97 {offsets = [0, 26], sizes = [8, 128], strides = [1, 1]} : vector<8x168xbf16> to vector<8x128xbf16>
    %151 = vector.extract_strided_slice %97 {offsets = [0, 27], sizes = [8, 128], strides = [1, 1]} : vector<8x168xbf16> to vector<8x128xbf16>
    %152 = tpu.concatenate %150, %151 in 0 : vector<8x128xbf16>, vector<8x128xbf16> -> vector<16x128xbf16>
    %c208_63 = arith.constant 208 : index
    %c128_64 = arith.constant 128 : index
    %153 = vector.load %arg7[%c208_63, %c128_64] : memref<336x256xbf16, #tpu.memory_space<vmem>>, vector<16x128xbf16>
    tpu.vector_store %arg7[%c208_63, %c128_64], %152 {strides = array<i32>} : memref<336x256xbf16, #tpu.memory_space<vmem>>, vector<16x128xbf16>,
    %154 = vector.extract_strided_slice %97 {offsets = [0, 28], sizes = [8, 128], strides = [1, 1]} : vector<8x168xbf16> to vector<8x128xbf16>
    %155 = vector.extract_strided_slice %97 {offsets = [0, 29], sizes = [8, 128], strides = [1, 1]} : vector<8x168xbf16> to vector<8x128xbf16>
    %156 = tpu.concatenate %154, %155 in 0 : vector<8x128xbf16>, vector<8x128xbf16> -> vector<16x128xbf16>
    %c224_65 = arith.constant 224 : index
    %c128_66 = arith.constant 128 : index
    %157 = vector.load %arg7[%c224_65, %c128_66] : memref<336x256xbf16, #tpu.memory_space<vmem>>, vector<16x128xbf16>
    tpu.vector_store %arg7[%c224_65, %c128_66], %156 {strides = array<i32>} : memref<336x256xbf16, #tpu.memory_space<vmem>>, vector<16x128xbf16>,
    %158 = vector.extract_strided_slice %97 {offsets = [0, 30], sizes = [8, 128], strides = [1, 1]} : vector<8x168xbf16> to vector<8x128xbf16>
    %159 = vector.extract_strided_slice %97 {offsets = [0, 31], sizes = [8, 128], strides = [1, 1]} : vector<8x168xbf16> to vector<8x128xbf16>
    %160 = tpu.concatenate %158, %159 in 0 : vector<8x128xbf16>, vector<8x128xbf16> -> vector<16x128xbf16>
    %c240_67 = arith.constant 240 : index
    %c128_68 = arith.constant 128 : index
    %161 = vector.load %arg7[%c240_67, %c128_68] : memref<336x256xbf16, #tpu.memory_space<vmem>>, vector<16x128xbf16>
    tpu.vector_store %arg7[%c240_67, %c128_68], %160 {strides = array<i32>} : memref<336x256xbf16, #tpu.memory_space<vmem>>, vector<16x128xbf16>,
    %162 = vector.extract_strided_slice %97 {offsets = [0, 32], sizes = [8, 128], strides = [1, 1]} : vector<8x168xbf16> to vector<8x128xbf16>
    %163 = vector.extract_strided_slice %97 {offsets = [0, 33], sizes = [8, 128], strides = [1, 1]} : vector<8x168xbf16> to vector<8x128xbf16>
    %164 = tpu.concatenate %162, %163 in 0 : vector<8x128xbf16>, vector<8x128xbf16> -> vector<16x128xbf16>
    %c256_69 = arith.constant 256 : index
    %c128_70 = arith.constant 128 : index
    %165 = vector.load %arg7[%c256_69, %c128_70] : memref<336x256xbf16, #tpu.memory_space<vmem>>, vector<16x128xbf16>
    tpu.vector_store %arg7[%c256_69, %c128_70], %164 {strides = array<i32>} : memref<336x256xbf16, #tpu.memory_space<vmem>>, vector<16x128xbf16>,
    %166 = vector.extract_strided_slice %97 {offsets = [0, 34], sizes = [8, 128], strides = [1, 1]} : vector<8x168xbf16> to vector<8x128xbf16>
    %167 = vector.extract_strided_slice %97 {offsets = [0, 35], sizes = [8, 128], strides = [1, 1]} : vector<8x168xbf16> to vector<8x128xbf16>
    %168 = tpu.concatenate %166, %167 in 0 : vector<8x128xbf16>, vector<8x128xbf16> -> vector<16x128xbf16>
    %c272_71 = arith.constant 272 : index
    %c128_72 = arith.constant 128 : index
    %169 = vector.load %arg7[%c272_71, %c128_72] : memref<336x256xbf16, #tpu.memory_space<vmem>>, vector<16x128xbf16>
    tpu.vector_store %arg7[%c272_71, %c128_72], %168 {strides = array<i32>} : memref<336x256xbf16, #tpu.memory_space<vmem>>, vector<16x128xbf16>,
    %170 = vector.extract_strided_slice %97 {offsets = [0, 36], sizes = [8, 128], strides = [1, 1]} : vector<8x168xbf16> to vector<8x128xbf16>
    %171 = vector.extract_strided_slice %97 {offsets = [0, 37], sizes = [8, 128], strides = [1, 1]} : vector<8x168xbf16> to vector<8x128xbf16>
    %172 = tpu.concatenate %170, %171 in 0 : vector<8x128xbf16>, vector<8x128xbf16> -> vector<16x128xbf16>
    %c288_73 = arith.constant 288 : index
    %c128_74 = arith.constant 128 : index
    %173 = vector.load %arg7[%c288_73, %c128_74] : memref<336x256xbf16, #tpu.memory_space<vmem>>, vector<16x128xbf16>
    tpu.vector_store %arg7[%c288_73, %c128_74], %172 {strides = array<i32>} : memref<336x256xbf16, #tpu.memory_space<vmem>>, vector<16x128xbf16>,
    %174 = vector.extract_strided_slice %97 {offsets = [0, 38], sizes = [8, 128], strides = [1, 1]} : vector<8x168xbf16> to vector<8x128xbf16>
    %175 = vector.extract_strided_slice %97 {offsets = [0, 39], sizes = [8, 128], strides = [1, 1]} : vector<8x168xbf16> to vector<8x128xbf16>
    %176 = tpu.concatenate %174, %175 in 0 : vector<8x128xbf16>, vector<8x128xbf16> -> vector<16x128xbf16>
    %c304_75 = arith.constant 304 : index
    %c128_76 = arith.constant 128 : index
    %177 = vector.load %arg7[%c304_75, %c128_76] : memref<336x256xbf16, #tpu.memory_space<vmem>>, vector<16x128xbf16>
    tpu.vector_store %arg7[%c304_75, %c128_76], %176 {strides = array<i32>} : memref<336x256xbf16, #tpu.memory_space<vmem>>, vector<16x128xbf16>,
    %178 = vector.extract_strided_slice %97 {offsets = [0, 40], sizes = [8, 128], strides = [1, 1]} : vector<8x168xbf16> to vector<8x128xbf16>
    %179 = vector.extract_strided_slice %97 {offsets = [0, 40], sizes = [8, 128], strides = [1, 1]} : vector<8x168xbf16> to vector<8x128xbf16>
    %180 = tpu.concatenate %178, %179 in 0 : vector<8x128xbf16>, vector<8x128xbf16> -> vector<16x128xbf16>
    %c320_77 = arith.constant 320 : index
    %c128_78 = arith.constant 128 : index
    %181 = vector.load %arg7[%c320_77, %c128_78] : memref<336x256xbf16, #tpu.memory_space<vmem>>, vector<16x128xbf16>
    tpu.vector_store %arg7[%c320_77, %c128_78], %180 {strides = array<i32>} : memref<336x256xbf16, #tpu.memory_space<vmem>>, vector<16x128xbf16>,
    %c0_79 = arith.constant 0 : index
    %c0_80 = arith.constant 0 : index
    %182 = vector.load %arg2[%c0_79, %c0_80] : memref<8x336xbf16, #tpu.memory_space<vmem>>, vector<8x336xbf16>
    %c0_81 = arith.constant 0 : index
    %c0_82 = arith.constant 0 : index
    %183 = vector.load %arg7[%c0_81, %c0_82] : memref<336x256xbf16, #tpu.memory_space<vmem>>, vector<336x256xbf16>
    %cst_83 = arith.constant dense<0.000000e+00> : vector<8x256xf32>
    %184 = tpu.matmul %182, %183, %cst_83 {dimension_numbers = #tpu.dot_dimension_numbers<[1], [0], [0], [1], [0, 0, 1, 1], [], []>} : vector<8x336xbf16>, vector<336x256xbf16>, vector<8x256xf32> -> vector<8x256xf32>
    %c0_84 = arith.constant 0 : index
    %185 = memref.load %arg5[%c0_84] : memref<2xf32, #tpu.memory_space<smem>>
    %c0_85 = arith.constant 0 : index
    %c0_86 = arith.constant 0 : index
    %186 = vector.load %arg4[%c0_85, %c0_86] : memref<8x2xf32, #tpu.memory_space<vmem>>, vector<8x1xf32>
    %187 = vector.broadcast %186 : vector<8x1xf32> to vector<8x256xf32>
    %188 = arith.addf %184, %187 : vector<8x256xf32>
    %cst_87 = arith.constant 0.000000e+00 : f32
    %189 = vector.broadcast %cst_87 : f32 to vector<8x256xf32>
    %190 = arith.cmpf oge, %188, %189 : vector<8x256xf32>
    %191 = vector.broadcast %185 : f32 to vector<8x256xf32>
    %192 = arith.mulf %191, %188 : vector<8x256xf32>
    %193 = arith.select %190, %188, %192 : vector<8x256xi1>, vector<8x256xf32>
    %194 = vector.extract_strided_slice %193 {offsets = [0, 0], sizes = [8, 128], strides = [1, 1]} : vector<8x256xf32> to vector<8x128xf32>
    %195 = arith.truncf %194 : vector<8x128xf32> to vector<8x128xbf16>
    %c0_88 = arith.constant 0 : index
    %c20_89 = arith.constant 20 : index
    %196 = vector.load %arg8[%c0_88, %c20_89] : memref<8x168xbf16, #tpu.memory_space<vmem>>, vector<8x128xbf16>
    tpu.vector_store %arg8[%c0_88, %c20_89], %195 {strides = array<i32>} : memref<8x168xbf16, #tpu.memory_space<vmem>>, vector<8x128xbf16>,
    %c0_90 = arith.constant 0 : index
    %c0_91 = arith.constant 0 : index
    %197 = vector.load %arg8[%c0_90, %c0_91] : memref<8x168xbf16, #tpu.memory_space<vmem>>, vector<8x168xbf16>
    %198 = vector.extract_strided_slice %197 {offsets = [0, 0], sizes = [8, 128], strides = [1, 1]} : vector<8x168xbf16> to vector<8x128xbf16>
    %199 = vector.extract_strided_slice %197 {offsets = [0, 1], sizes = [8, 128], strides = [1, 1]} : vector<8x168xbf16> to vector<8x128xbf16>
    %200 = tpu.concatenate %198, %199 in 0 : vector<8x128xbf16>, vector<8x128xbf16> -> vector<16x128xbf16>
    %c0_92 = arith.constant 0 : index
    %c0_93 = arith.constant 0 : index
    %201 = vector.load %arg7[%c0_92, %c0_93] : memref<336x256xbf16, #tpu.memory_space<vmem>>, vector<16x128xbf16>
    tpu.vector_store %arg7[%c0_92, %c0_93], %200 {strides = array<i32>} : memref<336x256xbf16, #tpu.memory_space<vmem>>, vector<16x128xbf16>,
    %202 = vector.extract_strided_slice %197 {offsets = [0, 2], sizes = [8, 128], strides = [1, 1]} : vector<8x168xbf16> to vector<8x128xbf16>
    %203 = vector.extract_strided_slice %197 {offsets = [0, 3], sizes = [8, 128], strides = [1, 1]} : vector<8x168xbf16> to vector<8x128xbf16>
    %204 = tpu.concatenate %202, %203 in 0 : vector<8x128xbf16>, vector<8x128xbf16> -> vector<16x128xbf16>
    %c16_94 = arith.constant 16 : index
    %c0_95 = arith.constant 0 : index
    %205 = vector.load %arg7[%c16_94, %c0_95] : memref<336x256xbf16, #tpu.memory_space<vmem>>, vector<16x128xbf16>
    tpu.vector_store %arg7[%c16_94, %c0_95], %204 {strides = array<i32>} : memref<336x256xbf16, #tpu.memory_space<vmem>>, vector<16x128xbf16>,
    %206 = vector.extract_strided_slice %197 {offsets = [0, 4], sizes = [8, 128], strides = [1, 1]} : vector<8x168xbf16> to vector<8x128xbf16>
    %207 = vector.extract_strided_slice %197 {offsets = [0, 5], sizes = [8, 128], strides = [1, 1]} : vector<8x168xbf16> to vector<8x128xbf16>
    %208 = tpu.concatenate %206, %207 in 0 : vector<8x128xbf16>, vector<8x128xbf16> -> vector<16x128xbf16>
    %c32_96 = arith.constant 32 : index
    %c0_97 = arith.constant 0 : index
    %209 = vector.load %arg7[%c32_96, %c0_97] : memref<336x256xbf16, #tpu.memory_space<vmem>>, vector<16x128xbf16>
    tpu.vector_store %arg7[%c32_96, %c0_97], %208 {strides = array<i32>} : memref<336x256xbf16, #tpu.memory_space<vmem>>, vector<16x128xbf16>,
    %210 = vector.extract_strided_slice %197 {offsets = [0, 6], sizes = [8, 128], strides = [1, 1]} : vector<8x168xbf16> to vector<8x128xbf16>
    %211 = vector.extract_strided_slice %197 {offsets = [0, 7], sizes = [8, 128], strides = [1, 1]} : vector<8x168xbf16> to vector<8x128xbf16>
    %212 = tpu.concatenate %210, %211 in 0 : vector<8x128xbf16>, vector<8x128xbf16> -> vector<16x128xbf16>
    %c48_98 = arith.constant 48 : index
    %c0_99 = arith.constant 0 : index
    %213 = vector.load %arg7[%c48_98, %c0_99] : memref<336x256xbf16, #tpu.memory_space<vmem>>, vector<16x128xbf16>
    tpu.vector_store %arg7[%c48_98, %c0_99], %212 {strides = array<i32>} : memref<336x256xbf16, #tpu.memory_space<vmem>>, vector<16x128xbf16>,
    %214 = vector.extract_strided_slice %197 {offsets = [0, 8], sizes = [8, 128], strides = [1, 1]} : vector<8x168xbf16> to vector<8x128xbf16>
    %215 = vector.extract_strided_slice %197 {offsets = [0, 9], sizes = [8, 128], strides = [1, 1]} : vector<8x168xbf16> to vector<8x128xbf16>
    %216 = tpu.concatenate %214, %215 in 0 : vector<8x128xbf16>, vector<8x128xbf16> -> vector<16x128xbf16>
    %c64_100 = arith.constant 64 : index
    %c0_101 = arith.constant 0 : index
    %217 = vector.load %arg7[%c64_100, %c0_101] : memref<336x256xbf16, #tpu.memory_space<vmem>>, vector<16x128xbf16>
    tpu.vector_store %arg7[%c64_100, %c0_101], %216 {strides = array<i32>} : memref<336x256xbf16, #tpu.memory_space<vmem>>, vector<16x128xbf16>,
    %218 = vector.extract_strided_slice %197 {offsets = [0, 10], sizes = [8, 128], strides = [1, 1]} : vector<8x168xbf16> to vector<8x128xbf16>
    %219 = vector.extract_strided_slice %197 {offsets = [0, 11], sizes = [8, 128], strides = [1, 1]} : vector<8x168xbf16> to vector<8x128xbf16>
    %220 = tpu.concatenate %218, %219 in 0 : vector<8x128xbf16>, vector<8x128xbf16> -> vector<16x128xbf16>
    %c80_102 = arith.constant 80 : index
    %c0_103 = arith.constant 0 : index
    %221 = vector.load %arg7[%c80_102, %c0_103] : memref<336x256xbf16, #tpu.memory_space<vmem>>, vector<16x128xbf16>
    tpu.vector_store %arg7[%c80_102, %c0_103], %220 {strides = array<i32>} : memref<336x256xbf16, #tpu.memory_space<vmem>>, vector<16x128xbf16>,
    %222 = vector.extract_strided_slice %197 {offsets = [0, 12], sizes = [8, 128], strides = [1, 1]} : vector<8x168xbf16> to vector<8x128xbf16>
    %223 = vector.extract_strided_slice %197 {offsets = [0, 13], sizes = [8, 128], strides = [1, 1]} : vector<8x168xbf16> to vector<8x128xbf16>
    %224 = tpu.concatenate %222, %223 in 0 : vector<8x128xbf16>, vector<8x128xbf16> -> vector<16x128xbf16>
    %c96_104 = arith.constant 96 : index
    %c0_105 = arith.constant 0 : index
    %225 = vector.load %arg7[%c96_104, %c0_105] : memref<336x256xbf16, #tpu.memory_space<vmem>>, vector<16x128xbf16>
    tpu.vector_store %arg7[%c96_104, %c0_105], %224 {strides = array<i32>} : memref<336x256xbf16, #tpu.memory_space<vmem>>, vector<16x128xbf16>,
    %226 = vector.extract_strided_slice %197 {offsets = [0, 14], sizes = [8, 128], strides = [1, 1]} : vector<8x168xbf16> to vector<8x128xbf16>
    %227 = vector.extract_strided_slice %197 {offsets = [0, 15], sizes = [8, 128], strides = [1, 1]} : vector<8x168xbf16> to vector<8x128xbf16>
    %228 = tpu.concatenate %226, %227 in 0 : vector<8x128xbf16>, vector<8x128xbf16> -> vector<16x128xbf16>
    %c112_106 = arith.constant 112 : index
    %c0_107 = arith.constant 0 : index
    %229 = vector.load %arg7[%c112_106, %c0_107] : memref<336x256xbf16, #tpu.memory_space<vmem>>, vector<16x128xbf16>
    tpu.vector_store %arg7[%c112_106, %c0_107], %228 {strides = array<i32>} : memref<336x256xbf16, #tpu.memory_space<vmem>>, vector<16x128xbf16>,
    %230 = vector.extract_strided_slice %197 {offsets = [0, 16], sizes = [8, 128], strides = [1, 1]} : vector<8x168xbf16> to vector<8x128xbf16>
    %231 = vector.extract_strided_slice %197 {offsets = [0, 17], sizes = [8, 128], strides = [1, 1]} : vector<8x168xbf16> to vector<8x128xbf16>
    %232 = tpu.concatenate %230, %231 in 0 : vector<8x128xbf16>, vector<8x128xbf16> -> vector<16x128xbf16>
    %c128_108 = arith.constant 128 : index
    %c0_109 = arith.constant 0 : index
    %233 = vector.load %arg7[%c128_108, %c0_109] : memref<336x256xbf16, #tpu.memory_space<vmem>>, vector<16x128xbf16>
    tpu.vector_store %arg7[%c128_108, %c0_109], %232 {strides = array<i32>} : memref<336x256xbf16, #tpu.memory_space<vmem>>, vector<16x128xbf16>,
    %234 = vector.extract_strided_slice %197 {offsets = [0, 18], sizes = [8, 128], strides = [1, 1]} : vector<8x168xbf16> to vector<8x128xbf16>
    %235 = vector.extract_strided_slice %197 {offsets = [0, 19], sizes = [8, 128], strides = [1, 1]} : vector<8x168xbf16> to vector<8x128xbf16>
    %236 = tpu.concatenate %234, %235 in 0 : vector<8x128xbf16>, vector<8x128xbf16> -> vector<16x128xbf16>
    %c144_110 = arith.constant 144 : index
    %c0_111 = arith.constant 0 : index
    %237 = vector.load %arg7[%c144_110, %c0_111] : memref<336x256xbf16, #tpu.memory_space<vmem>>, vector<16x128xbf16>
    tpu.vector_store %arg7[%c144_110, %c0_111], %236 {strides = array<i32>} : memref<336x256xbf16, #tpu.memory_space<vmem>>, vector<16x128xbf16>,
    %238 = vector.extract_strided_slice %197 {offsets = [0, 20], sizes = [8, 128], strides = [1, 1]} : vector<8x168xbf16> to vector<8x128xbf16>
    %239 = vector.extract_strided_slice %197 {offsets = [0, 21], sizes = [8, 128], strides = [1, 1]} : vector<8x168xbf16> to vector<8x128xbf16>
    %240 = tpu.concatenate %238, %239 in 0 : vector<8x128xbf16>, vector<8x128xbf16> -> vector<16x128xbf16>
    %c160_112 = arith.constant 160 : index
    %c0_113 = arith.constant 0 : index
    %241 = vector.load %arg7[%c160_112, %c0_113] : memref<336x256xbf16, #tpu.memory_space<vmem>>, vector<16x128xbf16>
    tpu.vector_store %arg7[%c160_112, %c0_113], %240 {strides = array<i32>} : memref<336x256xbf16, #tpu.memory_space<vmem>>, vector<16x128xbf16>,
    %242 = vector.extract_strided_slice %197 {offsets = [0, 22], sizes = [8, 128], strides = [1, 1]} : vector<8x168xbf16> to vector<8x128xbf16>
    %243 = vector.extract_strided_slice %197 {offsets = [0, 23], sizes = [8, 128], strides = [1, 1]} : vector<8x168xbf16> to vector<8x128xbf16>
    %244 = tpu.concatenate %242, %243 in 0 : vector<8x128xbf16>, vector<8x128xbf16> -> vector<16x128xbf16>
    %c176_114 = arith.constant 176 : index
    %c0_115 = arith.constant 0 : index
    %245 = vector.load %arg7[%c176_114, %c0_115] : memref<336x256xbf16, #tpu.memory_space<vmem>>, vector<16x128xbf16>
    tpu.vector_store %arg7[%c176_114, %c0_115], %244 {strides = array<i32>} : memref<336x256xbf16, #tpu.memory_space<vmem>>, vector<16x128xbf16>,
    %246 = vector.extract_strided_slice %197 {offsets = [0, 24], sizes = [8, 128], strides = [1, 1]} : vector<8x168xbf16> to vector<8x128xbf16>
    %247 = vector.extract_strided_slice %197 {offsets = [0, 25], sizes = [8, 128], strides = [1, 1]} : vector<8x168xbf16> to vector<8x128xbf16>
    %248 = tpu.concatenate %246, %247 in 0 : vector<8x128xbf16>, vector<8x128xbf16> -> vector<16x128xbf16>
    %c192_116 = arith.constant 192 : index
    %c0_117 = arith.constant 0 : index
    %249 = vector.load %arg7[%c192_116, %c0_117] : memref<336x256xbf16, #tpu.memory_space<vmem>>, vector<16x128xbf16>
    tpu.vector_store %arg7[%c192_116, %c0_117], %248 {strides = array<i32>} : memref<336x256xbf16, #tpu.memory_space<vmem>>, vector<16x128xbf16>,
    %250 = vector.extract_strided_slice %197 {offsets = [0, 26], sizes = [8, 128], strides = [1, 1]} : vector<8x168xbf16> to vector<8x128xbf16>
    %251 = vector.extract_strided_slice %197 {offsets = [0, 27], sizes = [8, 128], strides = [1, 1]} : vector<8x168xbf16> to vector<8x128xbf16>
    %252 = tpu.concatenate %250, %251 in 0 : vector<8x128xbf16>, vector<8x128xbf16> -> vector<16x128xbf16>
    %c208_118 = arith.constant 208 : index
    %c0_119 = arith.constant 0 : index
    %253 = vector.load %arg7[%c208_118, %c0_119] : memref<336x256xbf16, #tpu.memory_space<vmem>>, vector<16x128xbf16>
    tpu.vector_store %arg7[%c208_118, %c0_119], %252 {strides = array<i32>} : memref<336x256xbf16, #tpu.memory_space<vmem>>, vector<16x128xbf16>,
    %254 = vector.extract_strided_slice %197 {offsets = [0, 28], sizes = [8, 128], strides = [1, 1]} : vector<8x168xbf16> to vector<8x128xbf16>
    %255 = vector.extract_strided_slice %197 {offsets = [0, 29], sizes = [8, 128], strides = [1, 1]} : vector<8x168xbf16> to vector<8x128xbf16>
    %256 = tpu.concatenate %254, %255 in 0 : vector<8x128xbf16>, vector<8x128xbf16> -> vector<16x128xbf16>
    %c224_120 = arith.constant 224 : index
    %c0_121 = arith.constant 0 : index
    %257 = vector.load %arg7[%c224_120, %c0_121] : memref<336x256xbf16, #tpu.memory_space<vmem>>, vector<16x128xbf16>
    tpu.vector_store %arg7[%c224_120, %c0_121], %256 {strides = array<i32>} : memref<336x256xbf16, #tpu.memory_space<vmem>>, vector<16x128xbf16>,
    %258 = vector.extract_strided_slice %197 {offsets = [0, 30], sizes = [8, 128], strides = [1, 1]} : vector<8x168xbf16> to vector<8x128xbf16>
    %259 = vector.extract_strided_slice %197 {offsets = [0, 31], sizes = [8, 128], strides = [1, 1]} : vector<8x168xbf16> to vector<8x128xbf16>
    %260 = tpu.concatenate %258, %259 in 0 : vector<8x128xbf16>, vector<8x128xbf16> -> vector<16x128xbf16>
    %c240_122 = arith.constant 240 : index
    %c0_123 = arith.constant 0 : index
    %261 = vector.load %arg7[%c240_122, %c0_123] : memref<336x256xbf16, #tpu.memory_space<vmem>>, vector<16x128xbf16>
    tpu.vector_store %arg7[%c240_122, %c0_123], %260 {strides = array<i32>} : memref<336x256xbf16, #tpu.memory_space<vmem>>, vector<16x128xbf16>,
    %262 = vector.extract_strided_slice %197 {offsets = [0, 32], sizes = [8, 128], strides = [1, 1]} : vector<8x168xbf16> to vector<8x128xbf16>
    %263 = vector.extract_strided_slice %197 {offsets = [0, 33], sizes = [8, 128], strides = [1, 1]} : vector<8x168xbf16> to vector<8x128xbf16>
    %264 = tpu.concatenate %262, %263 in 0 : vector<8x128xbf16>, vector<8x128xbf16> -> vector<16x128xbf16>
    %c256_124 = arith.constant 256 : index
    %c0_125 = arith.constant 0 : index
    %265 = vector.load %arg7[%c256_124, %c0_125] : memref<336x256xbf16, #tpu.memory_space<vmem>>, vector<16x128xbf16>
    tpu.vector_store %arg7[%c256_124, %c0_125], %264 {strides = array<i32>} : memref<336x256xbf16, #tpu.memory_space<vmem>>, vector<16x128xbf16>,
    %266 = vector.extract_strided_slice %197 {offsets = [0, 34], sizes = [8, 128], strides = [1, 1]} : vector<8x168xbf16> to vector<8x128xbf16>
    %267 = vector.extract_strided_slice %197 {offsets = [0, 35], sizes = [8, 128], strides = [1, 1]} : vector<8x168xbf16> to vector<8x128xbf16>
    %268 = tpu.concatenate %266, %267 in 0 : vector<8x128xbf16>, vector<8x128xbf16> -> vector<16x128xbf16>
    %c272_126 = arith.constant 272 : index
    %c0_127 = arith.constant 0 : index
    %269 = vector.load %arg7[%c272_126, %c0_127] : memref<336x256xbf16, #tpu.memory_space<vmem>>, vector<16x128xbf16>
    tpu.vector_store %arg7[%c272_126, %c0_127], %268 {strides = array<i32>} : memref<336x256xbf16, #tpu.memory_space<vmem>>, vector<16x128xbf16>,
    %270 = vector.extract_strided_slice %197 {offsets = [0, 36], sizes = [8, 128], strides = [1, 1]} : vector<8x168xbf16> to vector<8x128xbf16>
    %271 = vector.extract_strided_slice %197 {offsets = [0, 37], sizes = [8, 128], strides = [1, 1]} : vector<8x168xbf16> to vector<8x128xbf16>
    %272 = tpu.concatenate %270, %271 in 0 : vector<8x128xbf16>, vector<8x128xbf16> -> vector<16x128xbf16>
    %c288_128 = arith.constant 288 : index
    %c0_129 = arith.constant 0 : index
    %273 = vector.load %arg7[%c288_128, %c0_129] : memref<336x256xbf16, #tpu.memory_space<vmem>>, vector<16x128xbf16>
    tpu.vector_store %arg7[%c288_128, %c0_129], %272 {strides = array<i32>} : memref<336x256xbf16, #tpu.memory_space<vmem>>, vector<16x128xbf16>,
    %274 = vector.extract_strided_slice %197 {offsets = [0, 38], sizes = [8, 128], strides = [1, 1]} : vector<8x168xbf16> to vector<8x128xbf16>
    %275 = vector.extract_strided_slice %197 {offsets = [0, 39], sizes = [8, 128], strides = [1, 1]} : vector<8x168xbf16> to vector<8x128xbf16>
    %276 = tpu.concatenate %274, %275 in 0 : vector<8x128xbf16>, vector<8x128xbf16> -> vector<16x128xbf16>
    %c304_130 = arith.constant 304 : index
    %c0_131 = arith.constant 0 : index
    %277 = vector.load %arg7[%c304_130, %c0_131] : memref<336x256xbf16, #tpu.memory_space<vmem>>, vector<16x128xbf16>
    tpu.vector_store %arg7[%c304_130, %c0_131], %276 {strides = array<i32>} : memref<336x256xbf16, #tpu.memory_space<vmem>>, vector<16x128xbf16>,
    %278 = vector.extract_strided_slice %197 {offsets = [0, 40], sizes = [8, 128], strides = [1, 1]} : vector<8x168xbf16> to vector<8x128xbf16>
    %279 = vector.extract_strided_slice %197 {offsets = [0, 40], sizes = [8, 128], strides = [1, 1]} : vector<8x168xbf16> to vector<8x128xbf16>
    %280 = tpu.concatenate %278, %279 in 0 : vector<8x128xbf16>, vector<8x128xbf16> -> vector<16x128xbf16>
    %c320_132 = arith.constant 320 : index
    %c0_133 = arith.constant 0 : index
    %281 = vector.load %arg7[%c320_132, %c0_133] : memref<336x256xbf16, #tpu.memory_space<vmem>>, vector<16x128xbf16>
    tpu.vector_store %arg7[%c320_132, %c0_133], %280 {strides = array<i32>} : memref<336x256xbf16, #tpu.memory_space<vmem>>, vector<16x128xbf16>,
    %282 = vector.extract_strided_slice %193 {offsets = [0, 128], sizes = [8, 128], strides = [1, 1]} : vector<8x256xf32> to vector<8x128xf32>
    %283 = arith.truncf %282 : vector<8x128xf32> to vector<8x128xbf16>
    %c0_134 = arith.constant 0 : index
    %c20_135 = arith.constant 20 : index
    %284 = vector.load %arg8[%c0_134, %c20_135] : memref<8x168xbf16, #tpu.memory_space<vmem>>, vector<8x128xbf16>
    tpu.vector_store %arg8[%c0_134, %c20_135], %283 {strides = array<i32>} : memref<8x168xbf16, #tpu.memory_space<vmem>>, vector<8x128xbf16>,
    %c0_136 = arith.constant 0 : index
    %c0_137 = arith.constant 0 : index
    %285 = vector.load %arg8[%c0_136, %c0_137] : memref<8x168xbf16, #tpu.memory_space<vmem>>, vector<8x168xbf16>
    %286 = vector.extract_strided_slice %285 {offsets = [0, 0], sizes = [8, 128], strides = [1, 1]} : vector<8x168xbf16> to vector<8x128xbf16>
    %287 = vector.extract_strided_slice %285 {offsets = [0, 1], sizes = [8, 128], strides = [1, 1]} : vector<8x168xbf16> to vector<8x128xbf16>
    %288 = tpu.concatenate %286, %287 in 0 : vector<8x128xbf16>, vector<8x128xbf16> -> vector<16x128xbf16>
    %c0_138 = arith.constant 0 : index
    %c128_139 = arith.constant 128 : index
    %289 = vector.load %arg7[%c0_138, %c128_139] : memref<336x256xbf16, #tpu.memory_space<vmem>>, vector<16x128xbf16>
    tpu.vector_store %arg7[%c0_138, %c128_139], %288 {strides = array<i32>} : memref<336x256xbf16, #tpu.memory_space<vmem>>, vector<16x128xbf16>,
    %290 = vector.extract_strided_slice %285 {offsets = [0, 2], sizes = [8, 128], strides = [1, 1]} : vector<8x168xbf16> to vector<8x128xbf16>
    %291 = vector.extract_strided_slice %285 {offsets = [0, 3], sizes = [8, 128], strides = [1, 1]} : vector<8x168xbf16> to vector<8x128xbf16>
    %292 = tpu.concatenate %290, %291 in 0 : vector<8x128xbf16>, vector<8x128xbf16> -> vector<16x128xbf16>
    %c16_140 = arith.constant 16 : index
    %c128_141 = arith.constant 128 : index
    %293 = vector.load %arg7[%c16_140, %c128_141] : memref<336x256xbf16, #tpu.memory_space<vmem>>, vector<16x128xbf16>
    tpu.vector_store %arg7[%c16_140, %c128_141], %292 {strides = array<i32>} : memref<336x256xbf16, #tpu.memory_space<vmem>>, vector<16x128xbf16>,
    %294 = vector.extract_strided_slice %285 {offsets = [0, 4], sizes = [8, 128], strides = [1, 1]} : vector<8x168xbf16> to vector<8x128xbf16>
    %295 = vector.extract_strided_slice %285 {offsets = [0, 5], sizes = [8, 128], strides = [1, 1]} : vector<8x168xbf16> to vector<8x128xbf16>
    %296 = tpu.concatenate %294, %295 in 0 : vector<8x128xbf16>, vector<8x128xbf16> -> vector<16x128xbf16>
    %c32_142 = arith.constant 32 : index
    %c128_143 = arith.constant 128 : index
    %297 = vector.load %arg7[%c32_142, %c128_143] : memref<336x256xbf16, #tpu.memory_space<vmem>>, vector<16x128xbf16>
    tpu.vector_store %arg7[%c32_142, %c128_143], %296 {strides = array<i32>} : memref<336x256xbf16, #tpu.memory_space<vmem>>, vector<16x128xbf16>,
    %298 = vector.extract_strided_slice %285 {offsets = [0, 6], sizes = [8, 128], strides = [1, 1]} : vector<8x168xbf16> to vector<8x128xbf16>
    %299 = vector.extract_strided_slice %285 {offsets = [0, 7], sizes = [8, 128], strides = [1, 1]} : vector<8x168xbf16> to vector<8x128xbf16>
    %300 = tpu.concatenate %298, %299 in 0 : vector<8x128xbf16>, vector<8x128xbf16> -> vector<16x128xbf16>
    %c48_144 = arith.constant 48 : index
    %c128_145 = arith.constant 128 : index
    %301 = vector.load %arg7[%c48_144, %c128_145] : memref<336x256xbf16, #tpu.memory_space<vmem>>, vector<16x128xbf16>
    tpu.vector_store %arg7[%c48_144, %c128_145], %300 {strides = array<i32>} : memref<336x256xbf16, #tpu.memory_space<vmem>>, vector<16x128xbf16>,
    %302 = vector.extract_strided_slice %285 {offsets = [0, 8], sizes = [8, 128], strides = [1, 1]} : vector<8x168xbf16> to vector<8x128xbf16>
    %303 = vector.extract_strided_slice %285 {offsets = [0, 9], sizes = [8, 128], strides = [1, 1]} : vector<8x168xbf16> to vector<8x128xbf16>
    %304 = tpu.concatenate %302, %303 in 0 : vector<8x128xbf16>, vector<8x128xbf16> -> vector<16x128xbf16>
    %c64_146 = arith.constant 64 : index
    %c128_147 = arith.constant 128 : index
    %305 = vector.load %arg7[%c64_146, %c128_147] : memref<336x256xbf16, #tpu.memory_space<vmem>>, vector<16x128xbf16>
    tpu.vector_store %arg7[%c64_146, %c128_147], %304 {strides = array<i32>} : memref<336x256xbf16, #tpu.memory_space<vmem>>, vector<16x128xbf16>,
    %306 = vector.extract_strided_slice %285 {offsets = [0, 10], sizes = [8, 128], strides = [1, 1]} : vector<8x168xbf16> to vector<8x128xbf16>
    %307 = vector.extract_strided_slice %285 {offsets = [0, 11], sizes = [8, 128], strides = [1, 1]} : vector<8x168xbf16> to vector<8x128xbf16>
    %308 = tpu.concatenate %306, %307 in 0 : vector<8x128xbf16>, vector<8x128xbf16> -> vector<16x128xbf16>
    %c80_148 = arith.constant 80 : index
    %c128_149 = arith.constant 128 : index
    %309 = vector.load %arg7[%c80_148, %c128_149] : memref<336x256xbf16, #tpu.memory_space<vmem>>, vector<16x128xbf16>
    tpu.vector_store %arg7[%c80_148, %c128_149], %308 {strides = array<i32>} : memref<336x256xbf16, #tpu.memory_space<vmem>>, vector<16x128xbf16>,
    %310 = vector.extract_strided_slice %285 {offsets = [0, 12], sizes = [8, 128], strides = [1, 1]} : vector<8x168xbf16> to vector<8x128xbf16>
    %311 = vector.extract_strided_slice %285 {offsets = [0, 13], sizes = [8, 128], strides = [1, 1]} : vector<8x168xbf16> to vector<8x128xbf16>
    %312 = tpu.concatenate %310, %311 in 0 : vector<8x128xbf16>, vector<8x128xbf16> -> vector<16x128xbf16>
    %c96_150 = arith.constant 96 : index
    %c128_151 = arith.constant 128 : index
    %313 = vector.load %arg7[%c96_150, %c128_151] : memref<336x256xbf16, #tpu.memory_space<vmem>>, vector<16x128xbf16>
    tpu.vector_store %arg7[%c96_150, %c128_151], %312 {strides = array<i32>} : memref<336x256xbf16, #tpu.memory_space<vmem>>, vector<16x128xbf16>,
    %314 = vector.extract_strided_slice %285 {offsets = [0, 14], sizes = [8, 128], strides = [1, 1]} : vector<8x168xbf16> to vector<8x128xbf16>
    %315 = vector.extract_strided_slice %285 {offsets = [0, 15], sizes = [8, 128], strides = [1, 1]} : vector<8x168xbf16> to vector<8x128xbf16>
    %316 = tpu.concatenate %314, %315 in 0 : vector<8x128xbf16>, vector<8x128xbf16> -> vector<16x128xbf16>
    %c112_152 = arith.constant 112 : index
    %c128_153 = arith.constant 128 : index
    %317 = vector.load %arg7[%c112_152, %c128_153] : memref<336x256xbf16, #tpu.memory_space<vmem>>, vector<16x128xbf16>
    tpu.vector_store %arg7[%c112_152, %c128_153], %316 {strides = array<i32>} : memref<336x256xbf16, #tpu.memory_space<vmem>>, vector<16x128xbf16>,
    %318 = vector.extract_strided_slice %285 {offsets = [0, 16], sizes = [8, 128], strides = [1, 1]} : vector<8x168xbf16> to vector<8x128xbf16>
    %319 = vector.extract_strided_slice %285 {offsets = [0, 17], sizes = [8, 128], strides = [1, 1]} : vector<8x168xbf16> to vector<8x128xbf16>
    %320 = tpu.concatenate %318, %319 in 0 : vector<8x128xbf16>, vector<8x128xbf16> -> vector<16x128xbf16>
    %c128_154 = arith.constant 128 : index
    %c128_155 = arith.constant 128 : index
    %321 = vector.load %arg7[%c128_154, %c128_155] : memref<336x256xbf16, #tpu.memory_space<vmem>>, vector<16x128xbf16>
    tpu.vector_store %arg7[%c128_154, %c128_155], %320 {strides = array<i32>} : memref<336x256xbf16, #tpu.memory_space<vmem>>, vector<16x128xbf16>,
    %322 = vector.extract_strided_slice %285 {offsets = [0, 18], sizes = [8, 128], strides = [1, 1]} : vector<8x168xbf16> to vector<8x128xbf16>
    %323 = vector.extract_strided_slice %285 {offsets = [0, 19], sizes = [8, 128], strides = [1, 1]} : vector<8x168xbf16> to vector<8x128xbf16>
    %324 = tpu.concatenate %322, %323 in 0 : vector<8x128xbf16>, vector<8x128xbf16> -> vector<16x128xbf16>
    %c144_156 = arith.constant 144 : index
    %c128_157 = arith.constant 128 : index
    %325 = vector.load %arg7[%c144_156, %c128_157] : memref<336x256xbf16, #tpu.memory_space<vmem>>, vector<16x128xbf16>
    tpu.vector_store %arg7[%c144_156, %c128_157], %324 {strides = array<i32>} : memref<336x256xbf16, #tpu.memory_space<vmem>>, vector<16x128xbf16>,
    %326 = vector.extract_strided_slice %285 {offsets = [0, 20], sizes = [8, 128], strides = [1, 1]} : vector<8x168xbf16> to vector<8x128xbf16>
    %327 = vector.extract_strided_slice %285 {offsets = [0, 21], sizes = [8, 128], strides = [1, 1]} : vector<8x168xbf16> to vector<8x128xbf16>
    %328 = tpu.concatenate %326, %327 in 0 : vector<8x128xbf16>, vector<8x128xbf16> -> vector<16x128xbf16>
    %c160_158 = arith.constant 160 : index
    %c128_159 = arith.constant 128 : index
    %329 = vector.load %arg7[%c160_158, %c128_159] : memref<336x256xbf16, #tpu.memory_space<vmem>>, vector<16x128xbf16>
    tpu.vector_store %arg7[%c160_158, %c128_159], %328 {strides = array<i32>} : memref<336x256xbf16, #tpu.memory_space<vmem>>, vector<16x128xbf16>,
    %330 = vector.extract_strided_slice %285 {offsets = [0, 22], sizes = [8, 128], strides = [1, 1]} : vector<8x168xbf16> to vector<8x128xbf16>
    %331 = vector.extract_strided_slice %285 {offsets = [0, 23], sizes = [8, 128], strides = [1, 1]} : vector<8x168xbf16> to vector<8x128xbf16>
    %332 = tpu.concatenate %330, %331 in 0 : vector<8x128xbf16>, vector<8x128xbf16> -> vector<16x128xbf16>
    %c176_160 = arith.constant 176 : index
    %c128_161 = arith.constant 128 : index
    %333 = vector.load %arg7[%c176_160, %c128_161] : memref<336x256xbf16, #tpu.memory_space<vmem>>, vector<16x128xbf16>
    tpu.vector_store %arg7[%c176_160, %c128_161], %332 {strides = array<i32>} : memref<336x256xbf16, #tpu.memory_space<vmem>>, vector<16x128xbf16>,
    %334 = vector.extract_strided_slice %285 {offsets = [0, 24], sizes = [8, 128], strides = [1, 1]} : vector<8x168xbf16> to vector<8x128xbf16>
    %335 = vector.extract_strided_slice %285 {offsets = [0, 25], sizes = [8, 128], strides = [1, 1]} : vector<8x168xbf16> to vector<8x128xbf16>
    %336 = tpu.concatenate %334, %335 in 0 : vector<8x128xbf16>, vector<8x128xbf16> -> vector<16x128xbf16>
    %c192_162 = arith.constant 192 : index
    %c128_163 = arith.constant 128 : index
    %337 = vector.load %arg7[%c192_162, %c128_163] : memref<336x256xbf16, #tpu.memory_space<vmem>>, vector<16x128xbf16>
    tpu.vector_store %arg7[%c192_162, %c128_163], %336 {strides = array<i32>} : memref<336x256xbf16, #tpu.memory_space<vmem>>, vector<16x128xbf16>,
    %338 = vector.extract_strided_slice %285 {offsets = [0, 26], sizes = [8, 128], strides = [1, 1]} : vector<8x168xbf16> to vector<8x128xbf16>
    %339 = vector.extract_strided_slice %285 {offsets = [0, 27], sizes = [8, 128], strides = [1, 1]} : vector<8x168xbf16> to vector<8x128xbf16>
    %340 = tpu.concatenate %338, %339 in 0 : vector<8x128xbf16>, vector<8x128xbf16> -> vector<16x128xbf16>
    %c208_164 = arith.constant 208 : index
    %c128_165 = arith.constant 128 : index
    %341 = vector.load %arg7[%c208_164, %c128_165] : memref<336x256xbf16, #tpu.memory_space<vmem>>, vector<16x128xbf16>
    tpu.vector_store %arg7[%c208_164, %c128_165], %340 {strides = array<i32>} : memref<336x256xbf16, #tpu.memory_space<vmem>>, vector<16x128xbf16>,
    %342 = vector.extract_strided_slice %285 {offsets = [0, 28], sizes = [8, 128], strides = [1, 1]} : vector<8x168xbf16> to vector<8x128xbf16>
    %343 = vector.extract_strided_slice %285 {offsets = [0, 29], sizes = [8, 128], strides = [1, 1]} : vector<8x168xbf16> to vector<8x128xbf16>
    %344 = tpu.concatenate %342, %343 in 0 : vector<8x128xbf16>, vector<8x128xbf16> -> vector<16x128xbf16>
    %c224_166 = arith.constant 224 : index
    %c128_167 = arith.constant 128 : index
    %345 = vector.load %arg7[%c224_166, %c128_167] : memref<336x256xbf16, #tpu.memory_space<vmem>>, vector<16x128xbf16>
    tpu.vector_store %arg7[%c224_166, %c128_167], %344 {strides = array<i32>} : memref<336x256xbf16, #tpu.memory_space<vmem>>, vector<16x128xbf16>,
    %346 = vector.extract_strided_slice %285 {offsets = [0, 30], sizes = [8, 128], strides = [1, 1]} : vector<8x168xbf16> to vector<8x128xbf16>
    %347 = vector.extract_strided_slice %285 {offsets = [0, 31], sizes = [8, 128], strides = [1, 1]} : vector<8x168xbf16> to vector<8x128xbf16>
    %348 = tpu.concatenate %346, %347 in 0 : vector<8x128xbf16>, vector<8x128xbf16> -> vector<16x128xbf16>
    %c240_168 = arith.constant 240 : index
    %c128_169 = arith.constant 128 : index
    %349 = vector.load %arg7[%c240_168, %c128_169] : memref<336x256xbf16, #tpu.memory_space<vmem>>, vector<16x128xbf16>
    tpu.vector_store %arg7[%c240_168, %c128_169], %348 {strides = array<i32>} : memref<336x256xbf16, #tpu.memory_space<vmem>>, vector<16x128xbf16>,
    %350 = vector.extract_strided_slice %285 {offsets = [0, 32], sizes = [8, 128], strides = [1, 1]} : vector<8x168xbf16> to vector<8x128xbf16>
    %351 = vector.extract_strided_slice %285 {offsets = [0, 33], sizes = [8, 128], strides = [1, 1]} : vector<8x168xbf16> to vector<8x128xbf16>
    %352 = tpu.concatenate %350, %351 in 0 : vector<8x128xbf16>, vector<8x128xbf16> -> vector<16x128xbf16>
    %c256_170 = arith.constant 256 : index
    %c128_171 = arith.constant 128 : index
    %353 = vector.load %arg7[%c256_170, %c128_171] : memref<336x256xbf16, #tpu.memory_space<vmem>>, vector<16x128xbf16>
    tpu.vector_store %arg7[%c256_170, %c128_171], %352 {strides = array<i32>} : memref<336x256xbf16, #tpu.memory_space<vmem>>, vector<16x128xbf16>,
    %354 = vector.extract_strided_slice %285 {offsets = [0, 34], sizes = [8, 128], strides = [1, 1]} : vector<8x168xbf16> to vector<8x128xbf16>
    %355 = vector.extract_strided_slice %285 {offsets = [0, 35], sizes = [8, 128], strides = [1, 1]} : vector<8x168xbf16> to vector<8x128xbf16>
    %356 = tpu.concatenate %354, %355 in 0 : vector<8x128xbf16>, vector<8x128xbf16> -> vector<16x128xbf16>
    %c272_172 = arith.constant 272 : index
    %c128_173 = arith.constant 128 : index
    %357 = vector.load %arg7[%c272_172, %c128_173] : memref<336x256xbf16, #tpu.memory_space<vmem>>, vector<16x128xbf16>
    tpu.vector_store %arg7[%c272_172, %c128_173], %356 {strides = array<i32>} : memref<336x256xbf16, #tpu.memory_space<vmem>>, vector<16x128xbf16>,
    %358 = vector.extract_strided_slice %285 {offsets = [0, 36], sizes = [8, 128], strides = [1, 1]} : vector<8x168xbf16> to vector<8x128xbf16>
    %359 = vector.extract_strided_slice %285 {offsets = [0, 37], sizes = [8, 128], strides = [1, 1]} : vector<8x168xbf16> to vector<8x128xbf16>
    %360 = tpu.concatenate %358, %359 in 0 : vector<8x128xbf16>, vector<8x128xbf16> -> vector<16x128xbf16>
    %c288_174 = arith.constant 288 : index
    %c128_175 = arith.constant 128 : index
    %361 = vector.load %arg7[%c288_174, %c128_175] : memref<336x256xbf16, #tpu.memory_space<vmem>>, vector<16x128xbf16>
    tpu.vector_store %arg7[%c288_174, %c128_175], %360 {strides = array<i32>} : memref<336x256xbf16, #tpu.memory_space<vmem>>, vector<16x128xbf16>,
    %362 = vector.extract_strided_slice %285 {offsets = [0, 38], sizes = [8, 128], strides = [1, 1]} : vector<8x168xbf16> to vector<8x128xbf16>
    %363 = vector.extract_strided_slice %285 {offsets = [0, 39], sizes = [8, 128], strides = [1, 1]} : vector<8x168xbf16> to vector<8x128xbf16>
    %364 = tpu.concatenate %362, %363 in 0 : vector<8x128xbf16>, vector<8x128xbf16> -> vector<16x128xbf16>
    %c304_176 = arith.constant 304 : index
    %c128_177 = arith.constant 128 : index
    %365 = vector.load %arg7[%c304_176, %c128_177] : memref<336x256xbf16, #tpu.memory_space<vmem>>, vector<16x128xbf16>
    tpu.vector_store %arg7[%c304_176, %c128_177], %364 {strides = array<i32>} : memref<336x256xbf16, #tpu.memory_space<vmem>>, vector<16x128xbf16>,
    %366 = vector.extract_strided_slice %285 {offsets = [0, 40], sizes = [8, 128], strides = [1, 1]} : vector<8x168xbf16> to vector<8x128xbf16>
    %367 = vector.extract_strided_slice %285 {offsets = [0, 40], sizes = [8, 128], strides = [1, 1]} : vector<8x168xbf16> to vector<8x128xbf16>
    %368 = tpu.concatenate %366, %367 in 0 : vector<8x128xbf16>, vector<8x128xbf16> -> vector<16x128xbf16>
    %c320_178 = arith.constant 320 : index
    %c128_179 = arith.constant 128 : index
    %369 = vector.load %arg7[%c320_178, %c128_179] : memref<336x256xbf16, #tpu.memory_space<vmem>>, vector<16x128xbf16>
    tpu.vector_store %arg7[%c320_178, %c128_179], %368 {strides = array<i32>} : memref<336x256xbf16, #tpu.memory_space<vmem>>, vector<16x128xbf16>,
    %c0_180 = arith.constant 0 : index
    %c0_181 = arith.constant 0 : index
    %370 = vector.load %arg3[%c0_180, %c0_181] : memref<8x336xbf16, #tpu.memory_space<vmem>>, vector<8x336xbf16>
    %c0_182 = arith.constant 0 : index
    %c0_183 = arith.constant 0 : index
    %371 = vector.load %arg7[%c0_182, %c0_183] : memref<336x256xbf16, #tpu.memory_space<vmem>>, vector<336x256xbf16>
    %cst_184 = arith.constant dense<0.000000e+00> : vector<8x256xf32>
    %372 = tpu.matmul %370, %371, %cst_184 {dimension_numbers = #tpu.dot_dimension_numbers<[1], [0], [0], [1], [0, 0, 1, 1], [], []>} : vector<8x336xbf16>, vector<336x256xbf16>, vector<8x256xf32> -> vector<8x256xf32>
    %c1_185 = arith.constant 1 : index
    %373 = memref.load %arg5[%c1_185] : memref<2xf32, #tpu.memory_space<smem>>
    %374 = vector.extract_strided_slice %372 {offsets = [0, 0], sizes = [8, 128], strides = [1, 1]} : vector<8x256xf32> to vector<8x128xf32>
    %c0_186 = arith.constant 0 : index
    %c1_187 = arith.constant 1 : index
    %375 = vector.load %arg4[%c0_186, %c1_187] : memref<8x2xf32, #tpu.memory_space<vmem>>, vector<8x1xf32>
    %376 = vector.broadcast %375 : vector<8x1xf32> to vector<8x128xf32>
    %377 = arith.addf %374, %376 : vector<8x128xf32>
    %c0_188 = arith.constant 0 : index
    %c0_189 = arith.constant 0 : index
    %c0_190 = arith.constant 0 : index
    %378 = vector.load %arg1[%c0_188, %c0_189, %c0_190] : memref<2x8x128xf32, #tpu.memory_space<vmem>>, vector<1x8x128xf32>
    %379 = vector.shape_cast %378 : vector<1x8x128xf32> to vector<8x128xf32>
    %380 = arith.addf %377, %379 : vector<8x128xf32>
    %cst_191 = arith.constant 0.000000e+00 : f32
    %381 = vector.broadcast %cst_191 : f32 to vector<8x128xf32>
    %382 = arith.cmpf oge, %380, %381 : vector<8x128xf32>
    %383 = vector.broadcast %373 : f32 to vector<8x128xf32>
    %384 = arith.mulf %383, %380 : vector<8x128xf32>
    %385 = arith.select %382, %380, %384 : vector<8x128xi1>, vector<8x128xf32>
    %c0_192 = arith.constant 0 : index
    %c0_193 = arith.constant 0 : index
    %c0_194 = arith.constant 0 : index
    %386 = vector.load %arg6[%c0_192, %c0_193, %c0_194] : memref<2x8x128xf32, #tpu.memory_space<vmem>>, vector<1x8x128xf32>
    %387 = vector.shape_cast %386 : vector<1x8x128xf32> to vector<8x128xf32>
    %388 = vector.shape_cast %385 : vector<8x128xf32> to vector<1x8x128xf32>
    tpu.vector_store %arg6[%c0_192, %c0_193, %c0_194], %388 {strides = array<i32>} : memref<2x8x128xf32, #tpu.memory_space<vmem>>, vector<1x8x128xf32>,
    %389 = vector.extract_strided_slice %372 {offsets = [0, 128], sizes = [8, 128], strides = [1, 1]} : vector<8x256xf32> to vector<8x128xf32>
    %c0_195 = arith.constant 0 : index
    %c1_196 = arith.constant 1 : index
    %390 = vector.load %arg4[%c0_195, %c1_196] : memref<8x2xf32, #tpu.memory_space<vmem>>, vector<8x1xf32>
    %391 = vector.broadcast %390 : vector<8x1xf32> to vector<8x128xf32>
    %392 = arith.addf %389, %391 : vector<8x128xf32>
    %c1_197 = arith.constant 1 : index
    %c0_198 = arith.constant 0 : index
    %c0_199 = arith.constant 0 : index
    %393 = vector.load %arg1[%c1_197, %c0_198, %c0_199] : memref<2x8x128xf32, #tpu.memory_space<vmem>>, vector<1x8x128xf32>
    %394 = vector.shape_cast %393 : vector<1x8x128xf32> to vector<8x128xf32>
    %395 = arith.addf %392, %394 : vector<8x128xf32>
    %cst_200 = arith.constant 0.000000e+00 : f32
    %396 = vector.broadcast %cst_200 : f32 to vector<8x128xf32>
    %397 = arith.cmpf oge, %395, %396 : vector<8x128xf32>
    %398 = vector.broadcast %373 : f32 to vector<8x128xf32>
    %399 = arith.mulf %398, %395 : vector<8x128xf32>
    %400 = arith.select %397, %395, %399 : vector<8x128xi1>, vector<8x128xf32>
    %c1_201 = arith.constant 1 : index
    %c0_202 = arith.constant 0 : index
    %c0_203 = arith.constant 0 : index
    %401 = vector.load %arg6[%c1_201, %c0_202, %c0_203] : memref<2x8x128xf32, #tpu.memory_space<vmem>>, vector<1x8x128xf32>
    %402 = vector.shape_cast %401 : vector<1x8x128xf32> to vector<8x128xf32>
    %403 = vector.shape_cast %400 : vector<8x128xf32> to vector<1x8x128xf32>
    tpu.vector_store %arg6[%c1_201, %c0_202, %c0_203], %403 {strides = array<i32>} : memref<2x8x128xf32, #tpu.memory_space<vmem>>, vector<1x8x128xf32>,
    return
  }
  func.func @transform_0(%arg0: i32) -> (i32, i32, i32) {
    %c0_i32 = arith.constant 0 : i32
    %c0_i32_0 = arith.constant 0 : i32
    %c0_i32_1 = arith.constant 0 : i32
    return %arg0, %c0_i32, %c0_i32_0 : i32, i32, i32
  }
  func.func @transform_1(%arg0: i32) -> (i32, i32) {
    %c0_i32 = arith.constant 0 : i32
    %c0_i32_0 = arith.constant 0 : i32
    %c0_i32_1 = arith.constant 0 : i32
    return %c0_i32, %c0_i32_0 : i32, i32
  }
  func.func @transform_2(%arg0: i32) -> (i32, i32) {
    %c0_i32 = arith.constant 0 : i32
    %c0_i32_0 = arith.constant 0 : i32
    %c0_i32_1 = arith.constant 0 : i32
    return %c0_i32, %c0_i32_0 : i32, i32
  }
  func.func @transform_3(%arg0: i32) -> (i32, i32) {
    %c0_i32 = arith.constant 0 : i32
    %c0_i32_0 = arith.constant 0 : i32
    %c0_i32_1 = arith.constant 0 : i32
    return %c0_i32, %c0_i32_0 : i32, i32
  }
  func.func @transform_4(%arg0: i32) -> i32 {
    %c0_i32 = arith.constant 0 : i32
    %c0_i32_0 = arith.constant 0 : i32
    return %c0_i32 : i32
  }
  func.func @transform_5(%arg0: i32) -> (i32, i32, i32) {
    %c0_i32 = arith.constant 0 : i32
    %c0_i32_0 = arith.constant 0 : i32
    %c0_i32_1 = arith.constant 0 : i32
    return %arg0, %c0_i32, %c0_i32_0 : i32, i32, i32
  }
}

</mosaic_0001>

<llo_original>
// kernel: tpu_custom_call.1
$region0: #{tpu_custom_call.1}
  #allocation0 [shape = 'u32[]', space=smem, size = 0x4, offset = 0x4, fixed_abs, tag = 'smem constant byte address 0x4 - core index']
  #allocation1 [shape = 'u32[72,128]{1,0:T(1,128)}', space=vmem, size = 0x9000, scoped, tag = 'internal scratch']
  #allocation2 [shape = 'bf16[336,256]{1,0:T(8,128)(2,1)}', space=vmem, size = 0x2a000, scoped, tag = 'scratch operand']
  #allocation3 [shape = 'bf16[8,168]{1,0:T(8,128)(2,1)}', space=vmem, size = 0x1000, scoped, tag = 'scratch operand']
  %s0 = inlined_call_operand.hbm [shape: f32[4,8,128], index: 0, kind: input, shape index: {}]
  %s1 = inlined_call_operand.hbm [shape: bf16[8,336], index: 1, kind: input, shape index: {}]
  %s2 = inlined_call_operand.hbm [shape: bf16[8,336], index: 2, kind: input, shape index: {}]
  %s3 = inlined_call_operand.vmem [shape: f32[8,2], index: 3, kind: input, shape index: {}]
  %s4 = inlined_call_operand.vmem [shape: f32[2], index: 4, kind: input, shape index: {}]
  %s5 = inlined_call_operand.hbm [shape: f32[4,8,128], index: 5, kind: output, shape index: {}]
  %s6 = sld [smem:[#allocation0]]
  $region69: #{tpu_custom_call.1} parent=0
    _
  %s8 = ssub.s32 1, %s6
  %s9 = scalar_select 0, %s8, %s6
  $region1: #{tpu_custom_call.1} parent=0
    #allocation4 [shape = 'u8[16384]{0}', space=vmem, size = 0x4000, scoped, tag = 'input window, operand 0']
    #allocation5 [shape = 's32[2]{0}', space=sflag, size = 0x8, scoped, tag = 'scoped memory for tpu_custom_call.1']
    #allocation6 [shape = 's32[2]{0}', space=sflag, size = 0x8, scoped, tag = 'scoped memory for tpu_custom_call.1']
    #allocation7 [shape = 's32[2]{0}', space=sflag, size = 0x8, scoped, tag = 'scoped memory for tpu_custom_call.1']
    #allocation8 [shape = 'u8[6144]{0}', space=vmem, size = 0x1800, scoped, tag = 'input window, operand 1, single buffered']
    #allocation9 [shape = 's32[1]{0}', space=sflag, size = 0x4, scoped, tag = 'scoped memory for tpu_custom_call.1']
    #allocation10 [shape = 'u8[6144]{0}', space=vmem, size = 0x1800, scoped, tag = 'input window, operand 2, single buffered']
    #allocation11 [shape = 'u8[512]{0}', space=smem, size = 0x200, scoped, tag = 'input window, operand 4, single buffered']
    #allocation12 [shape = 'u8[16384]{0}', space=vmem, size = 0x4000, scoped, tag = 'output window, operand 0']
    %10 = vsyncpa [#allocation5], 0
    %s11 = scalar_lea.sflag [#allocation5], 1
    %12 = vsyncpa %s11, 0
    %13 = vsyncpa [#allocation9], 0
    %14 = vsyncpa [#allocation7], 0
    %15 = vsyncpa [#allocation6], 0
    %s16 = scalar_lea.sflag [#allocation6], 1
    %17 = vsyncpa %s16, 0
    loop: start=0, step=1, limit=4
    $region2: #{tpu_custom_call.1} parent=1 // loop_pre_header
      _
    $region3: #{tpu_custom_call.1} parent=1 // loop_header
      %s19 = sphi 0, %s23
      %p20 = scmp.ge.s32.totalorder %s19, 4
      %s29 = sphi 0, %s31
      %s32 = sphi 0, %s29
      %s33 = sphi 0, %s32
      %s49 = sphi 0, %s33
      %s53 = sphi 0, %s53
      %s55 = sphi 0, %s53
      %s56 = sphi 0, %s55
      %s70 = sphi 0, %s56
      %s74 = sphi 0, %s74
      %s76 = sphi 0, %s74
      %s77 = sphi 0, %s76
      %s91 = sphi 0, %s77
      %s95 = sphi 0, %s95
      %s97 = sphi 0, %s95
      %s98 = sphi 0, %s97
      %s112 = sphi 0, %s98
      %s116 = sphi 0, %s116
      %s118 = sphi 0, %s116
      %s119 = sphi 0, %s118
      %s133 = sphi 0, %s119
      %s139 = sphi 0, %s141
      %s142 = sphi 0, %s139
      %s143 = sphi 0, %s142
      %s159 = sphi 0, %s143
    $region4: #{tpu_custom_call.1} parent=1 // loop_header_branch
      %22 = sbr.rel (%p20) target = $region8
    $region5: #{tpu_custom_call.1} parent=1 // loop_body
      %s24 = ssub.s32 %s19, 1
      %s25 = ssub.s32 %s19, 2
      %s26 = sadd.s32 %s19, 1
      %s27 = ssub.s32 %s19, %s26
      %p28 = scmp.eq.s32.totalorder %s27, 0
      %s30 = sadd.s32 %s29, 1
      %s31 = scalar_select %p28, %s29, %s30
      %p34 = pneg %p28
      %p35 = scmp.eq.s32.totalorder %s19, 1
      %p36 = por %p34, %p35
      %p37 = scmp.ne.s32.totalorder %s29, %s32
      %p38 = scmp.eq.s32.totalorder %s19, 0
      %p39 = por %p37, %p38
      %p40 = scmp.ne.s32.totalorder %s29, %s32
      %p41 = scmp.eq.s32.totalorder %s24, 1
      %p42 = por %p40, %p41
      %p43 = scmp.ne.s32.totalorder %s32, %s33
      %p44 = scmp.eq.s32.totalorder %s24, 0
      %p45 = por %p43, %p44
      %p46 = scmp.ne.s32.totalorder %s32, %s33
      %p47 = scmp.eq.s32.totalorder %s25, 1
      %p48 = por %p46, %p47
      %p50 = scmp.ne.s32.totalorder %s33, %s49
      %p51 = scmp.eq.s32.totalorder %s25, 0
      %p52 = por %p50, %p51
      %s54 = sadd.s32 %s53, 1
      %p57 = scmp.eq.s32.totalorder %s19, 1
      %p58 = scmp.ne.s32.totalorder %s53, %s55
      %p59 = scmp.eq.s32.totalorder %s19, 0
      %p60 = por %p58, %p59
      %p61 = scmp.ne.s32.totalorder %s53, %s55
      %p62 = scmp.eq.s32.totalorder %s24, 1
      %p63 = por %p61, %p62
      %p64 = scmp.ne.s32.totalorder %s55, %s56
      %p65 = scmp.eq.s32.totalorder %s24, 0
      %p66 = por %p64, %p65
      %p67 = scmp.ne.s32.totalorder %s55, %s56
      %p68 = scmp.eq.s32.totalorder %s25, 1
      %p69 = por %p67, %p68
      %p71 = scmp.ne.s32.totalorder %s56, %s70
      %p72 = scmp.eq.s32.totalorder %s25, 0
      %p73 = por %p71, %p72
      %s75 = sadd.s32 %s74, 1
      %p78 = scmp.eq.s32.totalorder %s19, 1
      %p79 = scmp.ne.s32.totalorder %s74, %s76
      %p80 = scmp.eq.s32.totalorder %s19, 0
      %p81 = por %p79, %p80
      %p82 = scmp.ne.s32.totalorder %s74, %s76
      %p83 = scmp.eq.s32.totalorder %s24, 1
      %p84 = por %p82, %p83
      %p85 = scmp.ne.s32.totalorder %s76, %s77
      %p86 = scmp.eq.s32.totalorder %s24, 0
      %p87 = por %p85, %p86
      %p88 = scmp.ne.s32.totalorder %s76, %s77
      %p89 = scmp.eq.s32.totalorder %s25, 1
      %p90 = por %p88, %p89
      %p92 = scmp.ne.s32.totalorder %s77, %s91
      %p93 = scmp.eq.s32.totalorder %s25, 0
      %p94 = por %p92, %p93
      %s96 = sadd.s32 %s95, 1
      %p99 = scmp.eq.s32.totalorder %s19, 1
      %p100 = scmp.ne.s32.totalorder %s95, %s97
      %p101 = scmp.eq.s32.totalorder %s19, 0
      %p102 = por %p100, %p101
      %p103 = scmp.ne.s32.totalorder %s95, %s97
      %p104 = scmp.eq.s32.totalorder %s24, 1
      %p105 = por %p103, %p104
      %p106 = scmp.ne.s32.totalorder %s97, %s98
      %p107 = scmp.eq.s32.totalorder %s24, 0
      %p108 = por %p106, %p107
      %p109 = scmp.ne.s32.totalorder %s97, %s98
      %p110 = scmp.eq.s32.totalorder %s25, 1
      %p111 = por %p109, %p110
      %p113 = scmp.ne.s32.totalorder %s98, %s112
      %p114 = scmp.eq.s32.totalorder %s25, 0
      %p115 = por %p113, %p114
      %s117 = sadd.s32 %s116, 1
      %p120 = scmp.eq.s32.totalorder %s19, 1
      %p121 = scmp.ne.s32.totalorder %s116, %s118
      %p122 = scmp.eq.s32.totalorder %s19, 0
      %p123 = por %p121, %p122
      %p124 = scmp.ne.s32.totalorder %s116, %s118
      %p125 = scmp.eq.s32.totalorder %s24, 1
      %p126 = por %p124, %p125
      %p127 = scmp.ne.s32.totalorder %s118, %s119
      %p128 = scmp.eq.s32.totalorder %s24, 0
      %p129 = por %p127, %p128
      %p130 = scmp.ne.s32.totalorder %s118, %s119
      %p131 = scmp.eq.s32.totalorder %s25, 1
      %p132 = por %p130, %p131
      %p134 = scmp.ne.s32.totalorder %s119, %s133
      %p135 = scmp.eq.s32.totalorder %s25, 0
      %p136 = por %p134, %p135
      %s137 = ssub.s32 %s19, %s26
      %p138 = scmp.eq.s32.totalorder %s137, 0
      %s140 = sadd.s32 %s139, 1
      %s141 = scalar_select %p138, %s139, %s140
      %p144 = pneg %p138
      %p145 = scmp.eq.s32.totalorder %s19, 1
      %p146 = por %p144, %p145
      %p147 = scmp.ne.s32.totalorder %s139, %s142
      %p148 = scmp.eq.s32.totalorder %s19, 0
      %p149 = por %p147, %p148
      %p150 = scmp.ne.s32.totalorder %s139, %s142
      %p151 = scmp.eq.s32.totalorder %s24, 1
      %p152 = por %p150, %p151
      %p153 = scmp.ne.s32.totalorder %s142, %s143
      %p154 = scmp.eq.s32.totalorder %s24, 0
      %p155 = por %p153, %p154
      %p156 = scmp.ne.s32.totalorder %s142, %s143
      %p157 = scmp.eq.s32.totalorder %s25, 1
      %p158 = por %p156, %p157
      %p160 = scmp.ne.s32.totalorder %s143, %s159
      %p161 = scmp.eq.s32.totalorder %s25, 0
      %p162 = por %p160, %p161
      %p163 = scmp.le.s32.totalorder 1, %s19
      %p164 = scmp.lt.s32.totalorder %s19, 3
      %p165 = pnand %p163, %p164
      %p166 = pneg %p165
      // Predicated region
      $region9: #{tpu_custom_call.1} parent=5 // pred_check
        _
      $region10: #{tpu_custom_call.1} parent=5 // pred_check_branch
        %168 = sbr.rel (%p165) target = $region12
      $region11: #{tpu_custom_call.1} parent=5 // pred_region
        %s169 = ssub.s32 %s19, 1
        // Predicated region
        $region13: #{tpu_custom_call.1} parent=11 // pred_check
          %p170 = pneg %p66
        $region14: #{tpu_custom_call.1} parent=11 // pred_check_branch
          %172 = sbr.rel (%p170) target = $region16
        $region15: #{tpu_custom_call.1} parent=11 // pred_region
          %174 = vsyncadd [#allocation9], 0
          %s176 = sshll.u32 %s1, 4
          %s177 = int_to_ptr.hbm [resolvable:$true] %s176
          %s178 = sshll.u32 [#allocation8], 4
          %s179 = int_to_ptr.vmem [resolvable:$true] %s178
          %181 = dma.hbm_to_vmem [thread:$0]  %s177, 192, %s179, [#allocation9]
        $region16: #{tpu_custom_call.1} parent=11 // pred_fallthru
          _
        // Predicated region
        $region17: #{tpu_custom_call.1} parent=11 // pred_check
          %p182 = pneg %p87
        $region18: #{tpu_custom_call.1} parent=11 // pred_check_branch
          %184 = sbr.rel (%p182) target = $region20
        $region19: #{tpu_custom_call.1} parent=11 // pred_region
          %186 = vsyncadd [#allocation9], 0
          %s188 = sshll.u32 %s2, 4
          %s189 = int_to_ptr.hbm [resolvable:$true] %s188
          %s190 = sshll.u32 [#allocation10], 4
          %s191 = int_to_ptr.vmem [resolvable:$true] %s190
          %193 = dma.hbm_to_vmem [thread:$0]  %s189, 192, %s191, [#allocation9]
        $region20: #{tpu_custom_call.1} parent=11 // pred_fallthru
          _
        // Predicated region
        $region21: #{tpu_custom_call.1} parent=11 // pred_check
          %p194 = pneg %p108
        $region22: #{tpu_custom_call.1} parent=11 // pred_check_branch
          %196 = sbr.rel (%p194) target = $region24
        $region23: #{tpu_custom_call.1} parent=11 // pred_region
          _
        $region24: #{tpu_custom_call.1} parent=11 // pred_fallthru
          _
        // Predicated region
        $region25: #{tpu_custom_call.1} parent=11 // pred_check
          %p197 = pneg %p129
        $region26: #{tpu_custom_call.1} parent=11 // pred_check_branch
          %199 = sbr.rel (%p197) target = $region28
        $region27: #{tpu_custom_call.1} parent=11 // pred_region
          %201 = vsyncadd [#allocation7], 0
          %s203 = sshll.u32 %s4, 4
          %s204 = int_to_ptr.vmem [resolvable:$true] %s203
          %206 = dma.vmem_to_smem %s204, 16, [#allocation11], [#allocation7]
        $region28: #{tpu_custom_call.1} parent=11 // pred_fallthru
          _
      $region12: #{tpu_custom_call.1} parent=5 // pred_fallthru
        _
      %p207 = scmp.lt.s32.totalorder %s19, 2
      // Predicated region
      $region29: #{tpu_custom_call.1} parent=5 // pred_check
        %p208 = pneg %p207
      $region30: #{tpu_custom_call.1} parent=5 // pred_check_branch
        %210 = sbr.rel (%p208) target = $region32
      $region31: #{tpu_custom_call.1} parent=5 // pred_region
        // Predicated region
        $region33: #{tpu_custom_call.1} parent=31 // pred_check
          %p211 = pneg %p39
        $region34: #{tpu_custom_call.1} parent=31 // pred_check_branch
          %213 = sbr.rel (%p211) target = $region36
        $region35: #{tpu_custom_call.1} parent=31 // pred_region
          %s214 = sand.u32 %s29, 1
          %s215 = scalar_lea.sflag [#allocation5], %s214
          %s216 = sand.u32 %s29, 1
          %s217 = smul.addr %s216, 16
          %s218 = scalar_lea.vmem [#allocation4], %s217
          %s219 = smul.u32 2, %s19
          %221 = vsyncadd %s215, 0
          %s222 = smul.addr %s219, 8
          %s223 = scalar_lea.hbm %s0, %s222
          %s224 = sshll.u32 %s223, 4
          %s225 = int_to_ptr.hbm [resolvable:$true] %s224
          %s226 = sshll.u32 %s218, 4
          %s227 = int_to_ptr.vmem [resolvable:$true] %s226
          %232 = dma.hbm_to_vmem [thread:$0]  %s225, 256, %s227, %s215, 128, 128, 8
        $region36: #{tpu_custom_call.1} parent=31 // pred_fallthru
          _
      $region32: #{tpu_custom_call.1} parent=5 // pred_fallthru
        _
      %p233 = scmp.le.s32.totalorder 1, %s19
      %p234 = scmp.lt.s32.totalorder %s19, 3
      %p235 = pnand %p233, %p234
      %p236 = pneg %p235
      // Predicated region
      $region37: #{tpu_custom_call.1} parent=5 // pred_check
        _
      $region38: #{tpu_custom_call.1} parent=5 // pred_check_branch
        %238 = sbr.rel (%p235) target = $region40
      $region39: #{tpu_custom_call.1} parent=5 // pred_region
        %s239 = ssub.s32 %s19, 1
        %s240 = sand.u32 %s32, 1
        %s241 = scalar_lea.sflag [#allocation5], %s240
        %s242 = sand.u32 %s32, 1
        %s243 = smul.addr %s242, 16
        %s244 = scalar_lea.vmem [#allocation4], %s243
        // Predicated region
        $region41: #{tpu_custom_call.1} parent=39 // pred_check
          %p245 = pneg %p45
        $region42: #{tpu_custom_call.1} parent=39 // pred_check_branch
          %247 = sbr.rel (%p245) target = $region44
        $region43: #{tpu_custom_call.1} parent=39 // pred_region
          %249 = dma.done %s241, 256
        $region44: #{tpu_custom_call.1} parent=39 // pred_fallthru
          _
        // Predicated region
        $region45: #{tpu_custom_call.1} parent=39 // pred_check
          %p250 = pneg %p66
        $region46: #{tpu_custom_call.1} parent=39 // pred_check_branch
          %252 = sbr.rel (%p250) target = $region48
        $region47: #{tpu_custom_call.1} parent=39 // pred_region
          %254 = dma.done [#allocation9], 192
        $region48: #{tpu_custom_call.1} parent=39 // pred_fallthru
          _
        // Predicated region
        $region49: #{tpu_custom_call.1} parent=39 // pred_check
          %p255 = pneg %p87
        $region50: #{tpu_custom_call.1} parent=39 // pred_check_branch
          %257 = sbr.rel (%p255) target = $region52
        $region51: #{tpu_custom_call.1} parent=39 // pred_region
          %259 = dma.done [#allocation9], 192
        $region52: #{tpu_custom_call.1} parent=39 // pred_fallthru
          _
        // Predicated region
        $region53: #{tpu_custom_call.1} parent=39 // pred_check
          %p260 = pneg %p129
        $region54: #{tpu_custom_call.1} parent=39 // pred_check_branch
          %262 = sbr.rel (%p260) target = $region56
        $region55: #{tpu_custom_call.1} parent=39 // pred_region
          %264 = dma.done [#allocation7], 16
        $region56: #{tpu_custom_call.1} parent=39 // pred_fallthru
          _
        %265 = sfence
        %s266 = sand.u32 %s32, 1
        %s267 = scalar_lea.sflag [#allocation5], %s266
        %s268 = sand.u32 %s32, 1
        %s269 = smul.addr %s268, 16
        %s270 = scalar_lea.vmem [#allocation4], %s269
        %p271 = pneg %p45
        %p272 = pneg %p42
        %p273 = pneg %p66
        %p274 = pneg %p63
        %p275 = pneg %p87
        %p276 = pneg %p84
        %p277 = pneg %p108
        %p278 = pneg %p105
        %p279 = pneg %p129
        %p280 = pneg %p126
        %p281 = pneg %p155
        %p282 = pneg %p152
        %s283 = sand.u32 %s142, 1
        %s284 = scalar_lea.sflag [#allocation6], %s283
        %s285 = sand.u32 %s142, 1
        %s286 = smul.addr %s285, 16
        %s287 = scalar_lea.vmem [#allocation12], %s286
        %s288 = smul.u32 2, %s24
        %s289 = smul.u32 2, %s24
        %vm291 = vcmask 158720
        %292 = vst.msk [vmem:[#allocation3] sm:$0xf] %vm291, 0
        %vm293 = vcmask 322720
        %294 = vst.msk [vmem:[#allocation3 + $0x4] sm:$0xf] %vm293, 0
        %v295 = vld [vmem:[%s244] sm:$0xff]
        %v296 = vpack.c.bf16 %v295, %v295
        %298 = vrot.lane.b32.xlu0 %v296, 20
        %v299 = vpop.permute.xlu0 %298
        %v300 = vrot.slane %v299, 4
        %vm301 = vcmask 162816
        %v302 = vsel %vm301, %v300, %v299
        %vm304 = vcmask 1043616
        %vm305 = vcmask 162820
        %vm306 = vmor %vm305, %vm304
        %307 = vst.msk [vmem:[#allocation3] sm:$0xff] %vm306, %v302
        %v308 = vld [vmem:[#allocation3] sm:$0xff]
        %v310 = vunpack.c.l.b16 %v308
        %v311 = vunpack.c.h.b16 %v308
        %v312 = vpack.c.b16 %v310, %v310
        %v313 = vpack.c.b16 %v311, %v311
        %314 = vrot.lane.b32.xlu0 %v312, 127
        %v315 = vpop.permute.xlu0 %314
        %316 = vrot.lane.b32.xlu0 %v313, 127
        %v317 = vpop.permute.xlu0 %316
        %vm318 = vcmask 1039360
        %v319 = vsel %vm318, %v315, %v317
        %vm320 = vcmask 1043456
        %v323 = vsel %vm320, %v308, %v319
        %v325 = vunpack.c.l.b16 %v323
        %v326 = vunpack.c.h.b16 %v323
        %v327 = vpack.c.b16 %v325, %v325
        %v328 = vpack.c.b16 %v326, %v326
        %331 = vst [vmem:[#allocation2] sm:$0xf] %v327
        %332 = vst [vmem:[#allocation2 + $0x8] sm:$0xf] %v328
        %v334 = vsel %vm320, %v312, %v319
        %v337 = vsel %vm320, %v313, %v317
        %v340 = vunpack.c.l.b16 %v334
        %v341 = vunpack.c.l.b16 %v337
        %v342 = vunpack.c.h.b16 %v334
        %v343 = vunpack.c.h.b16 %v337
        %v344 = vpack.c.b16 %v341, %v340
        %v345 = vpack.c.b16 %v343, %v342
        %346 = vrot.lane.b32.xlu0 %v344, 126
        %v347 = vpop.permute.xlu0 %346
        %348 = vrot.lane.b32.xlu0 %v345, 126
        %v349 = vpop.permute.xlu0 %348
        %v350 = vrot.slane %v347, 4
        %v351 = vrot.slane %v349, 4
        %vm352 = vcmask 1031168
        %v353 = vsel %vm352, %v347, %v350
        %v354 = vsel %vm352, %v349, %v351
        %357 = vst [vmem:[#allocation2 + $0x10] sm:$0xf] %v353
        %358 = vst [vmem:[#allocation2 + $0x18] sm:$0xf] %v354
        %359 = vrot.lane.b32.xlu0 %v344, 124
        %v360 = vpop.permute.xlu0 %359
        %361 = vrot.lane.b32.xlu0 %v345, 124
        %v362 = vpop.permute.xlu0 %361
        %v363 = vrot.slane %v360, 4
        %v364 = vrot.slane %v362, 4
        %vm365 = vcmask 1014784
        %v366 = vsel %vm365, %v360, %v363
        %v367 = vsel %vm365, %v362, %v364
        %370 = vst [vmem:[#allocation2 + $0x20] sm:$0xf] %v366
        %371 = vst [vmem:[#allocation2 + $0x28] sm:$0xf] %v367
        %372 = vrot.lane.b32.xlu0 %v344, 122
        %v373 = vpop.permute.xlu0 %372
        %374 = vrot.lane.b32.xlu0 %v345, 122
        %v375 = vpop.permute.xlu0 %374
        %v376 = vrot.slane %v373, 4
        %v377 = vrot.slane %v375, 4
        %vm378 = vcmask 998400
        %v379 = vsel %vm378, %v373, %v376
        %v380 = vsel %vm378, %v375, %v377
        %383 = vst [vmem:[#allocation2 + $0x30] sm:$0xf] %v379
        %384 = vst [vmem:[#allocation2 + $0x38] sm:$0xf] %v380
        %385 = vrot.lane.b32.xlu0 %v344, 120
        %v386 = vpop.permute.xlu0 %385
        %387 = vrot.lane.b32.xlu0 %v345, 120
        %v388 = vpop.permute.xlu0 %387
        %v389 = vrot.slane %v386, 4
        %v390 = vrot.slane %v388, 4
        %vm391 = vcmask 982016
        %v392 = vsel %vm391, %v386, %v389
        %v393 = vsel %vm391, %v388, %v390
        %396 = vst [vmem:[#allocation2 + $0x40] sm:$0xf] %v392
        %397 = vst [vmem:[#allocation2 + $0x48] sm:$0xf] %v393
        %398 = vrot.lane.b32.xlu0 %v344, 118
        %v399 = vpop.permute.xlu0 %398
        %400 = vrot.lane.b32.xlu0 %v345, 118
        %v401 = vpop.permute.xlu0 %400
        %v402 = vrot.slane %v399, 4
        %v403 = vrot.slane %v401, 4
        %vm404 = vcmask 965632
        %v405 = vsel %vm404, %v399, %v402
        %v406 = vsel %vm404, %v401, %v403
        %409 = vst [vmem:[#allocation2 + $0x50] sm:$0xf] %v405
        %410 = vst [vmem:[#allocation2 + $0x58] sm:$0xf] %v406
        %411 = vrot.lane.b32.xlu0 %v344, 116
        %v412 = vpop.permute.xlu0 %411
        %413 = vrot.lane.b32.xlu0 %v345, 116
        %v414 = vpop.permute.xlu0 %413
        %v415 = vrot.slane %v412, 4
        %v416 = vrot.slane %v414, 4
        %vm417 = vcmask 949248
        %v418 = vsel %vm417, %v412, %v415
        %v419 = vsel %vm417, %v414, %v416
        %422 = vst [vmem:[#allocation2 + $0x60] sm:$0xf] %v418
        %423 = vst [vmem:[#allocation2 + $0x68] sm:$0xf] %v419
        %424 = vrot.lane.b32.xlu0 %v344, 114
        %v425 = vpop.permute.xlu0 %424
        %426 = vrot.lane.b32.xlu0 %v345, 114
        %v427 = vpop.permute.xlu0 %426
        %v428 = vrot.slane %v425, 4
        %v429 = vrot.slane %v427, 4
        %vm430 = vcmask 932864
        %v431 = vsel %vm430, %v425, %v428
        %v432 = vsel %vm430, %v427, %v429
        %435 = vst [vmem:[#allocation2 + $0x70] sm:$0xf] %v431
        %436 = vst [vmem:[#allocation2 + $0x78] sm:$0xf] %v432
        %437 = vrot.lane.b32.xlu0 %v344, 112
        %v438 = vpop.permute.xlu0 %437
        %439 = vrot.lane.b32.xlu0 %v345, 112
        %v440 = vpop.permute.xlu0 %439
        %v441 = vrot.slane %v438, 4
        %v442 = vrot.slane %v440, 4
        %vm443 = vcmask 916480
        %v444 = vsel %vm443, %v438, %v441
        %v445 = vsel %vm443, %v440, %v442
        %448 = vst [vmem:[#allocation2 + $0x80] sm:$0xf] %v444
        %449 = vst [vmem:[#allocation2 + $0x88] sm:$0xf] %v445
        %450 = vrot.lane.b32.xlu0 %v344, 110
        %v451 = vpop.permute.xlu0 %450
        %452 = vrot.lane.b32.xlu0 %v345, 110
        %v453 = vpop.permute.xlu0 %452
        %v454 = vrot.slane %v451, 4
        %v455 = vrot.slane %v453, 4
        %vm456 = vcmask 900096
        %v457 = vsel %vm456, %v451, %v454
        %v458 = vsel %vm456, %v453, %v455
        %461 = vst [vmem:[#allocation2 + $0x90] sm:$0xf] %v457
        %462 = vst [vmem:[#allocation2 + $0x98] sm:$0xf] %v458
        %463 = vrot.lane.b32.xlu0 %v344, 108
        %v464 = vpop.permute.xlu0 %463
        %465 = vrot.lane.b32.xlu0 %v345, 108
        %v466 = vpop.permute.xlu0 %465
        %v467 = vrot.slane %v464, 4
        %v468 = vrot.slane %v466, 4
        %vm469 = vcmask 883712
        %v470 = vsel %vm469, %v464, %v467
        %v471 = vsel %vm469, %v466, %v468
        %474 = vst [vmem:[#allocation2 + $0xa0] sm:$0xf] %v470
        %475 = vst [vmem:[#allocation2 + $0xa8] sm:$0xf] %v471
        %476 = vrot.lane.b32.xlu0 %v344, 106
        %v477 = vpop.permute.xlu0 %476
        %478 = vrot.lane.b32.xlu0 %v345, 106
        %v479 = vpop.permute.xlu0 %478
        %v480 = vrot.slane %v477, 4
        %v481 = vrot.slane %v479, 4
        %vm482 = vcmask 867328
        %v483 = vsel %vm482, %v477, %v480
        %v484 = vsel %vm482, %v479, %v481
        %487 = vst [vmem:[#allocation2 + $0xb0] sm:$0xf] %v483
        %488 = vst [vmem:[#allocation2 + $0xb8] sm:$0xf] %v484
        %489 = vrot.lane.b32.xlu0 %v344, 104
        %v490 = vpop.permute.xlu0 %489
        %491 = vrot.lane.b32.xlu0 %v345, 104
        %v492 = vpop.permute.xlu0 %491
        %v493 = vrot.slane %v490, 4
        %v494 = vrot.slane %v492, 4
        %vm495 = vcmask 850944
        %v496 = vsel %vm495, %v490, %v493
        %v497 = vsel %vm495, %v492, %v494
        %500 = vst [vmem:[#allocation2 + $0xc0] sm:$0xf] %v496
        %501 = vst [vmem:[#allocation2 + $0xc8] sm:$0xf] %v497
        %502 = vrot.lane.b32.xlu0 %v344, 102
        %v503 = vpop.permute.xlu0 %502
        %504 = vrot.lane.b32.xlu0 %v345, 102
        %v505 = vpop.permute.xlu0 %504
        %v506 = vrot.slane %v503, 4
        %v507 = vrot.slane %v505, 4
        %vm508 = vcmask 834560
        %v509 = vsel %vm508, %v503, %v506
        %v510 = vsel %vm508, %v505, %v507
        %513 = vst [vmem:[#allocation2 + $0xd0] sm:$0xf] %v509
        %514 = vst [vmem:[#allocation2 + $0xd8] sm:$0xf] %v510
        %515 = vrot.lane.b32.xlu0 %v344, 100
        %v516 = vpop.permute.xlu0 %515
        %517 = vrot.lane.b32.xlu0 %v345, 100
        %v518 = vpop.permute.xlu0 %517
        %v519 = vrot.slane %v516, 4
        %v520 = vrot.slane %v518, 4
        %vm521 = vcmask 818176
        %v522 = vsel %vm521, %v516, %v519
        %v523 = vsel %vm521, %v518, %v520
        %526 = vst [vmem:[#allocation2 + $0xe0] sm:$0xf] %v522
        %527 = vst [vmem:[#allocation2 + $0xe8] sm:$0xf] %v523
        %528 = vrot.lane.b32.xlu0 %v344, 98
        %v529 = vpop.permute.xlu0 %528
        %530 = vrot.lane.b32.xlu0 %v345, 98
        %v531 = vpop.permute.xlu0 %530
        %v532 = vrot.slane %v529, 4
        %v533 = vrot.slane %v531, 4
        %vm534 = vcmask 801792
        %v535 = vsel %vm534, %v529, %v532
        %v536 = vsel %vm534, %v531, %v533
        %539 = vst [vmem:[#allocation2 + $0xf0] sm:$0xf] %v535
        %540 = vst [vmem:[#allocation2 + $0xf8] sm:$0xf] %v536
        %541 = vrot.lane.b32.xlu0 %v344, 96
        %v542 = vpop.permute.xlu0 %541
        %543 = vrot.lane.b32.xlu0 %v345, 96
        %v544 = vpop.permute.xlu0 %543
        %v545 = vrot.slane %v542, 4
        %v546 = vrot.slane %v544, 4
        %vm547 = vcmask 785408
        %v548 = vsel %vm547, %v542, %v545
        %v549 = vsel %vm547, %v544, %v546
        %552 = vst [vmem:[#allocation2 + $0x100] sm:$0xf] %v548
        %553 = vst [vmem:[#allocation2 + $0x108] sm:$0xf] %v549
        %554 = vrot.lane.b32.xlu0 %v344, 94
        %v555 = vpop.permute.xlu0 %554
        %556 = vrot.lane.b32.xlu0 %v345, 94
        %v557 = vpop.permute.xlu0 %556
        %v558 = vrot.slane %v555, 4
        %v559 = vrot.slane %v557, 4
        %vm560 = vcmask 769024
        %v561 = vsel %vm560, %v555, %v558
        %v562 = vsel %vm560, %v557, %v559
        %565 = vst [vmem:[#allocation2 + $0x110] sm:$0xf] %v561
        %566 = vst [vmem:[#allocation2 + $0x118] sm:$0xf] %v562
        %567 = vrot.lane.b32.xlu0 %v344, 92
        %v568 = vpop.permute.xlu0 %567
        %569 = vrot.lane.b32.xlu0 %v345, 92
        %v570 = vpop.permute.xlu0 %569
        %v571 = vrot.slane %v568, 4
        %v572 = vrot.slane %v570, 4
        %vm573 = vcmask 752640
        %v574 = vsel %vm573, %v568, %v571
        %v575 = vsel %vm573, %v570, %v572
        %578 = vst [vmem:[#allocation2 + $0x120] sm:$0xf] %v574
        %579 = vst [vmem:[#allocation2 + $0x128] sm:$0xf] %v575
        %580 = vrot.lane.b32.xlu0 %v344, 90
        %v581 = vpop.permute.xlu0 %580
        %582 = vrot.lane.b32.xlu0 %v345, 90
        %v583 = vpop.permute.xlu0 %582
        %v584 = vrot.slane %v581, 4
        %v585 = vrot.slane %v583, 4
        %vm586 = vcmask 736256
        %v587 = vsel %vm586, %v581, %v584
        %v588 = vsel %vm586, %v583, %v585
        %591 = vst [vmem:[#allocation2 + $0x130] sm:$0xf] %v587
        %592 = vst [vmem:[#allocation2 + $0x138] sm:$0xf] %v588
        %v593 = vsel %vm320, %v312, %v312
        %v594 = vsel %vm320, %v313, %v313
        %v597 = vunpack.c.l.b16 %v593
        %v598 = vunpack.c.l.b16 %v594
        %v599 = vunpack.c.h.b16 %v593
        %v600 = vunpack.c.h.b16 %v594
        %v601 = vpack.c.b16 %v598, %v597
        %v602 = vpack.c.b16 %v600, %v599
        %603 = vrot.lane.b32.xlu0 %v601, 88
        %v604 = vpop.permute.xlu0 %603
        %605 = vrot.lane.b32.xlu0 %v602, 88
        %v606 = vpop.permute.xlu0 %605
        %v607 = vrot.slane %v604, 4
        %v608 = vrot.slane %v606, 4
        %vm609 = vcmask 719872
        %v610 = vsel %vm609, %v604, %v607
        %v611 = vsel %vm609, %v606, %v608
        %614 = vst [vmem:[#allocation2 + $0x140] sm:$0xf] %v610
        %615 = vst [vmem:[#allocation2 + $0x148] sm:$0xf] %v611
        %s616 = scalar_lea.vmem %s244, 8 [#allocation4]
        %v617 = vld [vmem:[%s616] sm:$0xff]
        %v618 = vpack.c.bf16 %v617, %v617
        %620 = vrot.lane.b32.xlu0 %v618, 20
        %v621 = vpop.permute.xlu0 %620
        %v622 = vrot.slane %v621, 4
        %v623 = vsel %vm301, %v622, %v621
        %625 = vst.msk [vmem:[#allocation3] sm:$0xff] %vm306, %v623
        %v626 = vld [vmem:[#allocation3] sm:$0xff]
        %v628 = vunpack.c.l.b16 %v626
        %v629 = vunpack.c.h.b16 %v626
        %v630 = vpack.c.b16 %v628, %v628
        %v631 = vpack.c.b16 %v629, %v629
        %632 = vrot.lane.b32.xlu0 %v630, 127
        %v633 = vpop.permute.xlu0 %632
        %634 = vrot.lane.b32.xlu0 %v631, 127
        %v635 = vpop.permute.xlu0 %634
        %v636 = vsel %vm318, %v633, %v635
        %v639 = vsel %vm320, %v626, %v636
        %v641 = vunpack.c.l.b16 %v639
        %v642 = vunpack.c.h.b16 %v639
        %v643 = vpack.c.b16 %v641, %v641
        %v644 = vpack.c.b16 %v642, %v642
        %647 = vst [vmem:[#allocation2 + $0x4] sm:$0xf] %v643
        %648 = vst [vmem:[#allocation2 + $0xc] sm:$0xf] %v644
        %v650 = vsel %vm320, %v630, %v636
        %v653 = vsel %vm320, %v631, %v635
        %v656 = vunpack.c.l.b16 %v650
        %v657 = vunpack.c.l.b16 %v653
        %v658 = vunpack.c.h.b16 %v650
        %v659 = vunpack.c.h.b16 %v653
        %v660 = vpack.c.b16 %v657, %v656
        %v661 = vpack.c.b16 %v659, %v658
        %662 = vrot.lane.b32.xlu0 %v660, 126
        %v663 = vpop.permute.xlu0 %662
        %664 = vrot.lane.b32.xlu0 %v661, 126
        %v665 = vpop.permute.xlu0 %664
        %v666 = vrot.slane %v663, 4
        %v667 = vrot.slane %v665, 4
        %v668 = vsel %vm352, %v663, %v666
        %v669 = vsel %vm352, %v665, %v667
        %672 = vst [vmem:[#allocation2 + $0x14] sm:$0xf] %v668
        %673 = vst [vmem:[#allocation2 + $0x1c] sm:$0xf] %v669
        %674 = vrot.lane.b32.xlu0 %v660, 124
        %v675 = vpop.permute.xlu0 %674
        %676 = vrot.lane.b32.xlu0 %v661, 124
        %v677 = vpop.permute.xlu0 %676
        %v678 = vrot.slane %v675, 4
        %v679 = vrot.slane %v677, 4
        %v680 = vsel %vm365, %v675, %v678
        %v681 = vsel %vm365, %v677, %v679
        %684 = vst [vmem:[#allocation2 + $0x24] sm:$0xf] %v680
        %685 = vst [vmem:[#allocation2 + $0x2c] sm:$0xf] %v681
        %686 = vrot.lane.b32.xlu0 %v660, 122
        %v687 = vpop.permute.xlu0 %686
        %688 = vrot.lane.b32.xlu0 %v661, 122
        %v689 = vpop.permute.xlu0 %688
        %v690 = vrot.slane %v687, 4
        %v691 = vrot.slane %v689, 4
        %v692 = vsel %vm378, %v687, %v690
        %v693 = vsel %vm378, %v689, %v691
        %696 = vst [vmem:[#allocation2 + $0x34] sm:$0xf] %v692
        %697 = vst [vmem:[#allocation2 + $0x3c] sm:$0xf] %v693
        %698 = vrot.lane.b32.xlu0 %v660, 120
        %v699 = vpop.permute.xlu0 %698
        %700 = vrot.lane.b32.xlu0 %v661, 120
        %v701 = vpop.permute.xlu0 %700
        %v702 = vrot.slane %v699, 4
        %v703 = vrot.slane %v701, 4
        %v704 = vsel %vm391, %v699, %v702
        %v705 = vsel %vm391, %v701, %v703
        %708 = vst [vmem:[#allocation2 + $0x44] sm:$0xf] %v704
        %709 = vst [vmem:[#allocation2 + $0x4c] sm:$0xf] %v705
        %710 = vrot.lane.b32.xlu0 %v660, 118
        %v711 = vpop.permute.xlu0 %710
        %712 = vrot.lane.b32.xlu0 %v661, 118
        %v713 = vpop.permute.xlu0 %712
        %v714 = vrot.slane %v711, 4
        %v715 = vrot.slane %v713, 4
        %v716 = vsel %vm404, %v711, %v714
        %v717 = vsel %vm404, %v713, %v715
        %720 = vst [vmem:[#allocation2 + $0x54] sm:$0xf] %v716
        %721 = vst [vmem:[#allocation2 + $0x5c] sm:$0xf] %v717
        %722 = vrot.lane.b32.xlu0 %v660, 116
        %v723 = vpop.permute.xlu0 %722
        %724 = vrot.lane.b32.xlu0 %v661, 116
        %v725 = vpop.permute.xlu0 %724
        %v726 = vrot.slane %v723, 4
        %v727 = vrot.slane %v725, 4
        %v728 = vsel %vm417, %v723, %v726
        %v729 = vsel %vm417, %v725, %v727
        %732 = vst [vmem:[#allocation2 + $0x64] sm:$0xf] %v728
        %733 = vst [vmem:[#allocation2 + $0x6c] sm:$0xf] %v729
        %734 = vrot.lane.b32.xlu0 %v660, 114
        %v735 = vpop.permute.xlu0 %734
        %736 = vrot.lane.b32.xlu0 %v661, 114
        %v737 = vpop.permute.xlu0 %736
        %v738 = vrot.slane %v735, 4
        %v739 = vrot.slane %v737, 4
        %v740 = vsel %vm430, %v735, %v738
        %v741 = vsel %vm430, %v737, %v739
        %744 = vst [vmem:[#allocation2 + $0x74] sm:$0xf] %v740
        %745 = vst [vmem:[#allocation2 + $0x7c] sm:$0xf] %v741
        %746 = vrot.lane.b32.xlu0 %v660, 112
        %v747 = vpop.permute.xlu0 %746
        %748 = vrot.lane.b32.xlu0 %v661, 112
        %v749 = vpop.permute.xlu0 %748
        %v750 = vrot.slane %v747, 4
        %v751 = vrot.slane %v749, 4
        %v752 = vsel %vm443, %v747, %v750
        %v753 = vsel %vm443, %v749, %v751
        %756 = vst [vmem:[#allocation2 + $0x84] sm:$0xf] %v752
        %757 = vst [vmem:[#allocation2 + $0x8c] sm:$0xf] %v753
        %758 = vrot.lane.b32.xlu0 %v660, 110
        %v759 = vpop.permute.xlu0 %758
        %760 = vrot.lane.b32.xlu0 %v661, 110
        %v761 = vpop.permute.xlu0 %760
        %v762 = vrot.slane %v759, 4
        %v763 = vrot.slane %v761, 4
        %v764 = vsel %vm456, %v759, %v762
        %v765 = vsel %vm456, %v761, %v763
        %768 = vst [vmem:[#allocation2 + $0x94] sm:$0xf] %v764
        %769 = vst [vmem:[#allocation2 + $0x9c] sm:$0xf] %v765
        %770 = vrot.lane.b32.xlu0 %v660, 108
        %v771 = vpop.permute.xlu0 %770
        %772 = vrot.lane.b32.xlu0 %v661, 108
        %v773 = vpop.permute.xlu0 %772
        %v774 = vrot.slane %v771, 4
        %v775 = vrot.slane %v773, 4
        %v776 = vsel %vm469, %v771, %v774
        %v777 = vsel %vm469, %v773, %v775
        %780 = vst [vmem:[#allocation2 + $0xa4] sm:$0xf] %v776
        %781 = vst [vmem:[#allocation2 + $0xac] sm:$0xf] %v777
        %782 = vrot.lane.b32.xlu0 %v660, 106
        %v783 = vpop.permute.xlu0 %782
        %784 = vrot.lane.b32.xlu0 %v661, 106
        %v785 = vpop.permute.xlu0 %784
        %v786 = vrot.slane %v783, 4
        %v787 = vrot.slane %v785, 4
        %v788 = vsel %vm482, %v783, %v786
        %v789 = vsel %vm482, %v785, %v787
        %792 = vst [vmem:[#allocation2 + $0xb4] sm:$0xf] %v788
        %793 = vst [vmem:[#allocation2 + $0xbc] sm:$0xf] %v789
        %794 = vrot.lane.b32.xlu0 %v660, 104
        %v795 = vpop.permute.xlu0 %794
        %796 = vrot.lane.b32.xlu0 %v661, 104
        %v797 = vpop.permute.xlu0 %796
        %v798 = vrot.slane %v795, 4
        %v799 = vrot.slane %v797, 4
        %v800 = vsel %vm495, %v795, %v798
        %v801 = vsel %vm495, %v797, %v799
        %804 = vst [vmem:[#allocation2 + $0xc4] sm:$0xf] %v800
        %805 = vst [vmem:[#allocation2 + $0xcc] sm:$0xf] %v801
        %806 = vrot.lane.b32.xlu0 %v660, 102
        %v807 = vpop.permute.xlu0 %806
        %808 = vrot.lane.b32.xlu0 %v661, 102
        %v809 = vpop.permute.xlu0 %808
        %v810 = vrot.slane %v807, 4
        %v811 = vrot.slane %v809, 4
        %v812 = vsel %vm508, %v807, %v810
        %v813 = vsel %vm508, %v809, %v811
        %816 = vst [vmem:[#allocation2 + $0xd4] sm:$0xf] %v812
        %817 = vst [vmem:[#allocation2 + $0xdc] sm:$0xf] %v813
        %818 = vrot.lane.b32.xlu0 %v660, 100
        %v819 = vpop.permute.xlu0 %818
        %820 = vrot.lane.b32.xlu0 %v661, 100
        %v821 = vpop.permute.xlu0 %820
        %v822 = vrot.slane %v819, 4
        %v823 = vrot.slane %v821, 4
        %v824 = vsel %vm521, %v819, %v822
        %v825 = vsel %vm521, %v821, %v823
        %828 = vst [vmem:[#allocation2 + $0xe4] sm:$0xf] %v824
        %829 = vst [vmem:[#allocation2 + $0xec] sm:$0xf] %v825
        %830 = vrot.lane.b32.xlu0 %v660, 98
        %v831 = vpop.permute.xlu0 %830
        %832 = vrot.lane.b32.xlu0 %v661, 98
        %v833 = vpop.permute.xlu0 %832
        %v834 = vrot.slane %v831, 4
        %v835 = vrot.slane %v833, 4
        %v836 = vsel %vm534, %v831, %v834
        %v837 = vsel %vm534, %v833, %v835
        %840 = vst [vmem:[#allocation2 + $0xf4] sm:$0xf] %v836
        %841 = vst [vmem:[#allocation2 + $0xfc] sm:$0xf] %v837
        %842 = vrot.lane.b32.xlu0 %v660, 96
        %v843 = vpop.permute.xlu0 %842
        %844 = vrot.lane.b32.xlu0 %v661, 96
        %v845 = vpop.permute.xlu0 %844
        %v846 = vrot.slane %v843, 4
        %v847 = vrot.slane %v845, 4
        %v848 = vsel %vm547, %v843, %v846
        %v849 = vsel %vm547, %v845, %v847
        %852 = vst [vmem:[#allocation2 + $0x104] sm:$0xf] %v848
        %853 = vst [vmem:[#allocation2 + $0x10c] sm:$0xf] %v849
        %854 = vrot.lane.b32.xlu0 %v660, 94
        %v855 = vpop.permute.xlu0 %854
        %856 = vrot.lane.b32.xlu0 %v661, 94
        %v857 = vpop.permute.xlu0 %856
        %v858 = vrot.slane %v855, 4
        %v859 = vrot.slane %v857, 4
        %v860 = vsel %vm560, %v855, %v858
        %v861 = vsel %vm560, %v857, %v859
        %864 = vst [vmem:[#allocation2 + $0x114] sm:$0xf] %v860
        %865 = vst [vmem:[#allocation2 + $0x11c] sm:$0xf] %v861
        %866 = vrot.lane.b32.xlu0 %v660, 92
        %v867 = vpop.permute.xlu0 %866
        %868 = vrot.lane.b32.xlu0 %v661, 92
        %v869 = vpop.permute.xlu0 %868
        %v870 = vrot.slane %v867, 4
        %v871 = vrot.slane %v869, 4
        %v872 = vsel %vm573, %v867, %v870
        %v873 = vsel %vm573, %v869, %v871
        %876 = vst [vmem:[#allocation2 + $0x124] sm:$0xf] %v872
        %877 = vst [vmem:[#allocation2 + $0x12c] sm:$0xf] %v873
        %878 = vrot.lane.b32.xlu0 %v660, 90
        %v879 = vpop.permute.xlu0 %878
        %880 = vrot.lane.b32.xlu0 %v661, 90
        %v881 = vpop.permute.xlu0 %880
        %v882 = vrot.slane %v879, 4
        %v883 = vrot.slane %v881, 4
        %v884 = vsel %vm586, %v879, %v882
        %v885 = vsel %vm586, %v881, %v883
        %888 = vst [vmem:[#allocation2 + $0x134] sm:$0xf] %v884
        %889 = vst [vmem:[#allocation2 + $0x13c] sm:$0xf] %v885
        %v890 = vsel %vm320, %v630, %v630
        %v891 = vsel %vm320, %v631, %v631
        %v894 = vunpack.c.l.b16 %v890
        %v895 = vunpack.c.l.b16 %v891
        %v896 = vunpack.c.h.b16 %v890
        %v897 = vunpack.c.h.b16 %v891
        %v898 = vpack.c.b16 %v895, %v894
        %v899 = vpack.c.b16 %v897, %v896
        %900 = vrot.lane.b32.xlu0 %v898, 88
        %v901 = vpop.permute.xlu0 %900
        %902 = vrot.lane.b32.xlu0 %v899, 88
        %v903 = vpop.permute.xlu0 %902
        %v904 = vrot.slane %v901, 4
        %v905 = vrot.slane %v903, 4
        %v906 = vsel %vm609, %v901, %v904
        %v907 = vsel %vm609, %v903, %v905
        %910 = vst [vmem:[#allocation2 + $0x144] sm:$0xf] %v906
        %911 = vst [vmem:[#allocation2 + $0x14c] sm:$0xf] %v907
        %v912 = vld [vmem:[#allocation8] sm:$0xff]
        %v913 = vld [vmem:[#allocation8 + $0x8] sm:$0xf]
        %v914 = vld [vmem:[#allocation2] sm:$0xff]
        %v915 = vld [vmem:[#allocation2 + $0x8] sm:$0xff]
        %v916 = vld [vmem:[#allocation2 + $0x10] sm:$0xff]
        %v917 = vld [vmem:[#allocation2 + $0x18] sm:$0xff]
        %v918 = vld [vmem:[#allocation2 + $0x20] sm:$0xff]
        %v919 = vld [vmem:[#allocation2 + $0x28] sm:$0xff]
        %v920 = vld [vmem:[#allocation2 + $0x30] sm:$0xff]
        %v921 = vld [vmem:[#allocation2 + $0x38] sm:$0xff]
        %v922 = vld [vmem:[#allocation2 + $0x40] sm:$0xff]
        %v923 = vld [vmem:[#allocation2 + $0x48] sm:$0xff]
        %v924 = vld [vmem:[#allocation2 + $0x50] sm:$0xff]
        %v925 = vld [vmem:[#allocation2 + $0x58] sm:$0xff]
        %v926 = vld [vmem:[#allocation2 + $0x60] sm:$0xff]
        %v927 = vld [vmem:[#allocation2 + $0x68] sm:$0xff]
        %v928 = vld [vmem:[#allocation2 + $0x70] sm:$0xff]
        %v929 = vld [vmem:[#allocation2 + $0x78] sm:$0xff]
        %v930 = vld [vmem:[#allocation2 + $0x80] sm:$0xff]
        %v931 = vld [vmem:[#allocation2 + $0x88] sm:$0xff]
        %v932 = vld [vmem:[#allocation2 + $0x90] sm:$0xff]
        %v933 = vld [vmem:[#allocation2 + $0x98] sm:$0xff]
        %v934 = vld [vmem:[#allocation2 + $0xa0] sm:$0xff]
        %v935 = vld [vmem:[#allocation2 + $0xa8] sm:$0xff]
        %v936 = vld [vmem:[#allocation2 + $0xb0] sm:$0xff]
        %v937 = vld [vmem:[#allocation2 + $0xb8] sm:$0xff]
        %v938 = vld [vmem:[#allocation2 + $0xc0] sm:$0xff]
        %v939 = vld [vmem:[#allocation2 + $0xc8] sm:$0xff]
        %v940 = vld [vmem:[#allocation2 + $0xd0] sm:$0xff]
        %v941 = vld [vmem:[#allocation2 + $0xd8] sm:$0xff]
        %v942 = vld [vmem:[#allocation2 + $0xe0] sm:$0xff]
        %v943 = vld [vmem:[#allocation2 + $0xe8] sm:$0xff]
        %v944 = vld [vmem:[#allocation2 + $0xf0] sm:$0xff]
        %v945 = vld [vmem:[#allocation2 + $0xf8] sm:$0xff]
        %v946 = vld [vmem:[#allocation2 + $0x100] sm:$0xff]
        %v947 = vld [vmem:[#allocation2 + $0x108] sm:$0xff]
        %v948 = vld [vmem:[#allocation2 + $0x110] sm:$0xff]
        %v949 = vld [vmem:[#allocation2 + $0x118] sm:$0xff]
        %v950 = vld [vmem:[#allocation2 + $0x120] sm:$0xff]
        %v951 = vld [vmem:[#allocation2 + $0x128] sm:$0xff]
        %v952 = vld [vmem:[#allocation2 + $0x130] sm:$0xff]
        %v953 = vld [vmem:[#allocation2 + $0x138] sm:$0xff]
        %v954 = vld [vmem:[#allocation2 + $0x140] sm:$0xff]
        %v955 = vld [vmem:[#allocation2 + $0x148] sm:$0xff]
        %s956 = sld [smem:[#allocation11]]
        %v957 = vld [vmem:[%s3] sm:$0xff]
        %959 = vset.pattern.permute.xlu0 0
        %960 = vperm.xlu0 %959, %v957
        %v961 = vpop.permute.xlu0 %960
        %v965 = vunpack.c.l.b16 %v912
        %v966 = vunpack.c.h.b16 %v912
        %v967 = vunpack.c.l.b16 %v913
        %v968 = vpack.c.b16 %v965, %v965
        %v969 = vpack.c.b16 %v966, %v966
        %v970 = vpack.c.b16 %v967, %v967
        %v1015 = vunpack.c.l.b16 %v914
        %v1016 = vunpack.c.h.b16 %v914
        %v1017 = vunpack.c.l.b16 %v915
        %v1018 = vunpack.c.h.b16 %v915
        %v1019 = vunpack.c.l.b16 %v916
        %v1020 = vunpack.c.h.b16 %v916
        %v1021 = vunpack.c.l.b16 %v917
        %v1022 = vunpack.c.h.b16 %v917
        %v1023 = vunpack.c.l.b16 %v918
        %v1024 = vunpack.c.h.b16 %v918
        %v1025 = vunpack.c.l.b16 %v919
        %v1026 = vunpack.c.h.b16 %v919
        %v1027 = vunpack.c.l.b16 %v920
        %v1028 = vunpack.c.h.b16 %v920
        %v1029 = vunpack.c.l.b16 %v921
        %v1030 = vunpack.c.h.b16 %v921
        %v1031 = vunpack.c.l.b16 %v922
        %v1032 = vunpack.c.h.b16 %v922
        %v1033 = vunpack.c.l.b16 %v923
        %v1034 = vunpack.c.h.b16 %v923
        %v1035 = vunpack.c.l.b16 %v924
        %v1036 = vunpack.c.h.b16 %v924
        %v1037 = vunpack.c.l.b16 %v925
        %v1038 = vunpack.c.h.b16 %v925
        %v1039 = vunpack.c.l.b16 %v926
        %v1040 = vunpack.c.h.b16 %v926
        %v1041 = vunpack.c.l.b16 %v927
        %v1042 = vunpack.c.h.b16 %v927
        %v1043 = vunpack.c.l.b16 %v928
        %v1044 = vunpack.c.h.b16 %v928
        %v1045 = vunpack.c.l.b16 %v929
        %v1046 = vunpack.c.h.b16 %v929
        %v1047 = vunpack.c.l.b16 %v930
        %v1048 = vunpack.c.h.b16 %v930
        %v1049 = vunpack.c.l.b16 %v931
        %v1050 = vunpack.c.h.b16 %v931
        %v1051 = vunpack.c.l.b16 %v932
        %v1052 = vunpack.c.h.b16 %v932
        %v1053 = vunpack.c.l.b16 %v933
        %v1054 = vunpack.c.h.b16 %v933
        %v1055 = vunpack.c.l.b16 %v934
        %v1056 = vunpack.c.h.b16 %v934
        %v1057 = vunpack.c.l.b16 %v935
        %v1058 = vunpack.c.h.b16 %v935
        %v1059 = vunpack.c.l.b16 %v936
        %v1060 = vunpack.c.h.b16 %v936
        %v1061 = vunpack.c.l.b16 %v937
        %v1062 = vunpack.c.h.b16 %v937
        %v1063 = vunpack.c.l.b16 %v938
        %v1064 = vunpack.c.h.b16 %v938
        %v1065 = vunpack.c.l.b16 %v939
        %v1066 = vunpack.c.h.b16 %v939
        %v1067 = vunpack.c.l.b16 %v940
        %v1068 = vunpack.c.h.b16 %v940
        %v1069 = vunpack.c.l.b16 %v941
        %v1070 = vunpack.c.h.b16 %v941
        %v1071 = vunpack.c.l.b16 %v942
        %v1072 = vunpack.c.h.b16 %v942
        %v1073 = vunpack.c.l.b16 %v943
        %v1074 = vunpack.c.h.b16 %v943
        %v1075 = vunpack.c.l.b16 %v944
        %v1076 = vunpack.c.h.b16 %v944
        %v1077 = vunpack.c.l.b16 %v945
        %v1078 = vunpack.c.h.b16 %v945
        %v1079 = vunpack.c.l.b16 %v946
        %v1080 = vunpack.c.h.b16 %v946
        %v1081 = vunpack.c.l.b16 %v947
        %v1082 = vunpack.c.h.b16 %v947
        %v1083 = vunpack.c.l.b16 %v948
        %v1084 = vunpack.c.h.b16 %v948
        %v1085 = vunpack.c.l.b16 %v949
        %v1086 = vunpack.c.h.b16 %v949
        %v1087 = vunpack.c.l.b16 %v950
        %v1088 = vunpack.c.h.b16 %v950
        %v1089 = vunpack.c.l.b16 %v951
        %v1090 = vunpack.c.h.b16 %v951
        %v1091 = vunpack.c.l.b16 %v952
        %v1092 = vunpack.c.h.b16 %v952
        %v1093 = vunpack.c.l.b16 %v953
        %v1094 = vunpack.c.h.b16 %v953
        %v1095 = vunpack.c.l.b16 %v954
        %v1096 = vunpack.c.h.b16 %v954
        %v1097 = vunpack.c.l.b16 %v955
        %v1098 = vunpack.c.h.b16 %v955
        %v1099 = vpack.c.b16 %v1017, %v1015
        %v1100 = vpack.c.b16 %v1018, %v1016
        %v1101 = vpack.c.b16 %v1021, %v1019
        %v1102 = vpack.c.b16 %v1022, %v1020
        %v1103 = vpack.c.b16 %v1025, %v1023
        %v1104 = vpack.c.b16 %v1026, %v1024
        %v1105 = vpack.c.b16 %v1029, %v1027
        %v1106 = vpack.c.b16 %v1030, %v1028
        %v1107 = vpack.c.b16 %v1033, %v1031
        %v1108 = vpack.c.b16 %v1034, %v1032
        %v1109 = vpack.c.b16 %v1037, %v1035
        %v1110 = vpack.c.b16 %v1038, %v1036
        %v1111 = vpack.c.b16 %v1041, %v1039
        %v1112 = vpack.c.b16 %v1042, %v1040
        %v1113 = vpack.c.b16 %v1045, %v1043
        %v1114 = vpack.c.b16 %v1046, %v1044
        %v1115 = vpack.c.b16 %v1049, %v1047
        %v1116 = vpack.c.b16 %v1050, %v1048
        %v1117 = vpack.c.b16 %v1053, %v1051
        %v1118 = vpack.c.b16 %v1054, %v1052
        %v1119 = vpack.c.b16 %v1057, %v1055
        %v1120 = vpack.c.b16 %v1058, %v1056
        %v1121 = vpack.c.b16 %v1061, %v1059
        %v1122 = vpack.c.b16 %v1062, %v1060
        %v1123 = vpack.c.b16 %v1065, %v1063
        %v1124 = vpack.c.b16 %v1066, %v1064
        %v1125 = vpack.c.b16 %v1069, %v1067
        %v1126 = vpack.c.b16 %v1070, %v1068
        %v1127 = vpack.c.b16 %v1073, %v1071
        %v1128 = vpack.c.b16 %v1074, %v1072
        %v1129 = vpack.c.b16 %v1077, %v1075
        %v1130 = vpack.c.b16 %v1078, %v1076
        %v1131 = vpack.c.b16 %v1081, %v1079
        %v1132 = vpack.c.b16 %v1082, %v1080
        %v1133 = vpack.c.b16 %v1085, %v1083
        %v1134 = vpack.c.b16 %v1086, %v1084
        %v1135 = vpack.c.b16 %v1089, %v1087
        %v1136 = vpack.c.b16 %v1090, %v1088
        %v1137 = vpack.c.b16 %v1093, %v1091
        %v1138 = vpack.c.b16 %v1094, %v1092
        %v1139 = vpack.c.b16 %v1097, %v1095
        %v1140 = vpack.c.b16 %v1098, %v1096
        %vm1183 = vcmask 654336
        %v1185 = vsel %vm1183, %v970, 0
        %1187 = vmatpush.bf16.msra.mxu0 %v1113
        %1188 = vmatpush.bf16.msra.mxu0 %v1111
        %1189 = vmatpush.bf16.msra.mxu0 %v1109
        %1190 = vmatpush.bf16.msra.mxu0 %v1107
        %1191 = vmatpush.bf16.msra.mxu0 %v1105
        %1192 = vmatpush.bf16.msra.mxu0 %v1103
        %1193 = vmatpush.bf16.msra.mxu0 %v1101
        %1194 = vmatpush.bf16.msra.mxu0 %v1099
        %1195 = vmatmul.bf16.gmra.mxu0 %v968
        %v1196 = vpop.f32.mrf.mxu0
        %v1197 = vadd.f32 %v961, %v1196
        %v1198 = vpop.f32.mrf.mxu0
        %1199 = vdwg.mxu0
        %1200 = vmatpush.bf16.msra.mxu0 %v1129
        %1201 = vmatpush.bf16.msra.mxu0 %v1127
        %1202 = vmatpush.bf16.msra.mxu0 %v1125
        %1203 = vmatpush.bf16.msra.mxu0 %v1123
        %1204 = vmatpush.bf16.msra.mxu0 %v1121
        %1205 = vmatpush.bf16.msra.mxu0 %v1119
        %1206 = vmatpush.bf16.msra.mxu0 %v1117
        %1207 = vmatpush.bf16.msra.mxu0 %v1115
        %1208 = vmatmul.bf16.gmra.mxu0 %v969
        %v1209 = vpop.f32.mrf.mxu0
        %v1210 = vadd.f32 %v1197, %v1209
        %v1211 = vpop.f32.mrf.mxu0
        %1212 = vdwg.mxu0
        %1213 = vmatpush.bf16.msra.mxu0 0
        %1214 = vmatpush.bf16.msra.mxu0 0
        %1215 = vmatpush.bf16.msra.mxu0 0
        %1216 = vmatpush.bf16.msra.mxu0 %v1139
        %1217 = vmatpush.bf16.msra.mxu0 %v1137
        %1218 = vmatpush.bf16.msra.mxu0 %v1135
        %1219 = vmatpush.bf16.msra.mxu0 %v1133
        %1220 = vmatpush.bf16.msra.mxu0 %v1131
        %1221 = vmatmul.bf16.gmra.mxu0 %v1185
        %v1222 = vpop.f32.mrf.mxu0
        %v1223 = vadd.f32 %v1210, %v1222
        %v1224 = vpop.f32.mrf.mxu0
        %1225 = vdwg.mxu0
        %1226 = vmatpush.bf16.msra.mxu0 %v1114
        %1227 = vmatpush.bf16.msra.mxu0 %v1112
        %1228 = vmatpush.bf16.msra.mxu0 %v1110
        %1229 = vmatpush.bf16.msra.mxu0 %v1108
        %1230 = vmatpush.bf16.msra.mxu0 %v1106
        %1231 = vmatpush.bf16.msra.mxu0 %v1104
        %1232 = vmatpush.bf16.msra.mxu0 %v1102
        %1233 = vmatpush.bf16.msra.mxu0 %v1100
        %1234 = vmatmul.bf16.gmra.mxu0 %v968
        %v1235 = vpop.f32.mrf.mxu0
        %v1236 = vadd.f32 %v961, %v1235
        %v1237 = vpop.f32.mrf.mxu0
        %1238 = vdwg.mxu0
        %1239 = vmatpush.bf16.msra.mxu0 %v1130
        %1240 = vmatpush.bf16.msra.mxu0 %v1128
        %1241 = vmatpush.bf16.msra.mxu0 %v1126
        %1242 = vmatpush.bf16.msra.mxu0 %v1124
        %1243 = vmatpush.bf16.msra.mxu0 %v1122
        %1244 = vmatpush.bf16.msra.mxu0 %v1120
        %1245 = vmatpush.bf16.msra.mxu0 %v1118
        %1246 = vmatpush.bf16.msra.mxu0 %v1116
        %1247 = vmatmul.bf16.gmra.mxu0 %v969
        %v1248 = vpop.f32.mrf.mxu0
        %v1249 = vadd.f32 %v1236, %v1248
        %v1250 = vpop.f32.mrf.mxu0
        %1251 = vdwg.mxu0
        %1252 = vmatpush.bf16.msra.mxu0 0
        %1253 = vmatpush.bf16.msra.mxu0 0
        %1254 = vmatpush.bf16.msra.mxu0 0
        %1255 = vmatpush.bf16.msra.mxu0 %v1140
        %1256 = vmatpush.bf16.msra.mxu0 %v1138
        %1257 = vmatpush.bf16.msra.mxu0 %v1136
        %1258 = vmatpush.bf16.msra.mxu0 %v1134
        %1259 = vmatpush.bf16.msra.mxu0 %v1132
        %1260 = vmatmul.bf16.gmra.mxu0 %v1185
        %v1261 = vpop.f32.mrf.mxu0
        %v1262 = vadd.f32 %v1249, %v1261
        %v1263 = vpop.f32.mrf.mxu0
        %1264 = vdwg.mxu0
        %vm1265 = vcmp.ge.f32.partialorder %v1223, 0.0
        %vm1266 = vcmp.ge.f32.partialorder %v1262, 0.0
        %v1267 = vstv %s956
        %v1268 = vmul.f32 %v1267, %v1223
        %v1269 = vmul.f32 %v1267, %v1262
        %v1270 = vsel %vm1265, %v1223, %v1268
        %v1271 = vsel %vm1266, %v1262, %v1269
        %v1272 = vpack.c.bf16 %v1270, %v1270
        %1274 = vrot.lane.b32.xlu0 %v1272, 20
        %v1275 = vpop.permute.xlu0 %1274
        %v1276 = vrot.slane %v1275, 4
        %v1277 = vsel %vm301, %v1276, %v1275
        %1279 = vst.msk [vmem:[#allocation3] sm:$0xff] %vm306, %v1277
        %v1280 = vld [vmem:[#allocation3] sm:$0xff]
        %v1282 = vunpack.c.l.b16 %v1280
        %v1283 = vunpack.c.h.b16 %v1280
        %v1284 = vpack.c.b16 %v1282, %v1282
        %v1285 = vpack.c.b16 %v1283, %v1283
        %1286 = vrot.lane.b32.xlu0 %v1284, 127
        %v1287 = vpop.permute.xlu0 %1286
        %1288 = vrot.lane.b32.xlu0 %v1285, 127
        %v1289 = vpop.permute.xlu0 %1288
        %v1290 = vsel %vm318, %v1287, %v1289
        %v1293 = vsel %vm320, %v1280, %v1290
        %v1295 = vunpack.c.l.b16 %v1293
        %v1296 = vunpack.c.h.b16 %v1293
        %v1297 = vpack.c.b16 %v1295, %v1295
        %v1298 = vpack.c.b16 %v1296, %v1296
        %1301 = vst [vmem:[#allocation2] sm:$0xf] %v1297
        %1302 = vst [vmem:[#allocation2 + $0x8] sm:$0xf] %v1298
        %v1304 = vsel %vm320, %v1284, %v1290
        %v1307 = vsel %vm320, %v1285, %v1289
        %v1310 = vunpack.c.l.b16 %v1304
        %v1311 = vunpack.c.l.b16 %v1307
        %v1312 = vunpack.c.h.b16 %v1304
        %v1313 = vunpack.c.h.b16 %v1307
        %v1314 = vpack.c.b16 %v1311, %v1310
        %v1315 = vpack.c.b16 %v1313, %v1312
        %1316 = vrot.lane.b32.xlu0 %v1314, 126
        %v1317 = vpop.permute.xlu0 %1316
        %1318 = vrot.lane.b32.xlu0 %v1315, 126
        %v1319 = vpop.permute.xlu0 %1318
        %v1320 = vrot.slane %v1317, 4
        %v1321 = vrot.slane %v1319, 4
        %v1322 = vsel %vm352, %v1317, %v1320
        %v1323 = vsel %vm352, %v1319, %v1321
        %1326 = vst [vmem:[#allocation2 + $0x10] sm:$0xf] %v1322
        %1327 = vst [vmem:[#allocation2 + $0x18] sm:$0xf] %v1323
        %1328 = vrot.lane.b32.xlu0 %v1314, 124
        %v1329 = vpop.permute.xlu0 %1328
        %1330 = vrot.lane.b32.xlu0 %v1315, 124
        %v1331 = vpop.permute.xlu0 %1330
        %v1332 = vrot.slane %v1329, 4
        %v1333 = vrot.slane %v1331, 4
        %v1334 = vsel %vm365, %v1329, %v1332
        %v1335 = vsel %vm365, %v1331, %v1333
        %1338 = vst [vmem:[#allocation2 + $0x20] sm:$0xf] %v1334
        %1339 = vst [vmem:[#allocation2 + $0x28] sm:$0xf] %v1335
        %1340 = vrot.lane.b32.xlu0 %v1314, 122
        %v1341 = vpop.permute.xlu0 %1340
        %1342 = vrot.lane.b32.xlu0 %v1315, 122
        %v1343 = vpop.permute.xlu0 %1342
        %v1344 = vrot.slane %v1341, 4
        %v1345 = vrot.slane %v1343, 4
        %v1346 = vsel %vm378, %v1341, %v1344
        %v1347 = vsel %vm378, %v1343, %v1345
        %1350 = vst [vmem:[#allocation2 + $0x30] sm:$0xf] %v1346
        %1351 = vst [vmem:[#allocation2 + $0x38] sm:$0xf] %v1347
        %1352 = vrot.lane.b32.xlu0 %v1314, 120
        %v1353 = vpop.permute.xlu0 %1352
        %1354 = vrot.lane.b32.xlu0 %v1315, 120
        %v1355 = vpop.permute.xlu0 %1354
        %v1356 = vrot.slane %v1353, 4
        %v1357 = vrot.slane %v1355, 4
        %v1358 = vsel %vm391, %v1353, %v1356
        %v1359 = vsel %vm391, %v1355, %v1357
        %1362 = vst [vmem:[#allocation2 + $0x40] sm:$0xf] %v1358
        %1363 = vst [vmem:[#allocation2 + $0x48] sm:$0xf] %v1359
        %1364 = vrot.lane.b32.xlu0 %v1314, 118
        %v1365 = vpop.permute.xlu0 %1364
        %1366 = vrot.lane.b32.xlu0 %v1315, 118
        %v1367 = vpop.permute.xlu0 %1366
        %v1368 = vrot.slane %v1365, 4
        %v1369 = vrot.slane %v1367, 4
        %v1370 = vsel %vm404, %v1365, %v1368
        %v1371 = vsel %vm404, %v1367, %v1369
        %1374 = vst [vmem:[#allocation2 + $0x50] sm:$0xf] %v1370
        %1375 = vst [vmem:[#allocation2 + $0x58] sm:$0xf] %v1371
        %1376 = vrot.lane.b32.xlu0 %v1314, 116
        %v1377 = vpop.permute.xlu0 %1376
        %1378 = vrot.lane.b32.xlu0 %v1315, 116
        %v1379 = vpop.permute.xlu0 %1378
        %v1380 = vrot.slane %v1377, 4
        %v1381 = vrot.slane %v1379, 4
        %v1382 = vsel %vm417, %v1377, %v1380
        %v1383 = vsel %vm417, %v1379, %v1381
        %1386 = vst [vmem:[#allocation2 + $0x60] sm:$0xf] %v1382
        %1387 = vst [vmem:[#allocation2 + $0x68] sm:$0xf] %v1383
        %1388 = vrot.lane.b32.xlu0 %v1314, 114
        %v1389 = vpop.permute.xlu0 %1388
        %1390 = vrot.lane.b32.xlu0 %v1315, 114
        %v1391 = vpop.permute.xlu0 %1390
        %v1392 = vrot.slane %v1389, 4
        %v1393 = vrot.slane %v1391, 4
        %v1394 = vsel %vm430, %v1389, %v1392
        %v1395 = vsel %vm430, %v1391, %v1393
        %1398 = vst [vmem:[#allocation2 + $0x70] sm:$0xf] %v1394
        %1399 = vst [vmem:[#allocation2 + $0x78] sm:$0xf] %v1395
        %1400 = vrot.lane.b32.xlu0 %v1314, 112
        %v1401 = vpop.permute.xlu0 %1400
        %1402 = vrot.lane.b32.xlu0 %v1315, 112
        %v1403 = vpop.permute.xlu0 %1402
        %v1404 = vrot.slane %v1401, 4
        %v1405 = vrot.slane %v1403, 4
        %v1406 = vsel %vm443, %v1401, %v1404
        %v1407 = vsel %vm443, %v1403, %v1405
        %1410 = vst [vmem:[#allocation2 + $0x80] sm:$0xf] %v1406
        %1411 = vst [vmem:[#allocation2 + $0x88] sm:$0xf] %v1407
        %1412 = vrot.lane.b32.xlu0 %v1314, 110
        %v1413 = vpop.permute.xlu0 %1412
        %1414 = vrot.lane.b32.xlu0 %v1315, 110
        %v1415 = vpop.permute.xlu0 %1414
        %v1416 = vrot.slane %v1413, 4
        %v1417 = vrot.slane %v1415, 4
        %v1418 = vsel %vm456, %v1413, %v1416
        %v1419 = vsel %vm456, %v1415, %v1417
        %1422 = vst [vmem:[#allocation2 + $0x90] sm:$0xf] %v1418
        %1423 = vst [vmem:[#allocation2 + $0x98] sm:$0xf] %v1419
        %1424 = vrot.lane.b32.xlu0 %v1314, 108
        %v1425 = vpop.permute.xlu0 %1424
        %1426 = vrot.lane.b32.xlu0 %v1315, 108
        %v1427 = vpop.permute.xlu0 %1426
        %v1428 = vrot.slane %v1425, 4
        %v1429 = vrot.slane %v1427, 4
        %v1430 = vsel %vm469, %v1425, %v1428
        %v1431 = vsel %vm469, %v1427, %v1429
        %1434 = vst [vmem:[#allocation2 + $0xa0] sm:$0xf] %v1430
        %1435 = vst [vmem:[#allocation2 + $0xa8] sm:$0xf] %v1431
        %1436 = vrot.lane.b32.xlu0 %v1314, 106
        %v1437 = vpop.permute.xlu0 %1436
        %1438 = vrot.lane.b32.xlu0 %v1315, 106
        %v1439 = vpop.permute.xlu0 %1438
        %v1440 = vrot.slane %v1437, 4
        %v1441 = vrot.slane %v1439, 4
        %v1442 = vsel %vm482, %v1437, %v1440
        %v1443 = vsel %vm482, %v1439, %v1441
        %1446 = vst [vmem:[#allocation2 + $0xb0] sm:$0xf] %v1442
        %1447 = vst [vmem:[#allocation2 + $0xb8] sm:$0xf] %v1443
        %1448 = vrot.lane.b32.xlu0 %v1314, 104
        %v1449 = vpop.permute.xlu0 %1448
        %1450 = vrot.lane.b32.xlu0 %v1315, 104
        %v1451 = vpop.permute.xlu0 %1450
        %v1452 = vrot.slane %v1449, 4
        %v1453 = vrot.slane %v1451, 4
        %v1454 = vsel %vm495, %v1449, %v1452
        %v1455 = vsel %vm495, %v1451, %v1453
        %1458 = vst [vmem:[#allocation2 + $0xc0] sm:$0xf] %v1454
        %1459 = vst [vmem:[#allocation2 + $0xc8] sm:$0xf] %v1455
        %1460 = vrot.lane.b32.xlu0 %v1314, 102
        %v1461 = vpop.permute.xlu0 %1460
        %1462 = vrot.lane.b32.xlu0 %v1315, 102
        %v1463 = vpop.permute.xlu0 %1462
        %v1464 = vrot.slane %v1461, 4
        %v1465 = vrot.slane %v1463, 4
        %v1466 = vsel %vm508, %v1461, %v1464
        %v1467 = vsel %vm508, %v1463, %v1465
        %1470 = vst [vmem:[#allocation2 + $0xd0] sm:$0xf] %v1466
        %1471 = vst [vmem:[#allocation2 + $0xd8] sm:$0xf] %v1467
        %1472 = vrot.lane.b32.xlu0 %v1314, 100
        %v1473 = vpop.permute.xlu0 %1472
        %1474 = vrot.lane.b32.xlu0 %v1315, 100
        %v1475 = vpop.permute.xlu0 %1474
        %v1476 = vrot.slane %v1473, 4
        %v1477 = vrot.slane %v1475, 4
        %v1478 = vsel %vm521, %v1473, %v1476
        %v1479 = vsel %vm521, %v1475, %v1477
        %1482 = vst [vmem:[#allocation2 + $0xe0] sm:$0xf] %v1478
        %1483 = vst [vmem:[#allocation2 + $0xe8] sm:$0xf] %v1479
        %1484 = vrot.lane.b32.xlu0 %v1314, 98
        %v1485 = vpop.permute.xlu0 %1484
        %1486 = vrot.lane.b32.xlu0 %v1315, 98
        %v1487 = vpop.permute.xlu0 %1486
        %v1488 = vrot.slane %v1485, 4
        %v1489 = vrot.slane %v1487, 4
        %v1490 = vsel %vm534, %v1485, %v1488
        %v1491 = vsel %vm534, %v1487, %v1489
        %1494 = vst [vmem:[#allocation2 + $0xf0] sm:$0xf] %v1490
        %1495 = vst [vmem:[#allocation2 + $0xf8] sm:$0xf] %v1491
        %1496 = vrot.lane.b32.xlu0 %v1314, 96
        %v1497 = vpop.permute.xlu0 %1496
        %1498 = vrot.lane.b32.xlu0 %v1315, 96
        %v1499 = vpop.permute.xlu0 %1498
        %v1500 = vrot.slane %v1497, 4
        %v1501 = vrot.slane %v1499, 4
        %v1502 = vsel %vm547, %v1497, %v1500
        %v1503 = vsel %vm547, %v1499, %v1501
        %1506 = vst [vmem:[#allocation2 + $0x100] sm:$0xf] %v1502
        %1507 = vst [vmem:[#allocation2 + $0x108] sm:$0xf] %v1503
        %1508 = vrot.lane.b32.xlu0 %v1314, 94
        %v1509 = vpop.permute.xlu0 %1508
        %1510 = vrot.lane.b32.xlu0 %v1315, 94
        %v1511 = vpop.permute.xlu0 %1510
        %v1512 = vrot.slane %v1509, 4
        %v1513 = vrot.slane %v1511, 4
        %v1514 = vsel %vm560, %v1509, %v1512
        %v1515 = vsel %vm560, %v1511, %v1513
        %1518 = vst [vmem:[#allocation2 + $0x110] sm:$0xf] %v1514
        %1519 = vst [vmem:[#allocation2 + $0x118] sm:$0xf] %v1515
        %1520 = vrot.lane.b32.xlu0 %v1314, 92
        %v1521 = vpop.permute.xlu0 %1520
        %1522 = vrot.lane.b32.xlu0 %v1315, 92
        %v1523 = vpop.permute.xlu0 %1522
        %v1524 = vrot.slane %v1521, 4
        %v1525 = vrot.slane %v1523, 4
        %v1526 = vsel %vm573, %v1521, %v1524
        %v1527 = vsel %vm573, %v1523, %v1525
        %1530 = vst [vmem:[#allocation2 + $0x120] sm:$0xf] %v1526
        %1531 = vst [vmem:[#allocation2 + $0x128] sm:$0xf] %v1527
        %1532 = vrot.lane.b32.xlu0 %v1314, 90
        %v1533 = vpop.permute.xlu0 %1532
        %1534 = vrot.lane.b32.xlu0 %v1315, 90
        %v1535 = vpop.permute.xlu0 %1534
        %v1536 = vrot.slane %v1533, 4
        %v1537 = vrot.slane %v1535, 4
        %v1538 = vsel %vm586, %v1533, %v1536
        %v1539 = vsel %vm586, %v1535, %v1537
        %1542 = vst [vmem:[#allocation2 + $0x130] sm:$0xf] %v1538
        %1543 = vst [vmem:[#allocation2 + $0x138] sm:$0xf] %v1539
        %v1544 = vsel %vm320, %v1284, %v1284
        %v1545 = vsel %vm320, %v1285, %v1285
        %v1548 = vunpack.c.l.b16 %v1544
        %v1549 = vunpack.c.l.b16 %v1545
        %v1550 = vunpack.c.h.b16 %v1544
        %v1551 = vunpack.c.h.b16 %v1545
        %v1552 = vpack.c.b16 %v1549, %v1548
        %v1553 = vpack.c.b16 %v1551, %v1550
        %1554 = vrot.lane.b32.xlu0 %v1552, 88
        %v1555 = vpop.permute.xlu0 %1554
        %1556 = vrot.lane.b32.xlu0 %v1553, 88
        %v1557 = vpop.permute.xlu0 %1556
        %v1558 = vrot.slane %v1555, 4
        %v1559 = vrot.slane %v1557, 4
        %v1560 = vsel %vm609, %v1555, %v1558
        %v1561 = vsel %vm609, %v1557, %v1559
        %1564 = vst [vmem:[#allocation2 + $0x140] sm:$0xf] %v1560
        %1565 = vst [vmem:[#allocation2 + $0x148] sm:$0xf] %v1561
        %v1566 = vpack.c.bf16 %v1271, %v1271
        %1568 = vrot.lane.b32.xlu0 %v1566, 20
        %v1569 = vpop.permute.xlu0 %1568
        %v1570 = vrot.slane %v1569, 4
        %v1571 = vsel %vm301, %v1570, %v1569
        %1573 = vst.msk [vmem:[#allocation3] sm:$0xff] %vm306, %v1571
        %v1574 = vld [vmem:[#allocation3] sm:$0xff]
        %v1576 = vunpack.c.l.b16 %v1574
        %v1577 = vunpack.c.h.b16 %v1574
        %v1578 = vpack.c.b16 %v1576, %v1576
        %v1579 = vpack.c.b16 %v1577, %v1577
        %1580 = vrot.lane.b32.xlu0 %v1578, 127
        %v1581 = vpop.permute.xlu0 %1580
        %1582 = vrot.lane.b32.xlu0 %v1579, 127
        %v1583 = vpop.permute.xlu0 %1582
        %v1584 = vsel %vm318, %v1581, %v1583
        %v1587 = vsel %vm320, %v1574, %v1584
        %v1589 = vunpack.c.l.b16 %v1587
        %v1590 = vunpack.c.h.b16 %v1587
        %v1591 = vpack.c.b16 %v1589, %v1589
        %v1592 = vpack.c.b16 %v1590, %v1590
        %1595 = vst [vmem:[#allocation2 + $0x4] sm:$0xf] %v1591
        %1596 = vst [vmem:[#allocation2 + $0xc] sm:$0xf] %v1592
        %v1598 = vsel %vm320, %v1578, %v1584
        %v1601 = vsel %vm320, %v1579, %v1583
        %v1604 = vunpack.c.l.b16 %v1598
        %v1605 = vunpack.c.l.b16 %v1601
        %v1606 = vunpack.c.h.b16 %v1598
        %v1607 = vunpack.c.h.b16 %v1601
        %v1608 = vpack.c.b16 %v1605, %v1604
        %v1609 = vpack.c.b16 %v1607, %v1606
        %1610 = vrot.lane.b32.xlu0 %v1608, 126
        %v1611 = vpop.permute.xlu0 %1610
        %1612 = vrot.lane.b32.xlu0 %v1609, 126
        %v1613 = vpop.permute.xlu0 %1612
        %v1614 = vrot.slane %v1611, 4
        %v1615 = vrot.slane %v1613, 4
        %v1616 = vsel %vm352, %v1611, %v1614
        %v1617 = vsel %vm352, %v1613, %v1615
        %1620 = vst [vmem:[#allocation2 + $0x14] sm:$0xf] %v1616
        %1621 = vst [vmem:[#allocation2 + $0x1c] sm:$0xf] %v1617
        %1622 = vrot.lane.b32.xlu0 %v1608, 124
        %v1623 = vpop.permute.xlu0 %1622
        %1624 = vrot.lane.b32.xlu0 %v1609, 124
        %v1625 = vpop.permute.xlu0 %1624
        %v1626 = vrot.slane %v1623, 4
        %v1627 = vrot.slane %v1625, 4
        %v1628 = vsel %vm365, %v1623, %v1626
        %v1629 = vsel %vm365, %v1625, %v1627
        %1632 = vst [vmem:[#allocation2 + $0x24] sm:$0xf] %v1628
        %1633 = vst [vmem:[#allocation2 + $0x2c] sm:$0xf] %v1629
        %1634 = vrot.lane.b32.xlu0 %v1608, 122
        %v1635 = vpop.permute.xlu0 %1634
        %1636 = vrot.lane.b32.xlu0 %v1609, 122
        %v1637 = vpop.permute.xlu0 %1636
        %v1638 = vrot.slane %v1635, 4
        %v1639 = vrot.slane %v1637, 4
        %v1640 = vsel %vm378, %v1635, %v1638
        %v1641 = vsel %vm378, %v1637, %v1639
        %1644 = vst [vmem:[#allocation2 + $0x34] sm:$0xf] %v1640
        %1645 = vst [vmem:[#allocation2 + $0x3c] sm:$0xf] %v1641
        %1646 = vrot.lane.b32.xlu0 %v1608, 120
        %v1647 = vpop.permute.xlu0 %1646
        %1648 = vrot.lane.b32.xlu0 %v1609, 120
        %v1649 = vpop.permute.xlu0 %1648
        %v1650 = vrot.slane %v1647, 4
        %v1651 = vrot.slane %v1649, 4
        %v1652 = vsel %vm391, %v1647, %v1650
        %v1653 = vsel %vm391, %v1649, %v1651
        %1656 = vst [vmem:[#allocation2 + $0x44] sm:$0xf] %v1652
        %1657 = vst [vmem:[#allocation2 + $0x4c] sm:$0xf] %v1653
        %1658 = vrot.lane.b32.xlu0 %v1608, 118
        %v1659 = vpop.permute.xlu0 %1658
        %1660 = vrot.lane.b32.xlu0 %v1609, 118
        %v1661 = vpop.permute.xlu0 %1660
        %v1662 = vrot.slane %v1659, 4
        %v1663 = vrot.slane %v1661, 4
        %v1664 = vsel %vm404, %v1659, %v1662
        %v1665 = vsel %vm404, %v1661, %v1663
        %1668 = vst [vmem:[#allocation2 + $0x54] sm:$0xf] %v1664
        %1669 = vst [vmem:[#allocation2 + $0x5c] sm:$0xf] %v1665
        %1670 = vrot.lane.b32.xlu0 %v1608, 116
        %v1671 = vpop.permute.xlu0 %1670
        %1672 = vrot.lane.b32.xlu0 %v1609, 116
        %v1673 = vpop.permute.xlu0 %1672
        %v1674 = vrot.slane %v1671, 4
        %v1675 = vrot.slane %v1673, 4
        %v1676 = vsel %vm417, %v1671, %v1674
        %v1677 = vsel %vm417, %v1673, %v1675
        %1680 = vst [vmem:[#allocation2 + $0x64] sm:$0xf] %v1676
        %1681 = vst [vmem:[#allocation2 + $0x6c] sm:$0xf] %v1677
        %1682 = vrot.lane.b32.xlu0 %v1608, 114
        %v1683 = vpop.permute.xlu0 %1682
        %1684 = vrot.lane.b32.xlu0 %v1609, 114
        %v1685 = vpop.permute.xlu0 %1684
        %v1686 = vrot.slane %v1683, 4
        %v1687 = vrot.slane %v1685, 4
        %v1688 = vsel %vm430, %v1683, %v1686
        %v1689 = vsel %vm430, %v1685, %v1687
        %1692 = vst [vmem:[#allocation2 + $0x74] sm:$0xf] %v1688
        %1693 = vst [vmem:[#allocation2 + $0x7c] sm:$0xf] %v1689
        %1694 = vrot.lane.b32.xlu0 %v1608, 112
        %v1695 = vpop.permute.xlu0 %1694
        %1696 = vrot.lane.b32.xlu0 %v1609, 112
        %v1697 = vpop.permute.xlu0 %1696
        %v1698 = vrot.slane %v1695, 4
        %v1699 = vrot.slane %v1697, 4
        %v1700 = vsel %vm443, %v1695, %v1698
        %v1701 = vsel %vm443, %v1697, %v1699
        %1704 = vst [vmem:[#allocation2 + $0x84] sm:$0xf] %v1700
        %1705 = vst [vmem:[#allocation2 + $0x8c] sm:$0xf] %v1701
        %1706 = vrot.lane.b32.xlu0 %v1608, 110
        %v1707 = vpop.permute.xlu0 %1706
        %1708 = vrot.lane.b32.xlu0 %v1609, 110
        %v1709 = vpop.permute.xlu0 %1708
        %v1710 = vrot.slane %v1707, 4
        %v1711 = vrot.slane %v1709, 4
        %v1712 = vsel %vm456, %v1707, %v1710
        %v1713 = vsel %vm456, %v1709, %v1711
        %1716 = vst [vmem:[#allocation2 + $0x94] sm:$0xf] %v1712
        %1717 = vst [vmem:[#allocation2 + $0x9c] sm:$0xf] %v1713
        %1718 = vrot.lane.b32.xlu0 %v1608, 108
        %v1719 = vpop.permute.xlu0 %1718
        %1720 = vrot.lane.b32.xlu0 %v1609, 108
        %v1721 = vpop.permute.xlu0 %1720
        %v1722 = vrot.slane %v1719, 4
        %v1723 = vrot.slane %v1721, 4
        %v1724 = vsel %vm469, %v1719, %v1722
        %v1725 = vsel %vm469, %v1721, %v1723
        %1728 = vst [vmem:[#allocation2 + $0xa4] sm:$0xf] %v1724
        %1729 = vst [vmem:[#allocation2 + $0xac] sm:$0xf] %v1725
        %1730 = vrot.lane.b32.xlu0 %v1608, 106
        %v1731 = vpop.permute.xlu0 %1730
        %1732 = vrot.lane.b32.xlu0 %v1609, 106
        %v1733 = vpop.permute.xlu0 %1732
        %v1734 = vrot.slane %v1731, 4
        %v1735 = vrot.slane %v1733, 4
        %v1736 = vsel %vm482, %v1731, %v1734
        %v1737 = vsel %vm482, %v1733, %v1735
        %1740 = vst [vmem:[#allocation2 + $0xb4] sm:$0xf] %v1736
        %1741 = vst [vmem:[#allocation2 + $0xbc] sm:$0xf] %v1737
        %1742 = vrot.lane.b32.xlu0 %v1608, 104
        %v1743 = vpop.permute.xlu0 %1742
        %1744 = vrot.lane.b32.xlu0 %v1609, 104
        %v1745 = vpop.permute.xlu0 %1744
        %v1746 = vrot.slane %v1743, 4
        %v1747 = vrot.slane %v1745, 4
        %v1748 = vsel %vm495, %v1743, %v1746
        %v1749 = vsel %vm495, %v1745, %v1747
        %1752 = vst [vmem:[#allocation2 + $0xc4] sm:$0xf] %v1748
        %1753 = vst [vmem:[#allocation2 + $0xcc] sm:$0xf] %v1749
        %1754 = vrot.lane.b32.xlu0 %v1608, 102
        %v1755 = vpop.permute.xlu0 %1754
        %1756 = vrot.lane.b32.xlu0 %v1609, 102
        %v1757 = vpop.permute.xlu0 %1756
        %v1758 = vrot.slane %v1755, 4
        %v1759 = vrot.slane %v1757, 4
        %v1760 = vsel %vm508, %v1755, %v1758
        %v1761 = vsel %vm508, %v1757, %v1759
        %1764 = vst [vmem:[#allocation2 + $0xd4] sm:$0xf] %v1760
        %1765 = vst [vmem:[#allocation2 + $0xdc] sm:$0xf] %v1761
        %1766 = vrot.lane.b32.xlu0 %v1608, 100
        %v1767 = vpop.permute.xlu0 %1766
        %1768 = vrot.lane.b32.xlu0 %v1609, 100
        %v1769 = vpop.permute.xlu0 %1768
        %v1770 = vrot.slane %v1767, 4
        %v1771 = vrot.slane %v1769, 4
        %v1772 = vsel %vm521, %v1767, %v1770
        %v1773 = vsel %vm521, %v1769, %v1771
        %1776 = vst [vmem:[#allocation2 + $0xe4] sm:$0xf] %v1772
        %1777 = vst [vmem:[#allocation2 + $0xec] sm:$0xf] %v1773
        %1778 = vrot.lane.b32.xlu0 %v1608, 98
        %v1779 = vpop.permute.xlu0 %1778
        %1780 = vrot.lane.b32.xlu0 %v1609, 98
        %v1781 = vpop.permute.xlu0 %1780
        %v1782 = vrot.slane %v1779, 4
        %v1783 = vrot.slane %v1781, 4
        %v1784 = vsel %vm534, %v1779, %v1782
        %v1785 = vsel %vm534, %v1781, %v1783
        %1788 = vst [vmem:[#allocation2 + $0xf4] sm:$0xf] %v1784
        %1789 = vst [vmem:[#allocation2 + $0xfc] sm:$0xf] %v1785
        %1790 = vrot.lane.b32.xlu0 %v1608, 96
        %v1791 = vpop.permute.xlu0 %1790
        %1792 = vrot.lane.b32.xlu0 %v1609, 96
        %v1793 = vpop.permute.xlu0 %1792
        %v1794 = vrot.slane %v1791, 4
        %v1795 = vrot.slane %v1793, 4
        %v1796 = vsel %vm547, %v1791, %v1794
        %v1797 = vsel %vm547, %v1793, %v1795
        %1800 = vst [vmem:[#allocation2 + $0x104] sm:$0xf] %v1796
        %1801 = vst [vmem:[#allocation2 + $0x10c] sm:$0xf] %v1797
        %1802 = vrot.lane.b32.xlu0 %v1608, 94
        %v1803 = vpop.permute.xlu0 %1802
        %1804 = vrot.lane.b32.xlu0 %v1609, 94
        %v1805 = vpop.permute.xlu0 %1804
        %v1806 = vrot.slane %v1803, 4
        %v1807 = vrot.slane %v1805, 4
        %v1808 = vsel %vm560, %v1803, %v1806
        %v1809 = vsel %vm560, %v1805, %v1807
        %1812 = vst [vmem:[#allocation2 + $0x114] sm:$0xf] %v1808
        %1813 = vst [vmem:[#allocation2 + $0x11c] sm:$0xf] %v1809
        %1814 = vrot.lane.b32.xlu0 %v1608, 92
        %v1815 = vpop.permute.xlu0 %1814
        %1816 = vrot.lane.b32.xlu0 %v1609, 92
        %v1817 = vpop.permute.xlu0 %1816
        %v1818 = vrot.slane %v1815, 4
        %v1819 = vrot.slane %v1817, 4
        %v1820 = vsel %vm573, %v1815, %v1818
        %v1821 = vsel %vm573, %v1817, %v1819
        %1824 = vst [vmem:[#allocation2 + $0x124] sm:$0xf] %v1820
        %1825 = vst [vmem:[#allocation2 + $0x12c] sm:$0xf] %v1821
        %1826 = vrot.lane.b32.xlu0 %v1608, 90
        %v1827 = vpop.permute.xlu0 %1826
        %1828 = vrot.lane.b32.xlu0 %v1609, 90
        %v1829 = vpop.permute.xlu0 %1828
        %v1830 = vrot.slane %v1827, 4
        %v1831 = vrot.slane %v1829, 4
        %v1832 = vsel %vm586, %v1827, %v1830
        %v1833 = vsel %vm586, %v1829, %v1831
        %1836 = vst [vmem:[#allocation2 + $0x134] sm:$0xf] %v1832
        %1837 = vst [vmem:[#allocation2 + $0x13c] sm:$0xf] %v1833
        %v1838 = vsel %vm320, %v1578, %v1578
        %v1839 = vsel %vm320, %v1579, %v1579
        %v1842 = vunpack.c.l.b16 %v1838
        %v1843 = vunpack.c.l.b16 %v1839
        %v1844 = vunpack.c.h.b16 %v1838
        %v1845 = vunpack.c.h.b16 %v1839
        %v1846 = vpack.c.b16 %v1843, %v1842
        %v1847 = vpack.c.b16 %v1845, %v1844
        %1848 = vrot.lane.b32.xlu0 %v1846, 88
        %v1849 = vpop.permute.xlu0 %1848
        %1850 = vrot.lane.b32.xlu0 %v1847, 88
        %v1851 = vpop.permute.xlu0 %1850
        %v1852 = vrot.slane %v1849, 4
        %v1853 = vrot.slane %v1851, 4
        %v1854 = vsel %vm609, %v1849, %v1852
        %v1855 = vsel %vm609, %v1851, %v1853
        %1858 = vst [vmem:[#allocation2 + $0x144] sm:$0xf] %v1854
        %1859 = vst [vmem:[#allocation2 + $0x14c] sm:$0xf] %v1855
        %v1860 = vld [vmem:[#allocation10] sm:$0xff]
        %v1861 = vld [vmem:[#allocation10 + $0x8] sm:$0xf]
        %v1862 = vld [vmem:[#allocation2] sm:$0xff]
        %v1863 = vld [vmem:[#allocation2 + $0x8] sm:$0xff]
        %v1864 = vld [vmem:[#allocation2 + $0x10] sm:$0xff]
        %v1865 = vld [vmem:[#allocation2 + $0x18] sm:$0xff]
        %v1866 = vld [vmem:[#allocation2 + $0x20] sm:$0xff]
        %v1867 = vld [vmem:[#allocation2 + $0x28] sm:$0xff]
        %v1868 = vld [vmem:[#allocation2 + $0x30] sm:$0xff]
        %v1869 = vld [vmem:[#allocation2 + $0x38] sm:$0xff]
        %v1870 = vld [vmem:[#allocation2 + $0x40] sm:$0xff]
        %v1871 = vld [vmem:[#allocation2 + $0x48] sm:$0xff]
        %v1872 = vld [vmem:[#allocation2 + $0x50] sm:$0xff]
        %v1873 = vld [vmem:[#allocation2 + $0x58] sm:$0xff]
        %v1874 = vld [vmem:[#allocation2 + $0x60] sm:$0xff]
        %v1875 = vld [vmem:[#allocation2 + $0x68] sm:$0xff]
        %v1876 = vld [vmem:[#allocation2 + $0x70] sm:$0xff]
        %v1877 = vld [vmem:[#allocation2 + $0x78] sm:$0xff]
        %v1878 = vld [vmem:[#allocation2 + $0x80] sm:$0xff]
        %v1879 = vld [vmem:[#allocation2 + $0x88] sm:$0xff]
        %v1880 = vld [vmem:[#allocation2 + $0x90] sm:$0xff]
        %v1881 = vld [vmem:[#allocation2 + $0x98] sm:$0xff]
        %v1882 = vld [vmem:[#allocation2 + $0xa0] sm:$0xff]
        %v1883 = vld [vmem:[#allocation2 + $0xa8] sm:$0xff]
        %v1884 = vld [vmem:[#allocation2 + $0xb0] sm:$0xff]
        %v1885 = vld [vmem:[#allocation2 + $0xb8] sm:$0xff]
        %v1886 = vld [vmem:[#allocation2 + $0xc0] sm:$0xff]
        %v1887 = vld [vmem:[#allocation2 + $0xc8] sm:$0xff]
        %v1888 = vld [vmem:[#allocation2 + $0xd0] sm:$0xff]
        %v1889 = vld [vmem:[#allocation2 + $0xd8] sm:$0xff]
        %v1890 = vld [vmem:[#allocation2 + $0xe0] sm:$0xff]
        %v1891 = vld [vmem:[#allocation2 + $0xe8] sm:$0xff]
        %v1892 = vld [vmem:[#allocation2 + $0xf0] sm:$0xff]
        %v1893 = vld [vmem:[#allocation2 + $0xf8] sm:$0xff]
        %v1894 = vld [vmem:[#allocation2 + $0x100] sm:$0xff]
        %v1895 = vld [vmem:[#allocation2 + $0x108] sm:$0xff]
        %v1896 = vld [vmem:[#allocation2 + $0x110] sm:$0xff]
        %v1897 = vld [vmem:[#allocation2 + $0x118] sm:$0xff]
        %v1898 = vld [vmem:[#allocation2 + $0x120] sm:$0xff]
        %v1899 = vld [vmem:[#allocation2 + $0x128] sm:$0xff]
        %v1900 = vld [vmem:[#allocation2 + $0x130] sm:$0xff]
        %v1901 = vld [vmem:[#allocation2 + $0x138] sm:$0xff]
        %v1902 = vld [vmem:[#allocation2 + $0x140] sm:$0xff]
        %v1903 = vld [vmem:[#allocation2 + $0x148] sm:$0xff]
        %v1906 = vunpack.c.l.b16 %v1860
        %v1907 = vunpack.c.h.b16 %v1860
        %v1908 = vunpack.c.l.b16 %v1861
        %v1909 = vpack.c.b16 %v1906, %v1906
        %v1910 = vpack.c.b16 %v1907, %v1907
        %v1911 = vpack.c.b16 %v1908, %v1908
        %v1956 = vunpack.c.l.b16 %v1862
        %v1957 = vunpack.c.h.b16 %v1862
        %v1958 = vunpack.c.l.b16 %v1863
        %v1959 = vunpack.c.h.b16 %v1863
        %v1960 = vunpack.c.l.b16 %v1864
        %v1961 = vunpack.c.h.b16 %v1864
        %v1962 = vunpack.c.l.b16 %v1865
        %v1963 = vunpack.c.h.b16 %v1865
        %v1964 = vunpack.c.l.b16 %v1866
        %v1965 = vunpack.c.h.b16 %v1866
        %v1966 = vunpack.c.l.b16 %v1867
        %v1967 = vunpack.c.h.b16 %v1867
        %v1968 = vunpack.c.l.b16 %v1868
        %v1969 = vunpack.c.h.b16 %v1868
        %v1970 = vunpack.c.l.b16 %v1869
        %v1971 = vunpack.c.h.b16 %v1869
        %v1972 = vunpack.c.l.b16 %v1870
        %v1973 = vunpack.c.h.b16 %v1870
        %v1974 = vunpack.c.l.b16 %v1871
        %v1975 = vunpack.c.h.b16 %v1871
        %v1976 = vunpack.c.l.b16 %v1872
        %v1977 = vunpack.c.h.b16 %v1872
        %v1978 = vunpack.c.l.b16 %v1873
        %v1979 = vunpack.c.h.b16 %v1873
        %v1980 = vunpack.c.l.b16 %v1874
        %v1981 = vunpack.c.h.b16 %v1874
        %v1982 = vunpack.c.l.b16 %v1875
        %v1983 = vunpack.c.h.b16 %v1875
        %v1984 = vunpack.c.l.b16 %v1876
        %v1985 = vunpack.c.h.b16 %v1876
        %v1986 = vunpack.c.l.b16 %v1877
        %v1987 = vunpack.c.h.b16 %v1877
        %v1988 = vunpack.c.l.b16 %v1878
        %v1989 = vunpack.c.h.b16 %v1878
        %v1990 = vunpack.c.l.b16 %v1879
        %v1991 = vunpack.c.h.b16 %v1879
        %v1992 = vunpack.c.l.b16 %v1880
        %v1993 = vunpack.c.h.b16 %v1880
        %v1994 = vunpack.c.l.b16 %v1881
        %v1995 = vunpack.c.h.b16 %v1881
        %v1996 = vunpack.c.l.b16 %v1882
        %v1997 = vunpack.c.h.b16 %v1882
        %v1998 = vunpack.c.l.b16 %v1883
        %v1999 = vunpack.c.h.b16 %v1883
        %v2000 = vunpack.c.l.b16 %v1884
        %v2001 = vunpack.c.h.b16 %v1884
        %v2002 = vunpack.c.l.b16 %v1885
        %v2003 = vunpack.c.h.b16 %v1885
        %v2004 = vunpack.c.l.b16 %v1886
        %v2005 = vunpack.c.h.b16 %v1886
        %v2006 = vunpack.c.l.b16 %v1887
        %v2007 = vunpack.c.h.b16 %v1887
        %v2008 = vunpack.c.l.b16 %v1888
        %v2009 = vunpack.c.h.b16 %v1888
        %v2010 = vunpack.c.l.b16 %v1889
        %v2011 = vunpack.c.h.b16 %v1889
        %v2012 = vunpack.c.l.b16 %v1890
        %v2013 = vunpack.c.h.b16 %v1890
        %v2014 = vunpack.c.l.b16 %v1891
        %v2015 = vunpack.c.h.b16 %v1891
        %v2016 = vunpack.c.l.b16 %v1892
        %v2017 = vunpack.c.h.b16 %v1892
        %v2018 = vunpack.c.l.b16 %v1893
        %v2019 = vunpack.c.h.b16 %v1893
        %v2020 = vunpack.c.l.b16 %v1894
        %v2021 = vunpack.c.h.b16 %v1894
        %v2022 = vunpack.c.l.b16 %v1895
        %v2023 = vunpack.c.h.b16 %v1895
        %v2024 = vunpack.c.l.b16 %v1896
        %v2025 = vunpack.c.h.b16 %v1896
        %v2026 = vunpack.c.l.b16 %v1897
        %v2027 = vunpack.c.h.b16 %v1897
        %v2028 = vunpack.c.l.b16 %v1898
        %v2029 = vunpack.c.h.b16 %v1898
        %v2030 = vunpack.c.l.b16 %v1899
        %v2031 = vunpack.c.h.b16 %v1899
        %v2032 = vunpack.c.l.b16 %v1900
        %v2033 = vunpack.c.h.b16 %v1900
        %v2034 = vunpack.c.l.b16 %v1901
        %v2035 = vunpack.c.h.b16 %v1901
        %v2036 = vunpack.c.l.b16 %v1902
        %v2037 = vunpack.c.h.b16 %v1902
        %v2038 = vunpack.c.l.b16 %v1903
        %v2039 = vunpack.c.h.b16 %v1903
        %v2040 = vpack.c.b16 %v1958, %v1956
        %v2041 = vpack.c.b16 %v1959, %v1957
        %v2042 = vpack.c.b16 %v1962, %v1960
        %v2043 = vpack.c.b16 %v1963, %v1961
        %v2044 = vpack.c.b16 %v1966, %v1964
        %v2045 = vpack.c.b16 %v1967, %v1965
        %v2046 = vpack.c.b16 %v1970, %v1968
        %v2047 = vpack.c.b16 %v1971, %v1969
        %v2048 = vpack.c.b16 %v1974, %v1972
        %v2049 = vpack.c.b16 %v1975, %v1973
        %v2050 = vpack.c.b16 %v1978, %v1976
        %v2051 = vpack.c.b16 %v1979, %v1977
        %v2052 = vpack.c.b16 %v1982, %v1980
        %v2053 = vpack.c.b16 %v1983, %v1981
        %v2054 = vpack.c.b16 %v1986, %v1984
        %v2055 = vpack.c.b16 %v1987, %v1985
        %v2056 = vpack.c.b16 %v1990, %v1988
        %v2057 = vpack.c.b16 %v1991, %v1989
        %v2058 = vpack.c.b16 %v1994, %v1992
        %v2059 = vpack.c.b16 %v1995, %v1993
        %v2060 = vpack.c.b16 %v1998, %v1996
        %v2061 = vpack.c.b16 %v1999, %v1997
        %v2062 = vpack.c.b16 %v2002, %v2000
        %v2063 = vpack.c.b16 %v2003, %v2001
        %v2064 = vpack.c.b16 %v2006, %v2004
        %v2065 = vpack.c.b16 %v2007, %v2005
        %v2066 = vpack.c.b16 %v2010, %v2008
        %v2067 = vpack.c.b16 %v2011, %v2009
        %v2068 = vpack.c.b16 %v2014, %v2012
        %v2069 = vpack.c.b16 %v2015, %v2013
        %v2070 = vpack.c.b16 %v2018, %v2016
        %v2071 = vpack.c.b16 %v2019, %v2017
        %v2072 = vpack.c.b16 %v2022, %v2020
        %v2073 = vpack.c.b16 %v2023, %v2021
        %v2074 = vpack.c.b16 %v2026, %v2024
        %v2075 = vpack.c.b16 %v2027, %v2025
        %v2076 = vpack.c.b16 %v2030, %v2028
        %v2077 = vpack.c.b16 %v2031, %v2029
        %v2078 = vpack.c.b16 %v2034, %v2032
        %v2079 = vpack.c.b16 %v2035, %v2033
        %v2080 = vpack.c.b16 %v2038, %v2036
        %v2081 = vpack.c.b16 %v2039, %v2037
        %v2125 = vsel %vm1183, %v1911, 0
        %2127 = vmatpush.bf16.msra.mxu0 %v2054
        %2128 = vmatpush.bf16.msra.mxu0 %v2052
        %2129 = vmatpush.bf16.msra.mxu0 %v2050
        %2130 = vmatpush.bf16.msra.mxu0 %v2048
        %2131 = vmatpush.bf16.msra.mxu0 %v2046
        %2132 = vmatpush.bf16.msra.mxu0 %v2044
        %2133 = vmatpush.bf16.msra.mxu0 %v2042
        %2134 = vmatpush.bf16.msra.mxu0 %v2040
        %2135 = vmatmul.bf16.gmra.mxu0 %v1909
        %v2136 = vpop.f32.mrf.mxu0
        %v2137 = vadd.f32 0.0, %v2136
        %v2138 = vpop.f32.mrf.mxu0
        %2139 = vdwg.mxu0
        %2140 = vmatpush.bf16.msra.mxu0 %v2070
        %2141 = vmatpush.bf16.msra.mxu0 %v2068
        %2142 = vmatpush.bf16.msra.mxu0 %v2066
        %2143 = vmatpush.bf16.msra.mxu0 %v2064
        %2144 = vmatpush.bf16.msra.mxu0 %v2062
        %2145 = vmatpush.bf16.msra.mxu0 %v2060
        %2146 = vmatpush.bf16.msra.mxu0 %v2058
        %2147 = vmatpush.bf16.msra.mxu0 %v2056
        %2148 = vmatmul.bf16.gmra.mxu0 %v1910
        %v2149 = vpop.f32.mrf.mxu0
        %v2150 = vadd.f32 %v2137, %v2149
        %v2151 = vpop.f32.mrf.mxu0
        %2152 = vdwg.mxu0
        %2153 = vmatpush.bf16.msra.mxu0 0
        %2154 = vmatpush.bf16.msra.mxu0 0
        %2155 = vmatpush.bf16.msra.mxu0 0
        %2156 = vmatpush.bf16.msra.mxu0 %v2080
        %2157 = vmatpush.bf16.msra.mxu0 %v2078
        %2158 = vmatpush.bf16.msra.mxu0 %v2076
        %2159 = vmatpush.bf16.msra.mxu0 %v2074
        %2160 = vmatpush.bf16.msra.mxu0 %v2072
        %2161 = vmatmul.bf16.gmra.mxu0 %v2125
        %v2162 = vpop.f32.mrf.mxu0
        %v2163 = vadd.f32 %v2150, %v2162
        %v2164 = vpop.f32.mrf.mxu0
        %2165 = vdwg.mxu0
        %2166 = vmatpush.bf16.msra.mxu0 %v2055
        %2167 = vmatpush.bf16.msra.mxu0 %v2053
        %2168 = vmatpush.bf16.msra.mxu0 %v2051
        %2169 = vmatpush.bf16.msra.mxu0 %v2049
        %2170 = vmatpush.bf16.msra.mxu0 %v2047
        %2171 = vmatpush.bf16.msra.mxu0 %v2045
        %2172 = vmatpush.bf16.msra.mxu0 %v2043
        %2173 = vmatpush.bf16.msra.mxu0 %v2041
        %2174 = vmatmul.bf16.gmra.mxu0 %v1909
        %v2175 = vpop.f32.mrf.mxu0
        %v2176 = vadd.f32 0.0, %v2175
        %v2177 = vpop.f32.mrf.mxu0
        %2178 = vdwg.mxu0
        %2179 = vmatpush.bf16.msra.mxu0 %v2071
        %2180 = vmatpush.bf16.msra.mxu0 %v2069
        %2181 = vmatpush.bf16.msra.mxu0 %v2067
        %2182 = vmatpush.bf16.msra.mxu0 %v2065
        %2183 = vmatpush.bf16.msra.mxu0 %v2063
        %2184 = vmatpush.bf16.msra.mxu0 %v2061
        %2185 = vmatpush.bf16.msra.mxu0 %v2059
        %2186 = vmatpush.bf16.msra.mxu0 %v2057
        %2187 = vmatmul.bf16.gmra.mxu0 %v1910
        %v2188 = vpop.f32.mrf.mxu0
        %v2189 = vadd.f32 %v2176, %v2188
        %v2190 = vpop.f32.mrf.mxu0
        %2191 = vdwg.mxu0
        %2192 = vmatpush.bf16.msra.mxu0 0
        %2193 = vmatpush.bf16.msra.mxu0 0
        %2194 = vmatpush.bf16.msra.mxu0 0
        %2195 = vmatpush.bf16.msra.mxu0 %v2081
        %2196 = vmatpush.bf16.msra.mxu0 %v2079
        %2197 = vmatpush.bf16.msra.mxu0 %v2077
        %2198 = vmatpush.bf16.msra.mxu0 %v2075
        %2199 = vmatpush.bf16.msra.mxu0 %v2073
        %2200 = vmatmul.bf16.gmra.mxu0 %v2125
        %v2201 = vpop.f32.mrf.mxu0
        %v2202 = vadd.f32 %v2189, %v2201
        %v2203 = vpop.f32.mrf.mxu0
        %2204 = vdwg.mxu0
        %s2205 = sld [smem:[#allocation11 + $0x1]]
        %v2206 = vld [vmem:[%s3] sm:$0xff]
        %2208 = vset.pattern.permute.xlu0 1
        %2209 = vperm.xlu0 %2208, %v2206
        %v2210 = vpop.permute.xlu0 %2209
        %v2212 = vadd.f32 %v2163, %v2210
        %v2213 = vld [vmem:[%s244] sm:$0xff]
        %v2214 = vadd.f32 %v2212, %v2213
        %vm2215 = vcmp.ge.f32.partialorder %v2214, 0.0
        %v2216 = vstv %s2205
        %v2217 = vmul.f32 %v2216, %v2214
        %v2218 = vsel %vm2215, %v2214, %v2217
        %2219 = vst [vmem:[%s287] sm:$0xff] %v2218
        %v2220 = vld [vmem:[%s3] sm:$0xff]
        %2222 = vset.pattern.permute.xlu0 1
        %2223 = vperm.xlu0 %2222, %v2220
        %v2224 = vpop.permute.xlu0 %2223
        %v2226 = vadd.f32 %v2202, %v2224
        %v2227 = vld [vmem:[%s616] sm:$0xff]
        %v2228 = vadd.f32 %v2226, %v2227
        %vm2229 = vcmp.ge.f32.partialorder %v2228, 0.0
        %v2230 = vmul.f32 %v2216, %v2228
        %v2231 = vsel %vm2229, %v2228, %v2230
        %s2232 = scalar_lea.vmem %s287, 8 [#allocation12]
        %2233 = vst [vmem:[%s2232] sm:$0xff] %v2231
        %s2234 = sand.u32 %s142, 1
        %s2235 = scalar_lea.sflag [#allocation6], %s2234
        %s2236 = sand.u32 %s142, 1
        %s2237 = smul.addr %s2236, 16
        %s2238 = scalar_lea.vmem [#allocation12], %s2237
        // Predicated region
        $region57: #{tpu_custom_call.1} parent=39 // pred_check
          %p2239 = pneg %p152
        $region58: #{tpu_custom_call.1} parent=39 // pred_check_branch
          %2241 = sbr.rel (%p2239) target = $region60
        $region59: #{tpu_custom_call.1} parent=39 // pred_region
          %s2242 = smul.u32 2, %s24
          %2244 = vsyncadd %s2235, 0
          %s2245 = smul.addr %s2242, 8
          %s2246 = scalar_lea.hbm %s5, %s2245
          %s2247 = sshll.u32 %s2238, 4
          %s2248 = int_to_ptr.vmem [resolvable:$true] %s2247
          %s2249 = sshll.u32 %s2246, 4
          %s2250 = int_to_ptr.hbm [resolvable:$true] %s2249
          %2255 = dma.vmem_to_hbm [thread:$0]  %s2248, 256, %s2250, %s2235, 128, 128, 8
        $region60: #{tpu_custom_call.1} parent=39 // pred_fallthru
          _
      $region40: #{tpu_custom_call.1} parent=5 // pred_fallthru
        _
      %p2256 = scmp.le.s32.totalorder 2, %s19
      // Predicated region
      $region61: #{tpu_custom_call.1} parent=5 // pred_check
        %p2257 = pneg %p2256
      $region62: #{tpu_custom_call.1} parent=5 // pred_check_branch
        %2259 = sbr.rel (%p2257) target = $region64
      $region63: #{tpu_custom_call.1} parent=5 // pred_region
        %s2260 = ssub.s32 %s19, 2
        // Predicated region
        $region65: #{tpu_custom_call.1} parent=63 // pred_check
          %p2261 = pneg %p158
        $region66: #{tpu_custom_call.1} parent=63 // pred_check_branch
          %2263 = sbr.rel (%p2261) target = $region68
        $region67: #{tpu_custom_call.1} parent=63 // pred_region
          %s2264 = sand.u32 %s143, 1
          %s2265 = scalar_lea.sflag [#allocation6], %s2264
          %s2266 = sand.u32 %s143, 1
          %s2267 = smul.addr %s2266, 16
          %s2268 = scalar_lea.vmem [#allocation12], %s2267
          %2270 = dma.done %s2265, 256
        $region68: #{tpu_custom_call.1} parent=63 // pred_fallthru
          _
      $region64: #{tpu_custom_call.1} parent=5 // pred_fallthru
        _
    $region6: #{tpu_custom_call.1} parent=1 // loop_footer
      %s23 = sadd.s32 1, %s19
    $region7: #{tpu_custom_call.1} parent=1 // loop_footer_branch
      %18 = sbr.rel target = $region3
    $region8: #{tpu_custom_call.1} parent=1 // loop_exit
      _
    %2271 = vsyncpa [#allocation5], 1
    %s2272 = scalar_lea.sflag [#allocation5], 1
    %2273 = vsyncpa %s2272, 1
    %2274 = vsyncpa [#allocation9], 1
    %2275 = vsyncpa [#allocation6], 1
    %s2276 = scalar_lea.sflag [#allocation6], 1
    %2277 = vsyncpa %s2276, 1
    %2278 = vsyncpa [#allocation7], 1
    %s2279 = scalar_lea.sflag [#allocation7], 1
    %2280 = vsyncpa %s2279, 1

</llo_original>
